<compile_context>
chip_gen: v5e
topology: v5e:2x2
jax: 0.10.0
libtpu: 0.0.40
codegen_flags: <defaults>
</compile_context>

<pallas_src>
import jax
import jax.numpy as jnp
from jax.experimental import pallas as pl
from jax.experimental.pallas import tpu as pltpu


# -----------------------------------------------------------------------------
# tiling helper
# -----------------------------------------------------------------------------
def _pick_tile(m, target, multiple):
    """Largest t <= target with m % t == 0 and t % multiple == 0 (else m)."""
    if m <= target:
        return m
    for t in range(target, 0, -1):
        if m % t == 0 and t % multiple == 0:
            return t
    return m  # only for pathological sizes; never hit by this module's shapes


# -----------------------------------------------------------------------------
# Pallas kernels
# -----------------------------------------------------------------------------
def _mm_plain_kernel(a_ref, b_ref, o_ref):
    o_ref[...] = jnp.dot(
        a_ref[...], b_ref[...], preferred_element_type=jnp.float32
    ).astype(o_ref.dtype)


def _mm_bnrelu_kernel(a_ref, scale_ref, shift_ref, b_ref, o_ref):
    # Fused prologue: previous layer's BatchNorm-normalize (per-channel affine)
    # + ReLU applied to the A tile in f32, then the MXU channel contraction.
    a = a_ref[...].astype(jnp.float32)
    a = jnp.maximum(a * scale_ref[...] + shift_ref[...], 0.0)
    o_ref[...] = jnp.dot(
        a.astype(b_ref.dtype), b_ref[...], preferred_element_type=jnp.float32
    ).astype(o_ref.dtype)


def pallas_matmul(a, b, scale=None, shift=None, *, out_dtype=jnp.bfloat16,
                  tm_target=1024, tn_target=512):
    """(M,K) x (K,N) matmul, optional fused per-column affine+ReLU on A."""
    M, K = a.shape
    K2, Nc = b.shape
    assert K == K2
    tm = _pick_tile(M, tm_target, 8)
    tn = _pick_tile(Nc, tn_target, 128)
    grid = (M // tm, Nc // tn)

    in_specs = [pl.BlockSpec((tm, K), lambda i, j: (i, 0))]
    args = [a]
    if scale is not None:
        in_specs += [pl.BlockSpec((1, K), lambda i, j: (0, 0)),
                     pl.BlockSpec((1, K), lambda i, j: (0, 0))]
        args += [scale, shift]
        kern = _mm_bnrelu_kernel
    else:
        kern = _mm_plain_kernel
    in_specs.append(pl.BlockSpec((K, tn), lambda i, j: (0, j)))
    args.append(b)

    out_itemsize = jnp.dtype(out_dtype).itemsize
    bytes_accessed = (M * K * a.dtype.itemsize + K * Nc * b.dtype.itemsize
                      + M * Nc * out_itemsize)
    return pl.pallas_call(
        kern,
        out_shape=jax.ShapeDtypeStruct((M, Nc), out_dtype),
        grid=grid,
        in_specs=in_specs,
        out_specs=pl.BlockSpec((tm, tn), lambda i, j: (i, j)),
        compiler_params=pltpu.CompilerParams(
            dimension_semantics=("parallel", "parallel")),
        cost_estimate=pl.CostEstimate(
            flops=2 * M * K * Nc, transcendentals=0,
            bytes_accessed=bytes_accessed),
    )(*args)


def _bn_stats_kernel(x_ref, sum_ref, ssq_ref):
    # Accumulate per-column sum / sum-of-squares across the (arbitrary) M axis.
    @pl.when(pl.program_id(0) == 0)
    def _():
        sum_ref[...] = jnp.zeros_like(sum_ref)
        ssq_ref[...] = jnp.zeros_like(ssq_ref)

    x = x_ref[...].astype(jnp.float32)
    sum_ref[...] += jnp.sum(x, axis=0, keepdims=True)
    ssq_ref[...] += jnp.sum(x * x, axis=0, keepdims=True)


def pallas_bn_stats(x2, *, tr_target=256):
    """x2: (R, Ccols) lane-dense slab -> per-column (sum, sumsq), f32."""
    R, Ccols = x2.shape
    tr = _pick_tile(R, tr_target, 8)
    return pl.pallas_call(
        _bn_stats_kernel,
        out_shape=(jax.ShapeDtypeStruct((1, Ccols), jnp.float32),
                   jax.ShapeDtypeStruct((1, Ccols), jnp.float32)),
        grid=(R // tr,),
        in_specs=[pl.BlockSpec((tr, Ccols), lambda i: (i, 0))],
        out_specs=(pl.BlockSpec((1, Ccols), lambda i: (0, 0)),
                   pl.BlockSpec((1, Ccols), lambda i: (0, 0))),
        compiler_params=pltpu.CompilerParams(
            dimension_semantics=("arbitrary",)),
    )(x2)


def _bias_tanh_kernel(x_ref, b_ref, o_ref):
    o_ref[...] = jnp.tanh(x_ref[...].astype(jnp.float32) + b_ref[...])


def pallas_bias_tanh(x2, bias_row, *, tr_target=512):
    """x2: (R, Ccols) lane-dense slab; bias_row: (1, Ccols) pre-tiled bias."""
    R, Ccols = x2.shape
    tr = _pick_tile(R, tr_target, 8)
    return pl.pallas_call(
        _bias_tanh_kernel,
        out_shape=jax.ShapeDtypeStruct((R, Ccols), jnp.float32),
        grid=(R // tr,),
        in_specs=[pl.BlockSpec((tr, Ccols), lambda i: (i, 0)),
                  pl.BlockSpec((1, Ccols), lambda i: (0, 0))],
        out_specs=pl.BlockSpec((tr, Ccols), lambda i: (i, 0)),
        compiler_params=pltpu.CompilerParams(
            dimension_semantics=("parallel",)),
    )(x2, bias_row)


# -----------------------------------------------------------------------------
# XLA glue: scatter-formulation weight layout and col2im overlap-add (NHWC).
# -----------------------------------------------------------------------------
def _convt_weight_matrix(w, stride):
    # w: (Cin, Cout, kH, kW) -> (Cin, d*d*s*s*Cout), columns ordered
    # (dh, dw, rh, rw, co) with kh = dh*s + rh so col2im needs no per-term
    # transpose.
    cin, cout, kh, kw = w.shape
    s = stride
    assert kh % s == 0 and kw % s == 0
    d = kh // s
    w6 = w.reshape(cin, cout, d, s, d, s)          # (ci, co, dh, rh, dw, rw)
    w6 = w6.transpose(0, 2, 4, 3, 5, 1)            # (ci, dh, dw, rh, rw, co)
    return w6.reshape(cin, d * d * s * s * cout)


def _col2im(y, n, hi, wi, cout, k, stride, pad, out_dtype):
    # y: (n*hi*wi, d*d*s*s*cout). Overlap-add: ho = hi*s + kh - pad.
    # TODO(synk): the overlap-add is pure data movement done in XLA, not Pallas.
    s = stride
    assert k % s == 0
    d = k // s
    hq, wq = hi + d - 1, wi + d - 1
    y8 = y.reshape(n, hi, wi, d, d, s, s, cout).astype(jnp.float32)
    acc = jnp.zeros((n, hq, wq, s, s, cout), jnp.float32)
    for dh in range(d):
        for dw in range(d):
            term = y8[:, :, :, dh, dw]             # (n, hi, wi, s, s, cout)
            term = jnp.pad(term, ((0, 0),
                                  (dh, hq - hi - dh),
                                  (dw, wq - wi - dw),
                                  (0, 0), (0, 0), (0, 0)))
            acc = acc + term
    full = acc.transpose(0, 1, 3, 2, 4, 5).reshape(n, hq * s, wq * s, cout)
    ho = (hi - 1) * s + k - 2 * pad
    wo = (wi - 1) * s + k - 2 * pad
    return full[:, pad:pad + ho, pad:pad + wo, :].astype(out_dtype)


# -----------------------------------------------------------------------------
# Generator
# -----------------------------------------------------------------------------
class GeneratorPallas:
    K = 4
    EPS = 1e-5

    def __init__(self, latent_dim, img_channels, feature_maps, key):
        fm = feature_maps
        chans = [latent_dim, fm * 8, fm * 4, fm * 2, fm, img_channels]
        strides = [1, 2, 2, 2, 2]
        pads = [0, 1, 1, 1, 1]
        keys = jax.random.split(key, 6)
        self.layers = []
        for li in range(5):
            cin, cout = chans[li], chans[li + 1]
            w = 0.02 * jax.random.normal(
                keys[li], (cin, cout, self.K, self.K), jnp.float32)
            has_bn = li < 4
            self.layers.append(dict(
                cout=cout, stride=strides[li], pad=pads[li], bn=has_bn,
                b_mat=_convt_weight_matrix(w, strides[li]).astype(jnp.bfloat16),
                gamma=jnp.ones((cout,), jnp.float32) if has_bn else None,
                beta=jnp.zeros((cout,), jnp.float32) if has_bn else None,
                bias=None if has_bn else
                0.02 * jax.random.normal(keys[5], (cout,), jnp.float32),
            ))

    def __call__(self, x_nchw):
        n = x_nchw.shape[0]
        a = x_nchw.reshape(n, -1).astype(jnp.bfloat16)   # (N, latent) rows
        hi = wi = 1
        scale = shift = None
        out = None
        for L in self.layers:
            last = not L["bn"]
            act_dtype = jnp.float32 if last else jnp.bfloat16
            y = pallas_matmul(a, L["b_mat"], scale, shift, out_dtype=act_dtype)
            act = _col2im(y, n, hi, wi, L["cout"], self.K,
                          L["stride"], L["pad"], act_dtype)       # NHWC
            ho, wo = act.shape[1], act.shape[2]
            if L["bn"]:
                # Training-mode batch statistics (biased variance).
                x2 = act.reshape(n * ho, wo * L["cout"])          # lane-dense
                csum, cssq = pallas_bn_stats(x2)
                m = n * ho * wo
                ch_sum = csum.reshape(wo, L["cout"]).sum(axis=0)
                ch_ssq = cssq.reshape(wo, L["cout"]).sum(axis=0)
                mean = ch_sum / m
                var = jnp.maximum(ch_ssq / m - mean * mean, 0.0)
                inv = jax.lax.rsqrt(var + self.EPS)
                scale = (L["gamma"] * inv).reshape(1, L["cout"])
                shift = (L["beta"] - mean * L["gamma"] * inv).reshape(
                    1, L["cout"])
                # Normalize + ReLU are fused into the NEXT layer's matmul.
                a = act.reshape(n * ho * wo, L["cout"])
                hi, wi = ho, wo
            else:
                bias_row = jnp.tile(L["bias"], wo).reshape(1, wo * L["cout"])
                out2 = pallas_bias_tanh(
                    act.reshape(n * ho, wo * L["cout"]), bias_row)
                out = out2.reshape(n, ho, wo, L["cout"]).transpose(0, 3, 1, 2)
        return out


if __name__ == "__main__":
    # Small shapes consistent with the module (scaled-down feature_maps/latent).
    latent_dim, img_channels, feature_maps, batch = 16, 3, 8, 2
    key = jax.random.PRNGKey(0)
    kp, kx = jax.random.split(key)

    gen = GeneratorPallas(latent_dim, img_channels, feature_maps, kp)
    x = jax.random.normal(kx, (batch, latent_dim, 1, 1), jnp.float32)  # NCHW

    fwd = jax.jit(gen.__call__)
    y = jax.block_until_ready(fwd(x))

    assert y.shape == (batch, img_channels, 64, 64), y.shape
    assert bool(jnp.all(jnp.isfinite(y)))
    assert float(jnp.max(jnp.abs(y))) <= 1.0 + 1e-6  # tanh range
    print("KERNEL_OK")
</pallas_src>

<mosaic_0001>
module attributes {stable_mosaic.version = 11 : i64} {
  func.func @_mm_plain_kernel(%arg0: i32, %arg1: i32, %arg2: memref<2x16xbf16, #tpu.memory_space<vmem>>, %arg3: memref<16x512xbf16, #tpu.memory_space<vmem>>, %arg4: memref<2x512xbf16, #tpu.memory_space<vmem>>) attributes {dimension_semantics = [#tpu.dimension_semantics<parallel>, #tpu.dimension_semantics<parallel>], iteration_bounds = array<i64: 1, 2>, scalar_prefetch = 0 : i64, scratch_operands = 0 : i64, tpu.core_type = #tpu.core_type<tc>, window_params = [{transform_indices = @transform_0, window_bounds = array<i64: 2, 16>}, {transform_indices = @transform_1, window_bounds = array<i64: 16, 512>}, {transform_indices = @transform_2, window_bounds = array<i64: 2, 512>}]} {
    %c0 = arith.constant 0 : index
    %c0_0 = arith.constant 0 : index
    %0 = vector.load %arg2[%c0, %c0_0] : memref<2x16xbf16, #tpu.memory_space<vmem>>, vector<2x16xbf16>
    %c0_1 = arith.constant 0 : index
    %c0_2 = arith.constant 0 : index
    %1 = vector.load %arg3[%c0_1, %c0_2] : memref<16x512xbf16, #tpu.memory_space<vmem>>, vector<16x512xbf16>
    %cst = arith.constant dense<0.000000e+00> : vector<2x512xf32>
    %2 = tpu.matmul %0, %1, %cst {dimension_numbers = #tpu.dot_dimension_numbers<[1], [0], [0], [1], [0, 0, 1, 1], [], []>} : vector<2x16xbf16>, vector<16x512xbf16>, vector<2x512xf32> -> vector<2x512xf32>
    %3 = arith.truncf %2 : vector<2x512xf32> to vector<2x512xbf16>
    %c0_3 = arith.constant 0 : index
    %c0_4 = arith.constant 0 : index
    %4 = vector.load %arg4[%c0_3, %c0_4] : memref<2x512xbf16, #tpu.memory_space<vmem>>, vector<2x512xbf16>
    tpu.vector_store %arg4[%c0_3, %c0_4], %3 {strides = array<i32>} : memref<2x512xbf16, #tpu.memory_space<vmem>>, vector<2x512xbf16>,
    return
  }
  func.func @transform_0(%arg0: i32, %arg1: i32) -> (i32, i32) {
    %c0_i32 = arith.constant 0 : i32
    %c0_i32_0 = arith.constant 0 : i32
    return %arg0, %c0_i32 : i32, i32
  }
  func.func @transform_1(%arg0: i32, %arg1: i32) -> (i32, i32) {
    %c0_i32 = arith.constant 0 : i32
    %c0_i32_0 = arith.constant 0 : i32
    return %c0_i32, %arg1 : i32, i32
  }
  func.func @transform_2(%arg0: i32, %arg1: i32) -> (i32, i32) {
    %c0_i32 = arith.constant 0 : i32
    return %arg0, %arg1 : i32, i32
  }
}

module attributes {stable_mosaic.version = 11 : i64} {
  func.func @_bn_stats_kernel(%arg0: i32, %arg1: memref<8x256xbf16, #tpu.memory_space<vmem>>, %arg2: memref<1x256xf32, #tpu.memory_space<vmem>>, %arg3: memref<1x256xf32, #tpu.memory_space<vmem>>) attributes {dimension_semantics = [#tpu.dimension_semantics<arbitrary>], iteration_bounds = array<i64: 1>, scalar_prefetch = 0 : i64, scratch_operands = 0 : i64, tpu.core_type = #tpu.core_type<tc>, window_params = [{transform_indices = @transform_0, window_bounds = array<i64: 8, 256>}, {pipeline_mode = #tpu.pipeline_mode<synchronous>, transform_indices = @transform_1, window_bounds = array<i64: 1, 256>}, {pipeline_mode = #tpu.pipeline_mode<synchronous>, transform_indices = @transform_2, window_bounds = array<i64: 1, 256>}]} {
    %c0_i32 = arith.constant 0 : i32
    %0 = arith.cmpi eq, %arg0, %c0_i32 : i32
    %1 = arith.extui %0 : i1 to i32
    %c0_i32_0 = arith.constant 0 : i32
    %2 = arith.cmpi ne, %1, %c0_i32_0 : i32
    scf.if %2 {
      %cst_11 = arith.constant 0.000000e+00 : f32
      %16 = vector.broadcast %cst_11 : f32 to vector<1x256xf32>
      %c0_12 = arith.constant 0 : index
      %c0_13 = arith.constant 0 : index
      %17 = vector.load %arg2[%c0_12, %c0_13] : memref<1x256xf32, #tpu.memory_space<vmem>>, vector<1x256xf32>
      tpu.vector_store %arg2[%c0_12, %c0_13], %16 {strides = array<i32>} : memref<1x256xf32, #tpu.memory_space<vmem>>, vector<1x256xf32>,
      %cst_14 = arith.constant 0.000000e+00 : f32
      %18 = vector.broadcast %cst_14 : f32 to vector<1x256xf32>
      %c0_15 = arith.constant 0 : index
      %c0_16 = arith.constant 0 : index
      %19 = vector.load %arg3[%c0_15, %c0_16] : memref<1x256xf32, #tpu.memory_space<vmem>>, vector<1x256xf32>
      tpu.vector_store %arg3[%c0_15, %c0_16], %18 {strides = array<i32>} : memref<1x256xf32, #tpu.memory_space<vmem>>, vector<1x256xf32>,
    } else {
    }
    %c0 = arith.constant 0 : index
    %c0_1 = arith.constant 0 : index
    %3 = vector.load %arg1[%c0, %c0_1] : memref<8x256xbf16, #tpu.memory_space<vmem>>, vector<8x256xbf16>
    %4 = arith.extf %3 : vector<8x256xbf16> to vector<8x256xf32>
    %c0_2 = arith.constant 0 : index
    %c0_3 = arith.constant 0 : index
    %5 = vector.load %arg2[%c0_2, %c0_3] : memref<1x256xf32, #tpu.memory_space<vmem>>, vector<1x256xf32>
    %cst = arith.constant dense<0.000000e+00> : vector<256xf32>
    %6 = vector.multi_reduction <add>, %4, %cst [0] : vector<8x256xf32> to vector<256xf32>
    %7 = vector.shape_cast %6 : vector<256xf32> to vector<1x256xf32>
    %8 = arith.addf %5, %7 : vector<1x256xf32>
    %c0_4 = arith.constant 0 : index
    %c0_5 = arith.constant 0 : index
    %9 = vector.load %arg2[%c0_4, %c0_5] : memref<1x256xf32, #tpu.memory_space<vmem>>, vector<1x256xf32>
    tpu.vector_store %arg2[%c0_4, %c0_5], %8 {strides = array<i32>} : memref<1x256xf32, #tpu.memory_space<vmem>>, vector<1x256xf32>,
    %c0_6 = arith.constant 0 : index
    %c0_7 = arith.constant 0 : index
    %10 = vector.load %arg3[%c0_6, %c0_7] : memref<1x256xf32, #tpu.memory_space<vmem>>, vector<1x256xf32>
    %11 = arith.mulf %4, %4 : vector<8x256xf32>
    %cst_8 = arith.constant dense<0.000000e+00> : vector<256xf32>
    %12 = vector.multi_reduction <add>, %11, %cst_8 [0] : vector<8x256xf32> to vector<256xf32>
    %13 = vector.shape_cast %12 : vector<256xf32> to vector<1x256xf32>
    %14 = arith.addf %10, %13 : vector<1x256xf32>
    %c0_9 = arith.constant 0 : index
    %c0_10 = arith.constant 0 : index
    %15 = vector.load %arg3[%c0_9, %c0_10] : memref<1x256xf32, #tpu.memory_space<vmem>>, vector<1x256xf32>
    tpu.vector_store %arg3[%c0_9, %c0_10], %14 {strides = array<i32>} : memref<1x256xf32, #tpu.memory_space<vmem>>, vector<1x256xf32>,
    return
  }
  func.func @transform_0(%arg0: i32) -> (i32, i32) {
    %c0_i32 = arith.constant 0 : i32
    %c0_i32_0 = arith.constant 0 : i32
    return %arg0, %c0_i32 : i32, i32
  }
  func.func @transform_1(%arg0: i32) -> (i32, i32) {
    %c0_i32 = arith.constant 0 : i32
    %c0_i32_0 = arith.constant 0 : i32
    %c0_i32_1 = arith.constant 0 : i32
    return %c0_i32, %c0_i32_0 : i32, i32
  }
  func.func @transform_2(%arg0: i32) -> (i32, i32) {
    %c0_i32 = arith.constant 0 : i32
    %c0_i32_0 = arith.constant 0 : i32
    %c0_i32_1 = arith.constant 0 : i32
    return %c0_i32, %c0_i32_0 : i32, i32
  }
}

module attributes {stable_mosaic.version = 11 : i64} {
  func.func @_mm_bnrelu_kernel(%arg0: i32, %arg1: i32, %arg2: memref<32x64xbf16, #tpu.memory_space<vmem>>, %arg3: memref<1x64xf32, #tpu.memory_space<vmem>>, %arg4: memref<1x64xf32, #tpu.memory_space<vmem>>, %arg5: memref<64x512xbf16, #tpu.memory_space<vmem>>, %arg6: memref<32x512xbf16, #tpu.memory_space<vmem>>) attributes {dimension_semantics = [#tpu.dimension_semantics<parallel>, #tpu.dimension_semantics<parallel>], iteration_bounds = array<i64: 1, 1>, scalar_prefetch = 0 : i64, scratch_operands = 0 : i64, tpu.core_type = #tpu.core_type<tc>, window_params = [{transform_indices = @transform_0, window_bounds = array<i64: 32, 64>}, {pipeline_mode = #tpu.pipeline_mode<synchronous>, transform_indices = @transform_1, window_bounds = array<i64: 1, 64>}, {pipeline_mode = #tpu.pipeline_mode<synchronous>, transform_indices = @transform_2, window_bounds = array<i64: 1, 64>}, {transform_indices = @transform_3, window_bounds = array<i64: 64, 512>}, {transform_indices = @transform_4, window_bounds = array<i64: 32, 512>}]} {
    %c0 = arith.constant 0 : index
    %c0_0 = arith.constant 0 : index
    %0 = vector.load %arg2[%c0, %c0_0] : memref<32x64xbf16, #tpu.memory_space<vmem>>, vector<32x64xbf16>
    %1 = arith.extf %0 : vector<32x64xbf16> to vector<32x64xf32>
    %c0_1 = arith.constant 0 : index
    %c0_2 = arith.constant 0 : index
    %2 = vector.load %arg3[%c0_1, %c0_2] : memref<1x64xf32, #tpu.memory_space<vmem>>, vector<1x64xf32>
    %3 = vector.broadcast %2 : vector<1x64xf32> to vector<32x64xf32>
    %4 = arith.mulf %1, %3 : vector<32x64xf32>
    %c0_3 = arith.constant 0 : index
    %c0_4 = arith.constant 0 : index
    %5 = vector.load %arg4[%c0_3, %c0_4] : memref<1x64xf32, #tpu.memory_space<vmem>>, vector<1x64xf32>
    %6 = vector.broadcast %5 : vector<1x64xf32> to vector<32x64xf32>
    %7 = arith.addf %4, %6 : vector<32x64xf32>
    %cst = arith.constant 0.000000e+00 : f32
    %8 = vector.broadcast %cst : f32 to vector<32x64xf32>
    %9 = arith.maximumf %7, %8 : vector<32x64xf32>
    %10 = arith.truncf %9 : vector<32x64xf32> to vector<32x64xbf16>
    %c0_5 = arith.constant 0 : index
    %c0_6 = arith.constant 0 : index
    %11 = vector.load %arg5[%c0_5, %c0_6] : memref<64x512xbf16, #tpu.memory_space<vmem>>, vector<64x512xbf16>
    %cst_7 = arith.constant dense<0.000000e+00> : vector<32x512xf32>
    %12 = tpu.matmul %10, %11, %cst_7 {dimension_numbers = #tpu.dot_dimension_numbers<[1], [0], [0], [1], [0, 0, 1, 1], [], []>} : vector<32x64xbf16>, vector<64x512xbf16>, vector<32x512xf32> -> vector<32x512xf32>
    %13 = arith.truncf %12 : vector<32x512xf32> to vector<32x512xbf16>
    %c0_8 = arith.constant 0 : index
    %c0_9 = arith.constant 0 : index
    %14 = vector.load %arg6[%c0_8, %c0_9] : memref<32x512xbf16, #tpu.memory_space<vmem>>, vector<32x512xbf16>
    tpu.vector_store %arg6[%c0_8, %c0_9], %13 {strides = array<i32>} : memref<32x512xbf16, #tpu.memory_space<vmem>>, vector<32x512xbf16>,
    return
  }
  func.func @transform_0(%arg0: i32, %arg1: i32) -> (i32, i32) {
    %c0_i32 = arith.constant 0 : i32
    %c0_i32_0 = arith.constant 0 : i32
    return %arg0, %c0_i32 : i32, i32
  }
  func.func @transform_1(%arg0: i32, %arg1: i32) -> (i32, i32) {
    %c0_i32 = arith.constant 0 : i32
    %c0_i32_0 = arith.constant 0 : i32
    %c0_i32_1 = arith.constant 0 : i32
    return %c0_i32, %c0_i32_0 : i32, i32
  }
  func.func @transform_2(%arg0: i32, %arg1: i32) -> (i32, i32) {
    %c0_i32 = arith.constant 0 : i32
    %c0_i32_0 = arith.constant 0 : i32
    %c0_i32_1 = arith.constant 0 : i32
    return %c0_i32, %c0_i32_0 : i32, i32
  }
  func.func @transform_3(%arg0: i32, %arg1: i32) -> (i32, i32) {
    %c0_i32 = arith.constant 0 : i32
    %c0_i32_0 = arith.constant 0 : i32
    return %c0_i32, %arg1 : i32, i32
  }
  func.func @transform_4(%arg0: i32, %arg1: i32) -> (i32, i32) {
    %c0_i32 = arith.constant 0 : i32
    return %arg0, %arg1 : i32, i32
  }
}

module attributes {stable_mosaic.version = 11 : i64} {
  func.func @_bn_stats_kernel(%arg0: i32, %arg1: memref<16x256xbf16, #tpu.memory_space<vmem>>, %arg2: memref<1x256xf32, #tpu.memory_space<vmem>>, %arg3: memref<1x256xf32, #tpu.memory_space<vmem>>) attributes {dimension_semantics = [#tpu.dimension_semantics<arbitrary>], iteration_bounds = array<i64: 1>, scalar_prefetch = 0 : i64, scratch_operands = 0 : i64, tpu.core_type = #tpu.core_type<tc>, window_params = [{transform_indices = @transform_0, window_bounds = array<i64: 16, 256>}, {pipeline_mode = #tpu.pipeline_mode<synchronous>, transform_indices = @transform_1, window_bounds = array<i64: 1, 256>}, {pipeline_mode = #tpu.pipeline_mode<synchronous>, transform_indices = @transform_2, window_bounds = array<i64: 1, 256>}]} {
    %c0_i32 = arith.constant 0 : i32
    %0 = arith.cmpi eq, %arg0, %c0_i32 : i32
    %1 = arith.extui %0 : i1 to i32
    %c0_i32_0 = arith.constant 0 : i32
    %2 = arith.cmpi ne, %1, %c0_i32_0 : i32
    scf.if %2 {
      %cst_11 = arith.constant 0.000000e+00 : f32
      %16 = vector.broadcast %cst_11 : f32 to vector<1x256xf32>
      %c0_12 = arith.constant 0 : index
      %c0_13 = arith.constant 0 : index
      %17 = vector.load %arg2[%c0_12, %c0_13] : memref<1x256xf32, #tpu.memory_space<vmem>>, vector<1x256xf32>
      tpu.vector_store %arg2[%c0_12, %c0_13], %16 {strides = array<i32>} : memref<1x256xf32, #tpu.memory_space<vmem>>, vector<1x256xf32>,
      %cst_14 = arith.constant 0.000000e+00 : f32
      %18 = vector.broadcast %cst_14 : f32 to vector<1x256xf32>
      %c0_15 = arith.constant 0 : index
      %c0_16 = arith.constant 0 : index
      %19 = vector.load %arg3[%c0_15, %c0_16] : memref<1x256xf32, #tpu.memory_space<vmem>>, vector<1x256xf32>
      tpu.vector_store %arg3[%c0_15, %c0_16], %18 {strides = array<i32>} : memref<1x256xf32, #tpu.memory_space<vmem>>, vector<1x256xf32>,
    } else {
    }
    %c0 = arith.constant 0 : index
    %c0_1 = arith.constant 0 : index
    %3 = vector.load %arg1[%c0, %c0_1] : memref<16x256xbf16, #tpu.memory_space<vmem>>, vector<16x256xbf16>
    %4 = arith.extf %3 : vector<16x256xbf16> to vector<16x256xf32>
    %c0_2 = arith.constant 0 : index
    %c0_3 = arith.constant 0 : index
    %5 = vector.load %arg2[%c0_2, %c0_3] : memref<1x256xf32, #tpu.memory_space<vmem>>, vector<1x256xf32>
    %cst = arith.constant dense<0.000000e+00> : vector<256xf32>
    %6 = vector.multi_reduction <add>, %4, %cst [0] : vector<16x256xf32> to vector<256xf32>
    %7 = vector.shape_cast %6 : vector<256xf32> to vector<1x256xf32>
    %8 = arith.addf %5, %7 : vector<1x256xf32>
    %c0_4 = arith.constant 0 : index
    %c0_5 = arith.constant 0 : index
    %9 = vector.load %arg2[%c0_4, %c0_5] : memref<1x256xf32, #tpu.memory_space<vmem>>, vector<1x256xf32>
    tpu.vector_store %arg2[%c0_4, %c0_5], %8 {strides = array<i32>} : memref<1x256xf32, #tpu.memory_space<vmem>>, vector<1x256xf32>,
    %c0_6 = arith.constant 0 : index
    %c0_7 = arith.constant 0 : index
    %10 = vector.load %arg3[%c0_6, %c0_7] : memref<1x256xf32, #tpu.memory_space<vmem>>, vector<1x256xf32>
    %11 = arith.mulf %4, %4 : vector<16x256xf32>
    %cst_8 = arith.constant dense<0.000000e+00> : vector<256xf32>
    %12 = vector.multi_reduction <add>, %11, %cst_8 [0] : vector<16x256xf32> to vector<256xf32>
    %13 = vector.shape_cast %12 : vector<256xf32> to vector<1x256xf32>
    %14 = arith.addf %10, %13 : vector<1x256xf32>
    %c0_9 = arith.constant 0 : index
    %c0_10 = arith.constant 0 : index
    %15 = vector.load %arg3[%c0_9, %c0_10] : memref<1x256xf32, #tpu.memory_space<vmem>>, vector<1x256xf32>
    tpu.vector_store %arg3[%c0_9, %c0_10], %14 {strides = array<i32>} : memref<1x256xf32, #tpu.memory_space<vmem>>, vector<1x256xf32>,
    return
  }
  func.func @transform_0(%arg0: i32) -> (i32, i32) {
    %c0_i32 = arith.constant 0 : i32
    %c0_i32_0 = arith.constant 0 : i32
    return %arg0, %c0_i32 : i32, i32
  }
  func.func @transform_1(%arg0: i32) -> (i32, i32) {
    %c0_i32 = arith.constant 0 : i32
    %c0_i32_0 = arith.constant 0 : i32
    %c0_i32_1 = arith.constant 0 : i32
    return %c0_i32, %c0_i32_0 : i32, i32
  }
  func.func @transform_2(%arg0: i32) -> (i32, i32) {
    %c0_i32 = arith.constant 0 : i32
    %c0_i32_0 = arith.constant 0 : i32
    %c0_i32_1 = arith.constant 0 : i32
    return %c0_i32, %c0_i32_0 : i32, i32
  }
}

module attributes {stable_mosaic.version = 11 : i64} {
  func.func @_mm_bnrelu_kernel(%arg0: i32, %arg1: i32, %arg2: memref<128x32xbf16, #tpu.memory_space<vmem>>, %arg3: memref<1x32xf32, #tpu.memory_space<vmem>>, %arg4: memref<1x32xf32, #tpu.memory_space<vmem>>, %arg5: memref<32x256xbf16, #tpu.memory_space<vmem>>, %arg6: memref<128x256xbf16, #tpu.memory_space<vmem>>) attributes {dimension_semantics = [#tpu.dimension_semantics<parallel>, #tpu.dimension_semantics<parallel>], iteration_bounds = array<i64: 1, 1>, scalar_prefetch = 0 : i64, scratch_operands = 0 : i64, tpu.core_type = #tpu.core_type<tc>, window_params = [{transform_indices = @transform_0, window_bounds = array<i64: 128, 32>}, {pipeline_mode = #tpu.pipeline_mode<synchronous>, transform_indices = @transform_1, window_bounds = array<i64: 1, 32>}, {pipeline_mode = #tpu.pipeline_mode<synchronous>, transform_indices = @transform_2, window_bounds = array<i64: 1, 32>}, {transform_indices = @transform_3, window_bounds = array<i64: 32, 256>}, {transform_indices = @transform_4, window_bounds = array<i64: 128, 256>}]} {
    %c0 = arith.constant 0 : index
    %c0_0 = arith.constant 0 : index
    %0 = vector.load %arg2[%c0, %c0_0] : memref<128x32xbf16, #tpu.memory_space<vmem>>, vector<128x32xbf16>
    %1 = arith.extf %0 : vector<128x32xbf16> to vector<128x32xf32>
    %c0_1 = arith.constant 0 : index
    %c0_2 = arith.constant 0 : index
    %2 = vector.load %arg3[%c0_1, %c0_2] : memref<1x32xf32, #tpu.memory_space<vmem>>, vector<1x32xf32>
    %3 = vector.broadcast %2 : vector<1x32xf32> to vector<128x32xf32>
    %4 = arith.mulf %1, %3 : vector<128x32xf32>
    %c0_3 = arith.constant 0 : index
    %c0_4 = arith.constant 0 : index
    %5 = vector.load %arg4[%c0_3, %c0_4] : memref<1x32xf32, #tpu.memory_space<vmem>>, vector<1x32xf32>
    %6 = vector.broadcast %5 : vector<1x32xf32> to vector<128x32xf32>
    %7 = arith.addf %4, %6 : vector<128x32xf32>
    %cst = arith.constant 0.000000e+00 : f32
    %8 = vector.broadcast %cst : f32 to vector<128x32xf32>
    %9 = arith.maximumf %7, %8 : vector<128x32xf32>
    %10 = arith.truncf %9 : vector<128x32xf32> to vector<128x32xbf16>
    %c0_5 = arith.constant 0 : index
    %c0_6 = arith.constant 0 : index
    %11 = vector.load %arg5[%c0_5, %c0_6] : memref<32x256xbf16, #tpu.memory_space<vmem>>, vector<32x256xbf16>
    %cst_7 = arith.constant dense<0.000000e+00> : vector<128x256xf32>
    %12 = tpu.matmul %10, %11, %cst_7 {dimension_numbers = #tpu.dot_dimension_numbers<[1], [0], [0], [1], [0, 0, 1, 1], [], []>} : vector<128x32xbf16>, vector<32x256xbf16>, vector<128x256xf32> -> vector<128x256xf32>
    %13 = arith.truncf %12 : vector<128x256xf32> to vector<128x256xbf16>
    %c0_8 = arith.constant 0 : index
    %c0_9 = arith.constant 0 : index
    %14 = vector.load %arg6[%c0_8, %c0_9] : memref<128x256xbf16, #tpu.memory_space<vmem>>, vector<128x256xbf16>
    tpu.vector_store %arg6[%c0_8, %c0_9], %13 {strides = array<i32>} : memref<128x256xbf16, #tpu.memory_space<vmem>>, vector<128x256xbf16>,
    return
  }
  func.func @transform_0(%arg0: i32, %arg1: i32) -> (i32, i32) {
    %c0_i32 = arith.constant 0 : i32
    %c0_i32_0 = arith.constant 0 : i32
    return %arg0, %c0_i32 : i32, i32
  }
  func.func @transform_1(%arg0: i32, %arg1: i32) -> (i32, i32) {
    %c0_i32 = arith.constant 0 : i32
    %c0_i32_0 = arith.constant 0 : i32
    %c0_i32_1 = arith.constant 0 : i32
    return %c0_i32, %c0_i32_0 : i32, i32
  }
  func.func @transform_2(%arg0: i32, %arg1: i32) -> (i32, i32) {
    %c0_i32 = arith.constant 0 : i32
    %c0_i32_0 = arith.constant 0 : i32
    %c0_i32_1 = arith.constant 0 : i32
    return %c0_i32, %c0_i32_0 : i32, i32
  }
  func.func @transform_3(%arg0: i32, %arg1: i32) -> (i32, i32) {
    %c0_i32 = arith.constant 0 : i32
    %c0_i32_0 = arith.constant 0 : i32
    return %c0_i32, %arg1 : i32, i32
  }
  func.func @transform_4(%arg0: i32, %arg1: i32) -> (i32, i32) {
    %c0_i32 = arith.constant 0 : i32
    return %arg0, %arg1 : i32, i32
  }
}

module attributes {stable_mosaic.version = 11 : i64} {
  func.func @_bn_stats_kernel(%arg0: i32, %arg1: memref<32x256xbf16, #tpu.memory_space<vmem>>, %arg2: memref<1x256xf32, #tpu.memory_space<vmem>>, %arg3: memref<1x256xf32, #tpu.memory_space<vmem>>) attributes {dimension_semantics = [#tpu.dimension_semantics<arbitrary>], iteration_bounds = array<i64: 1>, scalar_prefetch = 0 : i64, scratch_operands = 0 : i64, tpu.core_type = #tpu.core_type<tc>, window_params = [{transform_indices = @transform_0, window_bounds = array<i64: 32, 256>}, {pipeline_mode = #tpu.pipeline_mode<synchronous>, transform_indices = @transform_1, window_bounds = array<i64: 1, 256>}, {pipeline_mode = #tpu.pipeline_mode<synchronous>, transform_indices = @transform_2, window_bounds = array<i64: 1, 256>}]} {
    %c0_i32 = arith.constant 0 : i32
    %0 = arith.cmpi eq, %arg0, %c0_i32 : i32
    %1 = arith.extui %0 : i1 to i32
    %c0_i32_0 = arith.constant 0 : i32
    %2 = arith.cmpi ne, %1, %c0_i32_0 : i32
    scf.if %2 {
      %cst_11 = arith.constant 0.000000e+00 : f32
      %16 = vector.broadcast %cst_11 : f32 to vector<1x256xf32>
      %c0_12 = arith.constant 0 : index
      %c0_13 = arith.constant 0 : index
      %17 = vector.load %arg2[%c0_12, %c0_13] : memref<1x256xf32, #tpu.memory_space<vmem>>, vector<1x256xf32>
      tpu.vector_store %arg2[%c0_12, %c0_13], %16 {strides = array<i32>} : memref<1x256xf32, #tpu.memory_space<vmem>>, vector<1x256xf32>,
      %cst_14 = arith.constant 0.000000e+00 : f32
      %18 = vector.broadcast %cst_14 : f32 to vector<1x256xf32>
      %c0_15 = arith.constant 0 : index
      %c0_16 = arith.constant 0 : index
      %19 = vector.load %arg3[%c0_15, %c0_16] : memref<1x256xf32, #tpu.memory_space<vmem>>, vector<1x256xf32>
      tpu.vector_store %arg3[%c0_15, %c0_16], %18 {strides = array<i32>} : memref<1x256xf32, #tpu.memory_space<vmem>>, vector<1x256xf32>,
    } else {
    }
    %c0 = arith.constant 0 : index
    %c0_1 = arith.constant 0 : index
    %3 = vector.load %arg1[%c0, %c0_1] : memref<32x256xbf16, #tpu.memory_space<vmem>>, vector<32x256xbf16>
    %4 = arith.extf %3 : vector<32x256xbf16> to vector<32x256xf32>
    %c0_2 = arith.constant 0 : index
    %c0_3 = arith.constant 0 : index
    %5 = vector.load %arg2[%c0_2, %c0_3] : memref<1x256xf32, #tpu.memory_space<vmem>>, vector<1x256xf32>
    %cst = arith.constant dense<0.000000e+00> : vector<256xf32>
    %6 = vector.multi_reduction <add>, %4, %cst [0] : vector<32x256xf32> to vector<256xf32>
    %7 = vector.shape_cast %6 : vector<256xf32> to vector<1x256xf32>
    %8 = arith.addf %5, %7 : vector<1x256xf32>
    %c0_4 = arith.constant 0 : index
    %c0_5 = arith.constant 0 : index
    %9 = vector.load %arg2[%c0_4, %c0_5] : memref<1x256xf32, #tpu.memory_space<vmem>>, vector<1x256xf32>
    tpu.vector_store %arg2[%c0_4, %c0_5], %8 {strides = array<i32>} : memref<1x256xf32, #tpu.memory_space<vmem>>, vector<1x256xf32>,
    %c0_6 = arith.constant 0 : index
    %c0_7 = arith.constant 0 : index
    %10 = vector.load %arg3[%c0_6, %c0_7] : memref<1x256xf32, #tpu.memory_space<vmem>>, vector<1x256xf32>
    %11 = arith.mulf %4, %4 : vector<32x256xf32>
    %cst_8 = arith.constant dense<0.000000e+00> : vector<256xf32>
    %12 = vector.multi_reduction <add>, %11, %cst_8 [0] : vector<32x256xf32> to vector<256xf32>
    %13 = vector.shape_cast %12 : vector<256xf32> to vector<1x256xf32>
    %14 = arith.addf %10, %13 : vector<1x256xf32>
    %c0_9 = arith.constant 0 : index
    %c0_10 = arith.constant 0 : index
    %15 = vector.load %arg3[%c0_9, %c0_10] : memref<1x256xf32, #tpu.memory_space<vmem>>, vector<1x256xf32>
    tpu.vector_store %arg3[%c0_9, %c0_10], %14 {strides = array<i32>} : memref<1x256xf32, #tpu.memory_space<vmem>>, vector<1x256xf32>,
    return
  }
  func.func @transform_0(%arg0: i32) -> (i32, i32) {
    %c0_i32 = arith.constant 0 : i32
    %c0_i32_0 = arith.constant 0 : i32
    return %arg0, %c0_i32 : i32, i32
  }
  func.func @transform_1(%arg0: i32) -> (i32, i32) {
    %c0_i32 = arith.constant 0 : i32
    %c0_i32_0 = arith.constant 0 : i32
    %c0_i32_1 = arith.constant 0 : i32
    return %c0_i32, %c0_i32_0 : i32, i32
  }
  func.func @transform_2(%arg0: i32) -> (i32, i32) {
    %c0_i32 = arith.constant 0 : i32
    %c0_i32_0 = arith.constant 0 : i32
    %c0_i32_1 = arith.constant 0 : i32
    return %c0_i32, %c0_i32_0 : i32, i32
  }
}

module attributes {stable_mosaic.version = 11 : i64} {
  func.func @_mm_bnrelu_kernel(%arg0: i32, %arg1: i32, %arg2: memref<512x16xbf16, #tpu.memory_space<vmem>>, %arg3: memref<1x16xf32, #tpu.memory_space<vmem>>, %arg4: memref<1x16xf32, #tpu.memory_space<vmem>>, %arg5: memref<16x128xbf16, #tpu.memory_space<vmem>>, %arg6: memref<512x128xbf16, #tpu.memory_space<vmem>>) attributes {dimension_semantics = [#tpu.dimension_semantics<parallel>, #tpu.dimension_semantics<parallel>], iteration_bounds = array<i64: 1, 1>, scalar_prefetch = 0 : i64, scratch_operands = 0 : i64, tpu.core_type = #tpu.core_type<tc>, window_params = [{transform_indices = @transform_0, window_bounds = array<i64: 512, 16>}, {pipeline_mode = #tpu.pipeline_mode<synchronous>, transform_indices = @transform_1, window_bounds = array<i64: 1, 16>}, {pipeline_mode = #tpu.pipeline_mode<synchronous>, transform_indices = @transform_2, window_bounds = array<i64: 1, 16>}, {transform_indices = @transform_3, window_bounds = array<i64: 16, 128>}, {transform_indices = @transform_4, window_bounds = array<i64: 512, 128>}]} {
    %c0 = arith.constant 0 : index
    %c0_0 = arith.constant 0 : index
    %0 = vector.load %arg2[%c0, %c0_0] : memref<512x16xbf16, #tpu.memory_space<vmem>>, vector<512x16xbf16>
    %1 = arith.extf %0 : vector<512x16xbf16> to vector<512x16xf32>
    %c0_1 = arith.constant 0 : index
    %c0_2 = arith.constant 0 : index
    %2 = vector.load %arg3[%c0_1, %c0_2] : memref<1x16xf32, #tpu.memory_space<vmem>>, vector<1x16xf32>
    %3 = vector.broadcast %2 : vector<1x16xf32> to vector<512x16xf32>
    %4 = arith.mulf %1, %3 : vector<512x16xf32>
    %c0_3 = arith.constant 0 : index
    %c0_4 = arith.constant 0 : index
    %5 = vector.load %arg4[%c0_3, %c0_4] : memref<1x16xf32, #tpu.memory_space<vmem>>, vector<1x16xf32>
    %6 = vector.broadcast %5 : vector<1x16xf32> to vector<512x16xf32>
    %7 = arith.addf %4, %6 : vector<512x16xf32>
    %cst = arith.constant 0.000000e+00 : f32
    %8 = vector.broadcast %cst : f32 to vector<512x16xf32>
    %9 = arith.maximumf %7, %8 : vector<512x16xf32>
    %10 = arith.truncf %9 : vector<512x16xf32> to vector<512x16xbf16>
    %c0_5 = arith.constant 0 : index
    %c0_6 = arith.constant 0 : index
    %11 = vector.load %arg5[%c0_5, %c0_6] : memref<16x128xbf16, #tpu.memory_space<vmem>>, vector<16x128xbf16>
    %cst_7 = arith.constant dense<0.000000e+00> : vector<512x128xf32>
    %12 = tpu.matmul %10, %11, %cst_7 {dimension_numbers = #tpu.dot_dimension_numbers<[1], [0], [0], [1], [0, 0, 1, 1], [], []>} : vector<512x16xbf16>, vector<16x128xbf16>, vector<512x128xf32> -> vector<512x128xf32>
    %13 = arith.truncf %12 : vector<512x128xf32> to vector<512x128xbf16>
    %c0_8 = arith.constant 0 : index
    %c0_9 = arith.constant 0 : index
    %14 = vector.load %arg6[%c0_8, %c0_9] : memref<512x128xbf16, #tpu.memory_space<vmem>>, vector<512x128xbf16>
    tpu.vector_store %arg6[%c0_8, %c0_9], %13 {strides = array<i32>} : memref<512x128xbf16, #tpu.memory_space<vmem>>, vector<512x128xbf16>,
    return
  }
  func.func @transform_0(%arg0: i32, %arg1: i32) -> (i32, i32) {
    %c0_i32 = arith.constant 0 : i32
    %c0_i32_0 = arith.constant 0 : i32
    return %arg0, %c0_i32 : i32, i32
  }
  func.func @transform_1(%arg0: i32, %arg1: i32) -> (i32, i32) {
    %c0_i32 = arith.constant 0 : i32
    %c0_i32_0 = arith.constant 0 : i32
    %c0_i32_1 = arith.constant 0 : i32
    return %c0_i32, %c0_i32_0 : i32, i32
  }
  func.func @transform_2(%arg0: i32, %arg1: i32) -> (i32, i32) {
    %c0_i32 = arith.constant 0 : i32
    %c0_i32_0 = arith.constant 0 : i32
    %c0_i32_1 = arith.constant 0 : i32
    return %c0_i32, %c0_i32_0 : i32, i32
  }
  func.func @transform_3(%arg0: i32, %arg1: i32) -> (i32, i32) {
    %c0_i32 = arith.constant 0 : i32
    %c0_i32_0 = arith.constant 0 : i32
    return %c0_i32, %arg1 : i32, i32
  }
  func.func @transform_4(%arg0: i32, %arg1: i32) -> (i32, i32) {
    %c0_i32 = arith.constant 0 : i32
    return %arg0, %arg1 : i32, i32
  }
}

module attributes {stable_mosaic.version = 11 : i64} {
  func.func @_bn_stats_kernel(%arg0: i32, %arg1: memref<64x256xbf16, #tpu.memory_space<vmem>>, %arg2: memref<1x256xf32, #tpu.memory_space<vmem>>, %arg3: memref<1x256xf32, #tpu.memory_space<vmem>>) attributes {dimension_semantics = [#tpu.dimension_semantics<arbitrary>], iteration_bounds = array<i64: 1>, scalar_prefetch = 0 : i64, scratch_operands = 0 : i64, tpu.core_type = #tpu.core_type<tc>, window_params = [{transform_indices = @transform_0, window_bounds = array<i64: 64, 256>}, {pipeline_mode = #tpu.pipeline_mode<synchronous>, transform_indices = @transform_1, window_bounds = array<i64: 1, 256>}, {pipeline_mode = #tpu.pipeline_mode<synchronous>, transform_indices = @transform_2, window_bounds = array<i64: 1, 256>}]} {
    %c0_i32 = arith.constant 0 : i32
    %0 = arith.cmpi eq, %arg0, %c0_i32 : i32
    %1 = arith.extui %0 : i1 to i32
    %c0_i32_0 = arith.constant 0 : i32
    %2 = arith.cmpi ne, %1, %c0_i32_0 : i32
    scf.if %2 {
      %cst_11 = arith.constant 0.000000e+00 : f32
      %16 = vector.broadcast %cst_11 : f32 to vector<1x256xf32>
      %c0_12 = arith.constant 0 : index
      %c0_13 = arith.constant 0 : index
      %17 = vector.load %arg2[%c0_12, %c0_13] : memref<1x256xf32, #tpu.memory_space<vmem>>, vector<1x256xf32>
      tpu.vector_store %arg2[%c0_12, %c0_13], %16 {strides = array<i32>} : memref<1x256xf32, #tpu.memory_space<vmem>>, vector<1x256xf32>,
      %cst_14 = arith.constant 0.000000e+00 : f32
      %18 = vector.broadcast %cst_14 : f32 to vector<1x256xf32>
      %c0_15 = arith.constant 0 : index
      %c0_16 = arith.constant 0 : index
      %19 = vector.load %arg3[%c0_15, %c0_16] : memref<1x256xf32, #tpu.memory_space<vmem>>, vector<1x256xf32>
      tpu.vector_store %arg3[%c0_15, %c0_16], %18 {strides = array<i32>} : memref<1x256xf32, #tpu.memory_space<vmem>>, vector<1x256xf32>,
    } else {
    }
    %c0 = arith.constant 0 : index
    %c0_1 = arith.constant 0 : index
    %3 = vector.load %arg1[%c0, %c0_1] : memref<64x256xbf16, #tpu.memory_space<vmem>>, vector<64x256xbf16>
    %4 = arith.extf %3 : vector<64x256xbf16> to vector<64x256xf32>
    %c0_2 = arith.constant 0 : index
    %c0_3 = arith.constant 0 : index
    %5 = vector.load %arg2[%c0_2, %c0_3] : memref<1x256xf32, #tpu.memory_space<vmem>>, vector<1x256xf32>
    %cst = arith.constant dense<0.000000e+00> : vector<256xf32>
    %6 = vector.multi_reduction <add>, %4, %cst [0] : vector<64x256xf32> to vector<256xf32>
    %7 = vector.shape_cast %6 : vector<256xf32> to vector<1x256xf32>
    %8 = arith.addf %5, %7 : vector<1x256xf32>
    %c0_4 = arith.constant 0 : index
    %c0_5 = arith.constant 0 : index
    %9 = vector.load %arg2[%c0_4, %c0_5] : memref<1x256xf32, #tpu.memory_space<vmem>>, vector<1x256xf32>
    tpu.vector_store %arg2[%c0_4, %c0_5], %8 {strides = array<i32>} : memref<1x256xf32, #tpu.memory_space<vmem>>, vector<1x256xf32>,
    %c0_6 = arith.constant 0 : index
    %c0_7 = arith.constant 0 : index
    %10 = vector.load %arg3[%c0_6, %c0_7] : memref<1x256xf32, #tpu.memory_space<vmem>>, vector<1x256xf32>
    %11 = arith.mulf %4, %4 : vector<64x256xf32>
    %cst_8 = arith.constant dense<0.000000e+00> : vector<256xf32>
    %12 = vector.multi_reduction <add>, %11, %cst_8 [0] : vector<64x256xf32> to vector<256xf32>
    %13 = vector.shape_cast %12 : vector<256xf32> to vector<1x256xf32>
    %14 = arith.addf %10, %13 : vector<1x256xf32>
    %c0_9 = arith.constant 0 : index
    %c0_10 = arith.constant 0 : index
    %15 = vector.load %arg3[%c0_9, %c0_10] : memref<1x256xf32, #tpu.memory_space<vmem>>, vector<1x256xf32>
    tpu.vector_store %arg3[%c0_9, %c0_10], %14 {strides = array<i32>} : memref<1x256xf32, #tpu.memory_space<vmem>>, vector<1x256xf32>,
    return
  }
  func.func @transform_0(%arg0: i32) -> (i32, i32) {
    %c0_i32 = arith.constant 0 : i32
    %c0_i32_0 = arith.constant 0 : i32
    return %arg0, %c0_i32 : i32, i32
  }
  func.func @transform_1(%arg0: i32) -> (i32, i32) {
    %c0_i32 = arith.constant 0 : i32
    %c0_i32_0 = arith.constant 0 : i32
    %c0_i32_1 = arith.constant 0 : i32
    return %c0_i32, %c0_i32_0 : i32, i32
  }
  func.func @transform_2(%arg0: i32) -> (i32, i32) {
    %c0_i32 = arith.constant 0 : i32
    %c0_i32_0 = arith.constant 0 : i32
    %c0_i32_1 = arith.constant 0 : i32
    return %c0_i32, %c0_i32_0 : i32, i32
  }
}

module attributes {stable_mosaic.version = 11 : i64} {
  func.func @_mm_bnrelu_kernel(%arg0: i32, %arg1: i32, %arg2: memref<1024x8xbf16, #tpu.memory_space<vmem>>, %arg3: memref<1x8xf32, #tpu.memory_space<vmem>>, %arg4: memref<1x8xf32, #tpu.memory_space<vmem>>, %arg5: memref<8x48xbf16, #tpu.memory_space<vmem>>, %arg6: memref<1024x48xf32, #tpu.memory_space<vmem>>) attributes {dimension_semantics = [#tpu.dimension_semantics<parallel>, #tpu.dimension_semantics<parallel>], iteration_bounds = array<i64: 2, 1>, scalar_prefetch = 0 : i64, scratch_operands = 0 : i64, tpu.core_type = #tpu.core_type<tc>, window_params = [{transform_indices = @transform_0, window_bounds = array<i64: 1024, 8>}, {pipeline_mode = #tpu.pipeline_mode<synchronous>, transform_indices = @transform_1, window_bounds = array<i64: 1, 8>}, {pipeline_mode = #tpu.pipeline_mode<synchronous>, transform_indices = @transform_2, window_bounds = array<i64: 1, 8>}, {transform_indices = @transform_3, window_bounds = array<i64: 8, 48>}, {transform_indices = @transform_4, window_bounds = array<i64: 1024, 48>}]} {
    %c0 = arith.constant 0 : index
    %c0_0 = arith.constant 0 : index
    %0 = vector.load %arg2[%c0, %c0_0] : memref<1024x8xbf16, #tpu.memory_space<vmem>>, vector<1024x8xbf16>
    %1 = arith.extf %0 : vector<1024x8xbf16> to vector<1024x8xf32>
    %c0_1 = arith.constant 0 : index
    %c0_2 = arith.constant 0 : index
    %2 = vector.load %arg3[%c0_1, %c0_2] : memref<1x8xf32, #tpu.memory_space<vmem>>, vector<1x8xf32>
    %3 = vector.broadcast %2 : vector<1x8xf32> to vector<1024x8xf32>
    %4 = arith.mulf %1, %3 : vector<1024x8xf32>
    %c0_3 = arith.constant 0 : index
    %c0_4 = arith.constant 0 : index
    %5 = vector.load %arg4[%c0_3, %c0_4] : memref<1x8xf32, #tpu.memory_space<vmem>>, vector<1x8xf32>
    %6 = vector.broadcast %5 : vector<1x8xf32> to vector<1024x8xf32>
    %7 = arith.addf %4, %6 : vector<1024x8xf32>
    %cst = arith.constant 0.000000e+00 : f32
    %8 = vector.broadcast %cst : f32 to vector<1024x8xf32>
    %9 = arith.maximumf %7, %8 : vector<1024x8xf32>
    %10 = arith.truncf %9 : vector<1024x8xf32> to vector<1024x8xbf16>
    %c0_5 = arith.constant 0 : index
    %c0_6 = arith.constant 0 : index
    %11 = vector.load %arg5[%c0_5, %c0_6] : memref<8x48xbf16, #tpu.memory_space<vmem>>, vector<8x48xbf16>
    %cst_7 = arith.constant dense<0.000000e+00> : vector<1024x48xf32>
    %12 = tpu.matmul %10, %11, %cst_7 {dimension_numbers = #tpu.dot_dimension_numbers<[1], [0], [0], [1], [0, 0, 1, 1], [], []>} : vector<1024x8xbf16>, vector<8x48xbf16>, vector<1024x48xf32> -> vector<1024x48xf32>
    %c0_8 = arith.constant 0 : index
    %c0_9 = arith.constant 0 : index
    %13 = vector.load %arg6[%c0_8, %c0_9] : memref<1024x48xf32, #tpu.memory_space<vmem>>, vector<1024x48xf32>
    tpu.vector_store %arg6[%c0_8, %c0_9], %12 {strides = array<i32>} : memref<1024x48xf32, #tpu.memory_space<vmem>>, vector<1024x48xf32>,
    return
  }
  func.func @transform_0(%arg0: i32, %arg1: i32) -> (i32, i32) {
    %c0_i32 = arith.constant 0 : i32
    %c0_i32_0 = arith.constant 0 : i32
    return %arg0, %c0_i32 : i32, i32
  }
  func.func @transform_1(%arg0: i32, %arg1: i32) -> (i32, i32) {
    %c0_i32 = arith.constant 0 : i32
    %c0_i32_0 = arith.constant 0 : i32
    %c0_i32_1 = arith.constant 0 : i32
    return %c0_i32, %c0_i32_0 : i32, i32
  }
  func.func @transform_2(%arg0: i32, %arg1: i32) -> (i32, i32) {
    %c0_i32 = arith.constant 0 : i32
    %c0_i32_0 = arith.constant 0 : i32
    %c0_i32_1 = arith.constant 0 : i32
    return %c0_i32, %c0_i32_0 : i32, i32
  }
  func.func @transform_3(%arg0: i32, %arg1: i32) -> (i32, i32) {
    %c0_i32 = arith.constant 0 : i32
    %c0_i32_0 = arith.constant 0 : i32
    return %c0_i32, %arg1 : i32, i32
  }
  func.func @transform_4(%arg0: i32, %arg1: i32) -> (i32, i32) {
    %c0_i32 = arith.constant 0 : i32
    return %arg0, %arg1 : i32, i32
  }
}

module attributes {stable_mosaic.version = 11 : i64} {
  func.func @_bias_tanh_kernel(%arg0: i32, %arg1: memref<128x192xf32, #tpu.memory_space<vmem>>, %arg2: memref<1x192xf32, #tpu.memory_space<vmem>>, %arg3: memref<128x192xf32, #tpu.memory_space<vmem>>) attributes {dimension_semantics = [#tpu.dimension_semantics<parallel>], iteration_bounds = array<i64: 1>, scalar_prefetch = 0 : i64, scratch_operands = 0 : i64, tpu.core_type = #tpu.core_type<tc>, window_params = [{transform_indices = @transform_0, window_bounds = array<i64: 128, 192>}, {pipeline_mode = #tpu.pipeline_mode<synchronous>, transform_indices = @transform_1, window_bounds = array<i64: 1, 192>}, {transform_indices = @transform_2, window_bounds = array<i64: 128, 192>}]} {
    %c0 = arith.constant 0 : index
    %c0_0 = arith.constant 0 : index
    %0 = vector.load %arg1[%c0, %c0_0] : memref<128x192xf32, #tpu.memory_space<vmem>>, vector<128x192xf32>
    %c0_1 = arith.constant 0 : index
    %c0_2 = arith.constant 0 : index
    %1 = vector.load %arg2[%c0_1, %c0_2] : memref<1x192xf32, #tpu.memory_space<vmem>>, vector<1x192xf32>
    %2 = vector.broadcast %1 : vector<1x192xf32> to vector<128x192xf32>
    %3 = arith.addf %0, %2 : vector<128x192xf32>
    %4 = math.tanh %3 : vector<128x192xf32>
    %c0_3 = arith.constant 0 : index
    %c0_4 = arith.constant 0 : index
    %5 = vector.load %arg3[%c0_3, %c0_4] : memref<128x192xf32, #tpu.memory_space<vmem>>, vector<128x192xf32>
    tpu.vector_store %arg3[%c0_3, %c0_4], %4 {strides = array<i32>} : memref<128x192xf32, #tpu.memory_space<vmem>>, vector<128x192xf32>,
    return
  }
  func.func @transform_0(%arg0: i32) -> (i32, i32) {
    %c0_i32 = arith.constant 0 : i32
    %c0_i32_0 = arith.constant 0 : i32
    return %arg0, %c0_i32 : i32, i32
  }
  func.func @transform_1(%arg0: i32) -> (i32, i32) {
    %c0_i32 = arith.constant 0 : i32
    %c0_i32_0 = arith.constant 0 : i32
    %c0_i32_1 = arith.constant 0 : i32
    return %c0_i32, %c0_i32_0 : i32, i32
  }
  func.func @transform_2(%arg0: i32) -> (i32, i32) {
    %c0_i32 = arith.constant 0 : i32
    %c0_i32_0 = arith.constant 0 : i32
    return %arg0, %c0_i32 : i32, i32
  }
}

</mosaic_0001>

<llo_original>
// kernel: a_call__.10
$region0: #{a_call__.10}
  #allocation0 [shape = 'u32[]', space=smem, size = 0x4, offset = 0x4, fixed_abs, tag = 'smem constant byte address 0x4 - core index']
  #allocation1 [shape = 'u32[72,128]{1,0:T(1,128)}', space=vmem, size = 0x9000, scoped, tag = 'internal scratch']
  %s0 = inlined_call_operand.vmem [shape: bf16[2,16], index: 0, kind: input, shape index: {}]
  %s1 = inlined_call_operand.hbm [shape: bf16[16,1024], index: 1, kind: input, shape index: {}]
  %s2 = inlined_call_operand.vmem [shape: bf16[2,1024], index: 2, kind: output, shape index: {}]
  %s3 = sld [smem:[#allocation0]]
  $region45: #{a_call__.10} parent=0
    _
  %s5 = ssub.s32 1, %s3
  %s6 = scalar_select 0, %s5, %s3
  $region1: #{a_call__.10} parent=0
    #allocation2 [shape = 'u8[32768]{0}', space=vmem, size = 0x8000, scoped, tag = 'input window, operand 1']
    #allocation3 [shape = 's32[2]{0}', space=sflag, size = 0x8, scoped, tag = 'scoped memory for a_call__.10']
    %7 = vsyncpa [#allocation3], 0
    %s8 = scalar_lea.sflag [#allocation3], 1
    %9 = vsyncpa %s8, 0
    loop: start=0, step=1, limit=4
    $region2: #{a_call__.10} parent=1 // loop_pre_header
      _
    $region3: #{a_call__.10} parent=1 // loop_header
      %s11 = sphi 0, %s15
      %p12 = scmp.ge.s32.totalorder %s11, 4
      %s18 = sphi 0, %s30
      %s19 = sphi 0, %s26
      %s20 = sphi 0, %s18
      %s21 = sphi 0, %s19
      %s22 = sphi 0, %s20
      %s23 = sphi 0, %s21
      %s33 = sphi 0, %s35
      %s36 = sphi 0, %s33
      %s37 = sphi 0, %s36
      %s53 = sphi 0, %s37
      %s59 = sphi 0, %s61
      %s62 = sphi 0, %s59
      %s63 = sphi 0, %s62
      %s79 = sphi 0, %s63
      %s87 = sphi 0, %s89
      %s90 = sphi 0, %s87
      %s91 = sphi 0, %s90
      %s107 = sphi 0, %s91
    $region4: #{a_call__.10} parent=1 // loop_header_branch
      %14 = sbr.rel (%p12) target = $region8
    $region5: #{a_call__.10} parent=1 // loop_body
      %s16 = ssub.s32 %s11, 1
      %s17 = ssub.s32 %s11, 2
      %s24 = sadd.s32 1, %s19
      %p25 = scmp.ge.s32.totalorder %s24, 2
      %s26 = scalar_select %p25, 0, %s24
      %s27 = sadd.s32 1, %s18
      %s28 = scalar_select %p25, %s27, %s18
      %p29 = scmp.ge.s32.totalorder %s28, 1
      %s30 = scalar_select %p29, 0, %s28
      %s31 = ssub.s32 %s18, %s30
      %p32 = scmp.eq.s32.totalorder %s31, 0
      %s34 = sadd.s32 %s33, 1
      %s35 = scalar_select %p32, %s33, %s34
      %p38 = pneg %p32
      %p39 = scmp.eq.s32.totalorder %s11, 1
      %p40 = por %p38, %p39
      %p41 = scmp.ne.s32.totalorder %s33, %s36
      %p42 = scmp.eq.s32.totalorder %s11, 0
      %p43 = por %p41, %p42
      %p44 = scmp.ne.s32.totalorder %s33, %s36
      %p45 = scmp.eq.s32.totalorder %s16, 1
      %p46 = por %p44, %p45
      %p47 = scmp.ne.s32.totalorder %s36, %s37
      %p48 = scmp.eq.s32.totalorder %s16, 0
      %p49 = por %p47, %p48
      %p50 = scmp.ne.s32.totalorder %s36, %s37
      %p51 = scmp.eq.s32.totalorder %s17, 1
      %p52 = por %p50, %p51
      %p54 = scmp.ne.s32.totalorder %s37, %s53
      %p55 = scmp.eq.s32.totalorder %s17, 0
      %p56 = por %p54, %p55
      %s57 = ssub.s32 %s19, %s26
      %p58 = scmp.eq.s32.totalorder %s57, 0
      %s60 = sadd.s32 %s59, 1
      %s61 = scalar_select %p58, %s59, %s60
      %p64 = pneg %p58
      %p65 = scmp.eq.s32.totalorder %s11, 1
      %p66 = por %p64, %p65
      %p67 = scmp.ne.s32.totalorder %s59, %s62
      %p68 = scmp.eq.s32.totalorder %s11, 0
      %p69 = por %p67, %p68
      %p70 = scmp.ne.s32.totalorder %s59, %s62
      %p71 = scmp.eq.s32.totalorder %s16, 1
      %p72 = por %p70, %p71
      %p73 = scmp.ne.s32.totalorder %s62, %s63
      %p74 = scmp.eq.s32.totalorder %s16, 0
      %p75 = por %p73, %p74
      %p76 = scmp.ne.s32.totalorder %s62, %s63
      %p77 = scmp.eq.s32.totalorder %s17, 1
      %p78 = por %p76, %p77
      %p80 = scmp.ne.s32.totalorder %s63, %s79
      %p81 = scmp.eq.s32.totalorder %s17, 0
      %p82 = por %p80, %p81
      %s83 = ssub.s32 %s18, %s30
      %s84 = ssub.s32 %s19, %s26
      %s85 = sor.u32 %s83, %s84
      %p86 = scmp.eq.s32.totalorder %s85, 0
      %s88 = sadd.s32 %s87, 1
      %s89 = scalar_select %p86, %s87, %s88
      %p92 = pneg %p86
      %p93 = scmp.eq.s32.totalorder %s11, 1
      %p94 = por %p92, %p93
      %p95 = scmp.ne.s32.totalorder %s87, %s90
      %p96 = scmp.eq.s32.totalorder %s11, 0
      %p97 = por %p95, %p96
      %p98 = scmp.ne.s32.totalorder %s87, %s90
      %p99 = scmp.eq.s32.totalorder %s16, 1
      %p100 = por %p98, %p99
      %p101 = scmp.ne.s32.totalorder %s90, %s91
      %p102 = scmp.eq.s32.totalorder %s16, 0
      %p103 = por %p101, %p102
      %p104 = scmp.ne.s32.totalorder %s90, %s91
      %p105 = scmp.eq.s32.totalorder %s17, 1
      %p106 = por %p104, %p105
      %p108 = scmp.ne.s32.totalorder %s91, %s107
      %p109 = scmp.eq.s32.totalorder %s17, 0
      %p110 = por %p108, %p109
      %p111 = scmp.le.s32.totalorder 1, %s11
      %p112 = scmp.lt.s32.totalorder %s11, 3
      %p113 = pnand %p111, %p112
      %p114 = pneg %p113
      // Predicated region
      $region9: #{a_call__.10} parent=5 // pred_check
        _
      $region10: #{a_call__.10} parent=5 // pred_check_branch
        %116 = sbr.rel (%p113) target = $region12
      $region11: #{a_call__.10} parent=5 // pred_region
        %s117 = ssub.s32 %s11, 1
        // Predicated region
        $region13: #{a_call__.10} parent=11 // pred_check
          %p118 = pneg %p49
        $region14: #{a_call__.10} parent=11 // pred_check_branch
          %120 = sbr.rel (%p118) target = $region16
        $region15: #{a_call__.10} parent=11 // pred_region
          %p121 = scmp.lt.s32.totalorder %s20, 0
          %s122 = scalar_select %p121, %s20, 0
          %s123 = scalar_lea.vmem %s0, %s122
        $region16: #{a_call__.10} parent=11 // pred_fallthru
          _
      $region12: #{a_call__.10} parent=5 // pred_fallthru
        _
      %p124 = scmp.lt.s32.totalorder %s11, 2
      // Predicated region
      $region17: #{a_call__.10} parent=5 // pred_check
        %p125 = pneg %p124
      $region18: #{a_call__.10} parent=5 // pred_check_branch
        %127 = sbr.rel (%p125) target = $region20
      $region19: #{a_call__.10} parent=5 // pred_region
        // Predicated region
        $region21: #{a_call__.10} parent=19 // pred_check
          %p128 = pneg %p69
        $region22: #{a_call__.10} parent=19 // pred_check_branch
          %130 = sbr.rel (%p128) target = $region24
        $region23: #{a_call__.10} parent=19 // pred_region
          %s131 = sand.u32 %s59, 1
          %s132 = scalar_lea.sflag [#allocation3], %s131
          %s133 = sand.u32 %s59, 1
          %s134 = smul.addr %s133, 32
          %s135 = scalar_lea.vmem [#allocation2], %s134
          %s136 = smul.u32 4, %s19
          %138 = vsyncadd %s132, 0
          %s139 = smul.addr %s136, 4
          %s140 = scalar_lea.hbm %s1, %s139
          %s141 = sshll.u32 %s140, 4
          %s142 = int_to_ptr.hbm [resolvable:$true] %s141
          %s143 = sshll.u32 %s135, 4
          %s144 = int_to_ptr.vmem [resolvable:$true] %s143
          %149 = dma.hbm_to_vmem [thread:$0]  %s142, 512, %s144, %s132, 512, 256, 16
        $region24: #{a_call__.10} parent=19 // pred_fallthru
          _
      $region20: #{a_call__.10} parent=5 // pred_fallthru
        _
      %p150 = scmp.le.s32.totalorder 1, %s11
      %p151 = scmp.lt.s32.totalorder %s11, 3
      %p152 = pnand %p150, %p151
      %p153 = pneg %p152
      // Predicated region
      $region25: #{a_call__.10} parent=5 // pred_check
        _
      $region26: #{a_call__.10} parent=5 // pred_check_branch
        %155 = sbr.rel (%p152) target = $region28
      $region27: #{a_call__.10} parent=5 // pred_region
        %s156 = ssub.s32 %s11, 1
        %s157 = sand.u32 %s62, 1
        %s158 = scalar_lea.sflag [#allocation3], %s157
        %s159 = sand.u32 %s62, 1
        %s160 = smul.addr %s159, 32
        %s161 = scalar_lea.vmem [#allocation2], %s160
        // Predicated region
        $region29: #{a_call__.10} parent=27 // pred_check
          %p162 = pneg %p75
        $region30: #{a_call__.10} parent=27 // pred_check_branch
          %164 = sbr.rel (%p162) target = $region32
        $region31: #{a_call__.10} parent=27 // pred_region
          %166 = dma.done %s158, 512
        $region32: #{a_call__.10} parent=27 // pred_fallthru
          _
        %p167 = scmp.lt.s32.totalorder %s20, 0
        %s168 = scalar_select %p167, %s20, 0
        %s169 = scalar_lea.vmem %s0, %s168
        %p170 = pneg %p49
        %p171 = pneg %p46
        %s172 = sand.u32 %s62, 1
        %s173 = scalar_lea.sflag [#allocation3], %s172
        %s174 = sand.u32 %s62, 1
        %s175 = smul.addr %s174, 32
        %s176 = scalar_lea.vmem [#allocation2], %s175
        %p177 = pneg %p75
        %p178 = pneg %p72
        %p179 = pneg %p103
        %p180 = pneg %p100
        %s181 = smul.u32 4, %s21
        %p182 = scmp.lt.s32.totalorder %s20, 0
        %s183 = scalar_select %p182, %s20, 0
        %p184 = scmp.lt.s32.totalorder %s181, 7
        %s185 = scalar_select %p184, %s181, 7
        %s186 = smul.addr %s183, 8
        %s187 = sadd.s32 %s185, %s186
        %s188 = scalar_lea.vmem %s2, %s187
        %p189 = scmp.lt.s32.totalorder %s20, 0
        %s190 = scalar_select %p189, %s20, 0
        %s191 = scalar_lea.vmem %s0, %s190
        %s192 = smul.u32 4, %s21
        %s193 = smul.u32 4, %s21
        %p194 = scmp.lt.s32.totalorder %s20, 0
        %s195 = scalar_select %p194, %s20, 0
        %p196 = scmp.lt.s32.totalorder %s193, 7
        %s197 = scalar_select %p196, %s193, 7
        %s198 = smul.addr %s195, 8
        %s199 = sadd.s32 %s197, %s198
        %s200 = scalar_lea.vmem %s2, %s199
        %s201 = smul.u32 4, %s21
        %v203 = vld [vmem:[%s191] sm:$0x1]
        %v204 = vld [vmem:[%s161] sm:$0xff]
        %v205 = vld [vmem:[%s161 + $0x8] sm:$0xff]
        %v206 = vld [vmem:[%s161 + $0x10] sm:$0xff]
        %v207 = vld [vmem:[%s161 + $0x18] sm:$0xff]
        %v212 = vunpack.c.l.b16 %v204
        %v213 = vunpack.c.h.b16 %v204
        %v214 = vunpack.c.l.b16 %v205
        %v215 = vunpack.c.h.b16 %v205
        %v216 = vunpack.c.l.b16 %v206
        %v217 = vunpack.c.h.b16 %v206
        %v218 = vunpack.c.l.b16 %v207
        %v219 = vunpack.c.h.b16 %v207
        %v220 = vpack.c.b16 %v216, %v212
        %v221 = vpack.c.b16 %v217, %v213
        %v222 = vpack.c.b16 %v218, %v214
        %v223 = vpack.c.b16 %v219, %v215
        %vm228 = vcmask 130048
        %v230 = vsel %vm228, %v203, 0
        %232 = vmatpush.bf16.msra.mxu0 0
        %233 = vmatpush.bf16.msra.mxu0 0
        %234 = vmatpush.bf16.msra.mxu0 0
        %235 = vmatpush.bf16.msra.mxu0 0
        %236 = vmatpush.bf16.msra.mxu0 0
        %237 = vmatpush.bf16.msra.mxu0 0
        %238 = vmatpush.bf16.msra.mxu0 0
        %239 = vmatpush.bf16.msra.mxu0 %v220
        %240 = vmatmul.bf16.gmra.mxu0 %v230
        %v241 = vpop.f32.mrf.mxu0
        %v242 = vadd.f32 0.0, %v241
        %v243 = vpop.f32.mrf.mxu0
        %244 = vdwg.mxu0
        %245 = vmatpush.bf16.msra.mxu0 0
        %246 = vmatpush.bf16.msra.mxu0 0
        %247 = vmatpush.bf16.msra.mxu0 0
        %248 = vmatpush.bf16.msra.mxu0 0
        %249 = vmatpush.bf16.msra.mxu0 0
        %250 = vmatpush.bf16.msra.mxu0 0
        %251 = vmatpush.bf16.msra.mxu0 0
        %252 = vmatpush.bf16.msra.mxu0 %v221
        %253 = vmatmul.bf16.gmra.mxu0 %v230
        %v254 = vpop.f32.mrf.mxu0
        %v255 = vadd.f32 0.0, %v254
        %v256 = vpop.f32.mrf.mxu0
        %257 = vdwg.mxu0
        %258 = vmatpush.bf16.msra.mxu0 0
        %259 = vmatpush.bf16.msra.mxu0 0
        %260 = vmatpush.bf16.msra.mxu0 0
        %261 = vmatpush.bf16.msra.mxu0 0
        %262 = vmatpush.bf16.msra.mxu0 0
        %263 = vmatpush.bf16.msra.mxu0 0
        %264 = vmatpush.bf16.msra.mxu0 0
        %265 = vmatpush.bf16.msra.mxu0 %v222
        %266 = vmatmul.bf16.gmra.mxu0 %v230
        %v267 = vpop.f32.mrf.mxu0
        %v268 = vadd.f32 0.0, %v267
        %v269 = vpop.f32.mrf.mxu0
        %270 = vdwg.mxu0
        %271 = vmatpush.bf16.msra.mxu0 0
        %272 = vmatpush.bf16.msra.mxu0 0
        %273 = vmatpush.bf16.msra.mxu0 0
        %274 = vmatpush.bf16.msra.mxu0 0
        %275 = vmatpush.bf16.msra.mxu0 0
        %276 = vmatpush.bf16.msra.mxu0 0
        %277 = vmatpush.bf16.msra.mxu0 0
        %278 = vmatpush.bf16.msra.mxu0 %v223
        %279 = vmatmul.bf16.gmra.mxu0 %v230
        %v280 = vpop.f32.mrf.mxu0
        %v281 = vadd.f32 0.0, %v280
        %v282 = vpop.f32.mrf.mxu0
        %283 = vdwg.mxu0
        %v284 = vpack.c.bf16 %v255, %v242
        %v285 = vpack.c.bf16 %v281, %v268
        %v288 = vrot.slane %v284, 3
        %v289 = vrot.slane %v285, 6
        %v290 = vrot.slane %v285, 1
        %vm291 = vcmask 1040384
        %v294 = vsel %vm291, %v284, %v288
        %vm295 = vcmask 1042434
        %v298 = vsel %vm295, %v289, %v290
        %vm299 = vcmask 1041408
        %v300 = vsel %vm299, %v294, %v298
        %302 = vst [vmem:[%s200] sm:$0xf] %v300
        %s303 = smul.u32 4, %s21
        %p304 = scmp.lt.s32.totalorder %s20, 0
        %s305 = scalar_select %p304, %s20, 0
        %p306 = scmp.lt.s32.totalorder %s303, 7
        %s307 = scalar_select %p306, %s303, 7
        %s308 = smul.addr %s305, 8
        %s309 = sadd.s32 %s307, %s308
        %s310 = scalar_lea.vmem %s2, %s309
        // Predicated region
        $region33: #{a_call__.10} parent=27 // pred_check
          %p311 = pneg %p100
        $region34: #{a_call__.10} parent=27 // pred_check_branch
          %313 = sbr.rel (%p311) target = $region36
        $region35: #{a_call__.10} parent=27 // pred_region
          %s314 = smul.u32 4, %s21
        $region36: #{a_call__.10} parent=27 // pred_fallthru
          _
      $region28: #{a_call__.10} parent=5 // pred_fallthru
        _
      %p315 = scmp.le.s32.totalorder 2, %s11
      // Predicated region
      $region37: #{a_call__.10} parent=5 // pred_check
        %p316 = pneg %p315
      $region38: #{a_call__.10} parent=5 // pred_check_branch
        %318 = sbr.rel (%p316) target = $region40
      $region39: #{a_call__.10} parent=5 // pred_region
        %s319 = ssub.s32 %s11, 2
        // Predicated region
        $region41: #{a_call__.10} parent=39 // pred_check
          %p320 = pneg %p106
        $region42: #{a_call__.10} parent=39 // pred_check_branch
          %322 = sbr.rel (%p320) target = $region44
        $region43: #{a_call__.10} parent=39 // pred_region
          %s323 = smul.u32 4, %s23
          %p324 = scmp.lt.s32.totalorder %s22, 0
          %s325 = scalar_select %p324, %s22, 0
          %p326 = scmp.lt.s32.totalorder %s323, 7
          %s327 = scalar_select %p326, %s323, 7
          %s328 = smul.addr %s325, 8
          %s329 = sadd.s32 %s327, %s328
          %s330 = scalar_lea.vmem %s2, %s329
        $region44: #{a_call__.10} parent=39 // pred_fallthru
          _
      $region40: #{a_call__.10} parent=5 // pred_fallthru
        _
    $region6: #{a_call__.10} parent=1 // loop_footer
      %s15 = sadd.s32 1, %s11
    $region7: #{a_call__.10} parent=1 // loop_footer_branch
      %10 = sbr.rel target = $region3
    $region8: #{a_call__.10} parent=1 // loop_exit
      _
    %331 = vsyncpa [#allocation3], 1
    %s332 = scalar_lea.sflag [#allocation3], 1
    %333 = vsyncpa %s332, 1

// kernel: a_call__.11
$region0: #{a_call__.11}
  #allocation0 [shape = 'u32[]', space=smem, size = 0x4, offset = 0x4, fixed_abs, tag = 'smem constant byte address 0x4 - core index']
  #allocation1 [shape = 'u32[72,128]{1,0:T(1,128)}', space=vmem, size = 0x9000, scoped, tag = 'internal scratch']
  %s0 = inlined_call_operand.vmem [shape: bf16[8,256], index: 0, kind: input, shape index: {}]
  %s1 = inlined_call_operand.vmem [shape: f32[1,256], index: 1, kind: output, shape index: {0}]
  %s2 = inlined_call_operand.vmem [shape: f32[1,256], index: 2, kind: output, shape index: {1}]
  %3 = xla_tuple %s1, %s2
  %s4 = sld [smem:[#allocation0]]
  $region26: #{a_call__.11} parent=0
    _
  %s6 = ssub.s32 1, %s4
  %s7 = scalar_select 0, %s6, %s4
  // Predicated region
  $region2: #{a_call__.11} parent=0 // pred_check
    _
  $region3: #{a_call__.11} parent=0 // pred_check_branch
    %9 = sbr.rel (0) target = $region5
  $region4: #{a_call__.11} parent=0 // pred_region
    _
  $region5: #{a_call__.11} parent=0 // pred_fallthru
    _
  %p10 = scmp.eq.s32.totalorder 0, 0
  // Predicated region
  $region6: #{a_call__.11} parent=0 // pred_check
    %p11 = pneg %p10
  $region7: #{a_call__.11} parent=0 // pred_check_branch
    %13 = sbr.rel (%p11) target = $region9
  $region8: #{a_call__.11} parent=0 // pred_region
    %v14 = vlaneseq
    %vm15 = vcmp.ge.s32.totalorder %v14, 0
    %vm16 = vcmp.lt.s32.totalorder %v14, 256
    %vm17 = vmand %vm15, %vm16
    %18 = vst.msk [vmem:[%s1] sm:$0x3] %vm17, 0.0
    %19 = vst.msk [vmem:[%s2] sm:$0x3] %vm17, 0.0
  $region9: #{a_call__.11} parent=0 // pred_fallthru
    _
  %v20 = vld [vmem:[%s0] sm:$0xff]
  %v21 = vunpack.c.l.bf16 %v20
  %v22 = vunpack.c.h.bf16 %v20
  %v23 = vld [vmem:[%s1] sm:$0x3]
  %v24 = vrot.slane %v21, 4
  %v25 = vadd.f32 %v21, %v24
  %v26 = vrot.slane %v25, 2
  %v27 = vadd.f32 %v25, %v26
  %v28 = vrot.slane %v27, 1
  %v29 = vadd.f32 %v27, %v28
  %v30 = vrot.slane %v22, 4
  %v31 = vadd.f32 %v22, %v30
  %v32 = vrot.slane %v31, 2
  %v33 = vadd.f32 %v31, %v32
  %v34 = vrot.slane %v33, 1
  %v35 = vadd.f32 %v33, %v34
  %v38 = vrot.slane %v35, 7
  %vm39 = vcmask 1040384
  %v40 = vsel %vm39, %v29, %v38
  %v42 = vadd.f32 %v23, %v40
  %v43 = vlaneseq
  %vm44 = vcmp.ge.s32.totalorder %v43, 0
  %vm45 = vcmp.lt.s32.totalorder %v43, 256
  %vm46 = vmand %vm44, %vm45
  %47 = vst.msk [vmem:[%s1] sm:$0x3] %vm46, %v42
  %v48 = vld [vmem:[%s2] sm:$0x3]
  %v49 = vmul.f32 %v21, %v21
  %v50 = vmul.f32 %v22, %v22
  %v51 = vrot.slane %v49, 4
  %v52 = vadd.f32 %v49, %v51
  %v53 = vrot.slane %v52, 2
  %v54 = vadd.f32 %v52, %v53
  %v55 = vrot.slane %v54, 1
  %v56 = vadd.f32 %v54, %v55
  %v57 = vrot.slane %v50, 4
  %v58 = vadd.f32 %v50, %v57
  %v59 = vrot.slane %v58, 2
  %v60 = vadd.f32 %v58, %v59
  %v61 = vrot.slane %v60, 1
  %v62 = vadd.f32 %v60, %v61
  %v65 = vrot.slane %v62, 7
  %v66 = vsel %vm39, %v56, %v65
  %v68 = vadd.f32 %v48, %v66
  %69 = vst.msk [vmem:[%s2] sm:$0x3] %vm46, %v68
  // Predicated region
  $region10: #{a_call__.11} parent=0 // pred_check
    _
  $region11: #{a_call__.11} parent=0 // pred_check_branch
    %71 = sbr.rel (0) target = $region13
  $region12: #{a_call__.11} parent=0 // pred_region
    _
  $region13: #{a_call__.11} parent=0 // pred_fallthru
    _
  // Predicated region
  $region14: #{a_call__.11} parent=0 // pred_check
    _
  $region15: #{a_call__.11} parent=0 // pred_check_branch
    %73 = sbr.rel (0) target = $region17
  $region16: #{a_call__.11} parent=0 // pred_region
    _
  $region17: #{a_call__.11} parent=0 // pred_fallthru
    _
  // Predicated region
  $region18: #{a_call__.11} parent=0 // pred_check
    _
  $region19: #{a_call__.11} parent=0 // pred_check_branch
    %75 = sbr.rel (0) target = $region21
  $region20: #{a_call__.11} parent=0 // pred_region
    _
  $region21: #{a_call__.11} parent=0 // pred_fallthru
    _
  // Predicated region
  $region22: #{a_call__.11} parent=0 // pred_check
    _
  $region23: #{a_call__.11} parent=0 // pred_check_branch
    %77 = sbr.rel (0) target = $region25
  $region24: #{a_call__.11} parent=0 // pred_region
    _
  $region25: #{a_call__.11} parent=0 // pred_fallthru
    _

// kernel: a_call__.12
$region0: #{a_call__.12}
  #allocation0 [shape = 'u32[]', space=smem, size = 0x4, offset = 0x4, fixed_abs, tag = 'smem constant byte address 0x4 - core index']
  #allocation1 [shape = 'u32[72,128]{1,0:T(1,128)}', space=vmem, size = 0x9000, scoped, tag = 'internal scratch']
  %s0 = inlined_call_operand.vmem [shape: bf16[32,64], index: 0, kind: input, shape index: {}]
  %s1 = inlined_call_operand.vmem [shape: f32[1,64], index: 1, kind: input, shape index: {}]
  %s2 = inlined_call_operand.vmem [shape: f32[1,64], index: 2, kind: input, shape index: {}]
  %s3 = inlined_call_operand.hbm [shape: bf16[64,512], index: 3, kind: input, shape index: {}]
  %s4 = inlined_call_operand.vmem [shape: bf16[32,512], index: 4, kind: output, shape index: {}]
  %s5 = sld [smem:[#allocation0]]
  $region30: #{a_call__.12} parent=0
    _
  %s7 = ssub.s32 1, %s5
  %s8 = scalar_select 0, %s7, %s5
  $region1: #{a_call__.12} parent=0
    #allocation2 [shape = 'u8[65536]{0}', space=vmem, size = 0x10000, scoped, tag = 'input window, operand 3, single buffered']
    #allocation3 [shape = 's32[1]{0}', space=sflag, size = 0x4, scoped, tag = 'scoped memory for a_call__.12']
    %9 = vsyncpa [#allocation3], 0
    // Predicated region
    $region2: #{a_call__.12} parent=1 // pred_check
      _
    $region3: #{a_call__.12} parent=1 // pred_check_branch
      %11 = sbr.rel (0) target = $region5
    $region4: #{a_call__.12} parent=1 // pred_region
      _
    $region5: #{a_call__.12} parent=1 // pred_fallthru
      _
    // Predicated region
    $region6: #{a_call__.12} parent=1 // pred_check
      _
    $region7: #{a_call__.12} parent=1 // pred_check_branch
      %13 = sbr.rel (0) target = $region9
    $region8: #{a_call__.12} parent=1 // pred_region
      _
    $region9: #{a_call__.12} parent=1 // pred_fallthru
      _
    // Predicated region
    $region10: #{a_call__.12} parent=1 // pred_check
      _
    $region11: #{a_call__.12} parent=1 // pred_check_branch
      %15 = sbr.rel (0) target = $region13
    $region12: #{a_call__.12} parent=1 // pred_region
      _
    $region13: #{a_call__.12} parent=1 // pred_fallthru
      _
    // Predicated region
    $region14: #{a_call__.12} parent=1 // pred_check
      _
    $region15: #{a_call__.12} parent=1 // pred_check_branch
      %17 = sbr.rel (0) target = $region17
    $region16: #{a_call__.12} parent=1 // pred_region
      %19 = vsyncadd [#allocation3], 0
      %s20 = sshll.u32 %s3, 4
      %s21 = int_to_ptr.hbm [resolvable:$true] %s20
      %s22 = sshll.u32 [#allocation2], 4
      %s23 = int_to_ptr.vmem [resolvable:$true] %s22
      %28 = dma.hbm_to_vmem [thread:$0]  %s21, 2048, %s23, [#allocation3], 256, 256, 16
    $region17: #{a_call__.12} parent=1 // pred_fallthru
      _
    // Predicated region
    $region18: #{a_call__.12} parent=1 // pred_check
      _
    $region19: #{a_call__.12} parent=1 // pred_check_branch
      %30 = sbr.rel (0) target = $region21
    $region20: #{a_call__.12} parent=1 // pred_region
      %32 = dma.done [#allocation3], 2048
    $region21: #{a_call__.12} parent=1 // pred_fallthru
      _
    %v34 = vld [vmem:[%s0] sm:$0xf]
    %v35 = vld [vmem:[%s0 + $0x4] sm:$0xf]
    %v36 = vld [vmem:[%s0 + $0x8] sm:$0xf]
    %v37 = vld [vmem:[%s0 + $0xc] sm:$0xf]
    %v38 = vunpack.c.l.bf16 %v34
    %v39 = vunpack.c.l.bf16 %v35
    %v40 = vunpack.c.l.bf16 %v36
    %v41 = vunpack.c.l.bf16 %v37
    %v42 = vld [vmem:[%s1] sm:$0x1]
    %v44 = vperm.slane %v42, 0
    %v46 = vmul.f32 %v38, %v44
    %v47 = vmul.f32 %v39, %v44
    %v48 = vmul.f32 %v40, %v44
    %v49 = vmul.f32 %v41, %v44
    %v50 = vld [vmem:[%s2] sm:$0x1]
    %v52 = vperm.slane %v50, 0
    %v54 = vadd.f32 %v46, %v52
    %v55 = vadd.f32 %v47, %v52
    %v56 = vadd.f32 %v48, %v52
    %v57 = vadd.f32 %v49, %v52
    %v58 = vmax.f32 %v54, 0.0
    %v59 = vmax.f32 %v55, 0.0
    %v60 = vmax.f32 %v56, 0.0
    %v61 = vmax.f32 %v57, 0.0
    %v62 = vpack.c.bf16 %v59, %v58
    %v63 = vpack.c.bf16 %v61, %v60
    %v64 = vld [vmem:[#allocation2] sm:$0xff]
    %v65 = vld [vmem:[#allocation2 + $0x8] sm:$0xff]
    %v66 = vld [vmem:[#allocation2 + $0x10] sm:$0xff]
    %v67 = vld [vmem:[#allocation2 + $0x18] sm:$0xff]
    %v68 = vld [vmem:[#allocation2 + $0x20] sm:$0xff]
    %v69 = vld [vmem:[#allocation2 + $0x28] sm:$0xff]
    %v70 = vld [vmem:[#allocation2 + $0x30] sm:$0xff]
    %v71 = vld [vmem:[#allocation2 + $0x38] sm:$0xff]
    %v72 = vld [vmem:[#allocation2 + $0x40] sm:$0xff]
    %v73 = vld [vmem:[#allocation2 + $0x48] sm:$0xff]
    %v74 = vld [vmem:[#allocation2 + $0x50] sm:$0xff]
    %v75 = vld [vmem:[#allocation2 + $0x58] sm:$0xff]
    %v76 = vld [vmem:[#allocation2 + $0x60] sm:$0xff]
    %v77 = vld [vmem:[#allocation2 + $0x68] sm:$0xff]
    %v78 = vld [vmem:[#allocation2 + $0x70] sm:$0xff]
    %v79 = vld [vmem:[#allocation2 + $0x78] sm:$0xff]
    %v96 = vunpack.c.l.b16 %v64
    %v97 = vunpack.c.h.b16 %v64
    %v98 = vunpack.c.l.b16 %v65
    %v99 = vunpack.c.h.b16 %v65
    %v100 = vunpack.c.l.b16 %v66
    %v101 = vunpack.c.h.b16 %v66
    %v102 = vunpack.c.l.b16 %v67
    %v103 = vunpack.c.h.b16 %v67
    %v104 = vunpack.c.l.b16 %v68
    %v105 = vunpack.c.h.b16 %v68
    %v106 = vunpack.c.l.b16 %v69
    %v107 = vunpack.c.h.b16 %v69
    %v108 = vunpack.c.l.b16 %v70
    %v109 = vunpack.c.h.b16 %v70
    %v110 = vunpack.c.l.b16 %v71
    %v111 = vunpack.c.h.b16 %v71
    %v112 = vunpack.c.l.b16 %v72
    %v113 = vunpack.c.h.b16 %v72
    %v114 = vunpack.c.l.b16 %v73
    %v115 = vunpack.c.h.b16 %v73
    %v116 = vunpack.c.l.b16 %v74
    %v117 = vunpack.c.h.b16 %v74
    %v118 = vunpack.c.l.b16 %v75
    %v119 = vunpack.c.h.b16 %v75
    %v120 = vunpack.c.l.b16 %v76
    %v121 = vunpack.c.h.b16 %v76
    %v122 = vunpack.c.l.b16 %v77
    %v123 = vunpack.c.h.b16 %v77
    %v124 = vunpack.c.l.b16 %v78
    %v125 = vunpack.c.h.b16 %v78
    %v126 = vunpack.c.l.b16 %v79
    %v127 = vunpack.c.h.b16 %v79
    %v128 = vpack.c.b16 %v100, %v96
    %v129 = vpack.c.b16 %v101, %v97
    %v130 = vpack.c.b16 %v102, %v98
    %v131 = vpack.c.b16 %v103, %v99
    %v132 = vpack.c.b16 %v108, %v104
    %v133 = vpack.c.b16 %v109, %v105
    %v134 = vpack.c.b16 %v110, %v106
    %v135 = vpack.c.b16 %v111, %v107
    %v136 = vpack.c.b16 %v116, %v112
    %v137 = vpack.c.b16 %v117, %v113
    %v138 = vpack.c.b16 %v118, %v114
    %v139 = vpack.c.b16 %v119, %v115
    %v140 = vpack.c.b16 %v124, %v120
    %v141 = vpack.c.b16 %v125, %v121
    %v142 = vpack.c.b16 %v126, %v122
    %v143 = vpack.c.b16 %v127, %v123
    %vm160 = vcmask 523264
    %v162 = vsel %vm160, %v62, 0
    %v165 = vsel %vm160, %v63, 0
    %167 = vmatpush.bf16.msra.mxu0 0
    %168 = vmatpush.bf16.msra.mxu0 0
    %169 = vmatpush.bf16.msra.mxu0 0
    %170 = vmatpush.bf16.msra.mxu0 0
    %171 = vmatpush.bf16.msra.mxu0 %v140
    %172 = vmatpush.bf16.msra.mxu0 %v136
    %173 = vmatpush.bf16.msra.mxu0 %v132
    %174 = vmatpush.bf16.msra.mxu0 %v128
    %175 = vmatmul.bf16.gmra.mxu0 %v162
    %v176 = vpop.f32.mrf.mxu0
    %v177 = vadd.f32 0.0, %v176
    %v178 = vpop.f32.mrf.mxu0
    %v179 = vadd.f32 0.0, %v178
    %180 = vmatmul.bf16.gmra.mxu0 %v165
    %v181 = vpop.f32.mrf.mxu0
    %v182 = vadd.f32 0.0, %v181
    %v183 = vpop.f32.mrf.mxu0
    %v184 = vadd.f32 0.0, %v183
    %185 = vdwg.mxu0
    %186 = vmatpush.bf16.msra.mxu0 0
    %187 = vmatpush.bf16.msra.mxu0 0
    %188 = vmatpush.bf16.msra.mxu0 0
    %189 = vmatpush.bf16.msra.mxu0 0
    %190 = vmatpush.bf16.msra.mxu0 %v141
    %191 = vmatpush.bf16.msra.mxu0 %v137
    %192 = vmatpush.bf16.msra.mxu0 %v133
    %193 = vmatpush.bf16.msra.mxu0 %v129
    %194 = vmatmul.bf16.gmra.mxu0 %v162
    %v195 = vpop.f32.mrf.mxu0
    %v196 = vadd.f32 0.0, %v195
    %v197 = vpop.f32.mrf.mxu0
    %v198 = vadd.f32 0.0, %v197
    %199 = vmatmul.bf16.gmra.mxu0 %v165
    %v200 = vpop.f32.mrf.mxu0
    %v201 = vadd.f32 0.0, %v200
    %v202 = vpop.f32.mrf.mxu0
    %v203 = vadd.f32 0.0, %v202
    %204 = vdwg.mxu0
    %205 = vmatpush.bf16.msra.mxu0 0
    %206 = vmatpush.bf16.msra.mxu0 0
    %207 = vmatpush.bf16.msra.mxu0 0
    %208 = vmatpush.bf16.msra.mxu0 0
    %209 = vmatpush.bf16.msra.mxu0 %v142
    %210 = vmatpush.bf16.msra.mxu0 %v138
    %211 = vmatpush.bf16.msra.mxu0 %v134
    %212 = vmatpush.bf16.msra.mxu0 %v130
    %213 = vmatmul.bf16.gmra.mxu0 %v162
    %v214 = vpop.f32.mrf.mxu0
    %v215 = vadd.f32 0.0, %v214
    %v216 = vpop.f32.mrf.mxu0
    %v217 = vadd.f32 0.0, %v216
    %218 = vmatmul.bf16.gmra.mxu0 %v165
    %v219 = vpop.f32.mrf.mxu0
    %v220 = vadd.f32 0.0, %v219
    %v221 = vpop.f32.mrf.mxu0
    %v222 = vadd.f32 0.0, %v221
    %223 = vdwg.mxu0
    %224 = vmatpush.bf16.msra.mxu0 0
    %225 = vmatpush.bf16.msra.mxu0 0
    %226 = vmatpush.bf16.msra.mxu0 0
    %227 = vmatpush.bf16.msra.mxu0 0
    %228 = vmatpush.bf16.msra.mxu0 %v143
    %229 = vmatpush.bf16.msra.mxu0 %v139
    %230 = vmatpush.bf16.msra.mxu0 %v135
    %231 = vmatpush.bf16.msra.mxu0 %v131
    %232 = vmatmul.bf16.gmra.mxu0 %v162
    %v233 = vpop.f32.mrf.mxu0
    %v234 = vadd.f32 0.0, %v233
    %v235 = vpop.f32.mrf.mxu0
    %v236 = vadd.f32 0.0, %v235
    %237 = vmatmul.bf16.gmra.mxu0 %v165
    %v238 = vpop.f32.mrf.mxu0
    %v239 = vadd.f32 0.0, %v238
    %v240 = vpop.f32.mrf.mxu0
    %v241 = vadd.f32 0.0, %v240
    %242 = vdwg.mxu0
    %v243 = vpack.c.bf16 %v196, %v177
    %v244 = vpack.c.bf16 %v234, %v215
    %v245 = vpack.c.bf16 %v198, %v179
    %v246 = vpack.c.bf16 %v236, %v217
    %v247 = vpack.c.bf16 %v201, %v182
    %v248 = vpack.c.bf16 %v239, %v220
    %v249 = vpack.c.bf16 %v203, %v184
    %v250 = vpack.c.bf16 %v241, %v222
    %251 = vst [vmem:[%s4] sm:$0xff] %v243
    %252 = vst [vmem:[%s4 + $0x8] sm:$0xff] %v244
    %253 = vst [vmem:[%s4 + $0x10] sm:$0xff] %v245
    %254 = vst [vmem:[%s4 + $0x18] sm:$0xff] %v246
    %255 = vst [vmem:[%s4 + $0x20] sm:$0xff] %v247
    %256 = vst [vmem:[%s4 + $0x28] sm:$0xff] %v248
    %257 = vst [vmem:[%s4 + $0x30] sm:$0xff] %v249
    %258 = vst [vmem:[%s4 + $0x38] sm:$0xff] %v250
    // Predicated region
    $region22: #{a_call__.12} parent=1 // pred_check
      _
    $region23: #{a_call__.12} parent=1 // pred_check_branch
      %260 = sbr.rel (0) target = $region25
    $region24: #{a_call__.12} parent=1 // pred_region
      _
    $region25: #{a_call__.12} parent=1 // pred_fallthru
      _
    // Predicated region
    $region26: #{a_call__.12} parent=1 // pred_check
      _
    $region27: #{a_call__.12} parent=1 // pred_check_branch
      %262 = sbr.rel (0) target = $region29
    $region28: #{a_call__.12} parent=1 // pred_region
      _
    $region29: #{a_call__.12} parent=1 // pred_fallthru
      _
    %263 = vsyncpa [#allocation3], 1

// kernel: a_call__.13
$region0: #{a_call__.13}
  #allocation0 [shape = 'u32[]', space=smem, size = 0x4, offset = 0x4, fixed_abs, tag = 'smem constant byte address 0x4 - core index']
  #allocation1 [shape = 'u32[72,128]{1,0:T(1,128)}', space=vmem, size = 0x9000, scoped, tag = 'internal scratch']
  %s0 = inlined_call_operand.vmem [shape: bf16[16,256], index: 0, kind: input, shape index: {}]
  %s1 = inlined_call_operand.vmem [shape: f32[1,256], index: 1, kind: output, shape index: {0}]
  %s2 = inlined_call_operand.vmem [shape: f32[1,256], index: 2, kind: output, shape index: {1}]
  %3 = xla_tuple %s1, %s2
  %s4 = sld [smem:[#allocation0]]
  $region26: #{a_call__.13} parent=0
    _
  %s6 = ssub.s32 1, %s4
  %s7 = scalar_select 0, %s6, %s4
  // Predicated region
  $region2: #{a_call__.13} parent=0 // pred_check
    _
  $region3: #{a_call__.13} parent=0 // pred_check_branch
    %9 = sbr.rel (0) target = $region5
  $region4: #{a_call__.13} parent=0 // pred_region
    _
  $region5: #{a_call__.13} parent=0 // pred_fallthru
    _
  %p10 = scmp.eq.s32.totalorder 0, 0
  // Predicated region
  $region6: #{a_call__.13} parent=0 // pred_check
    %p11 = pneg %p10
  $region7: #{a_call__.13} parent=0 // pred_check_branch
    %13 = sbr.rel (%p11) target = $region9
  $region8: #{a_call__.13} parent=0 // pred_region
    %v14 = vlaneseq
    %vm15 = vcmp.ge.s32.totalorder %v14, 0
    %vm16 = vcmp.lt.s32.totalorder %v14, 256
    %vm17 = vmand %vm15, %vm16
    %18 = vst.msk [vmem:[%s1] sm:$0x3] %vm17, 0.0
    %19 = vst.msk [vmem:[%s2] sm:$0x3] %vm17, 0.0
  $region9: #{a_call__.13} parent=0 // pred_fallthru
    _
  %v20 = vld [vmem:[%s0] sm:$0xff]
  %v21 = vld [vmem:[%s0 + $0x8] sm:$0xff]
  %v22 = vunpack.c.l.bf16 %v20
  %v23 = vunpack.c.h.bf16 %v20
  %v24 = vunpack.c.l.bf16 %v21
  %v25 = vunpack.c.h.bf16 %v21
  %v26 = vld [vmem:[%s1] sm:$0x3]
  %v27 = vadd.f32 %v22, %v24
  %v28 = vrot.slane %v27, 4
  %v29 = vadd.f32 %v27, %v28
  %v30 = vrot.slane %v29, 2
  %v31 = vadd.f32 %v29, %v30
  %v32 = vrot.slane %v31, 1
  %v33 = vadd.f32 %v31, %v32
  %v34 = vadd.f32 %v23, %v25
  %v35 = vrot.slane %v34, 4
  %v36 = vadd.f32 %v34, %v35
  %v37 = vrot.slane %v36, 2
  %v38 = vadd.f32 %v36, %v37
  %v39 = vrot.slane %v38, 1
  %v40 = vadd.f32 %v38, %v39
  %v43 = vrot.slane %v40, 7
  %vm44 = vcmask 1040384
  %v45 = vsel %vm44, %v33, %v43
  %v47 = vadd.f32 %v26, %v45
  %v48 = vlaneseq
  %vm49 = vcmp.ge.s32.totalorder %v48, 0
  %vm50 = vcmp.lt.s32.totalorder %v48, 256
  %vm51 = vmand %vm49, %vm50
  %52 = vst.msk [vmem:[%s1] sm:$0x3] %vm51, %v47
  %v53 = vld [vmem:[%s2] sm:$0x3]
  %v54 = vmul.f32 %v22, %v22
  %v55 = vmul.f32 %v23, %v23
  %v56 = vmul.f32 %v24, %v24
  %v57 = vmul.f32 %v25, %v25
  %v58 = vadd.f32 %v54, %v56
  %v59 = vrot.slane %v58, 4
  %v60 = vadd.f32 %v58, %v59
  %v61 = vrot.slane %v60, 2
  %v62 = vadd.f32 %v60, %v61
  %v63 = vrot.slane %v62, 1
  %v64 = vadd.f32 %v62, %v63
  %v65 = vadd.f32 %v55, %v57
  %v66 = vrot.slane %v65, 4
  %v67 = vadd.f32 %v65, %v66
  %v68 = vrot.slane %v67, 2
  %v69 = vadd.f32 %v67, %v68
  %v70 = vrot.slane %v69, 1
  %v71 = vadd.f32 %v69, %v70
  %v74 = vrot.slane %v71, 7
  %v75 = vsel %vm44, %v64, %v74
  %v77 = vadd.f32 %v53, %v75
  %78 = vst.msk [vmem:[%s2] sm:$0x3] %vm51, %v77
  // Predicated region
  $region10: #{a_call__.13} parent=0 // pred_check
    _
  $region11: #{a_call__.13} parent=0 // pred_check_branch
    %80 = sbr.rel (0) target = $region13
  $region12: #{a_call__.13} parent=0 // pred_region
    _
  $region13: #{a_call__.13} parent=0 // pred_fallthru
    _
  // Predicated region
  $region14: #{a_call__.13} parent=0 // pred_check
    _
  $region15: #{a_call__.13} parent=0 // pred_check_branch
    %82 = sbr.rel (0) target = $region17
  $region16: #{a_call__.13} parent=0 // pred_region
    _
  $region17: #{a_call__.13} parent=0 // pred_fallthru
    _
  // Predicated region
  $region18: #{a_call__.13} parent=0 // pred_check
    _
  $region19: #{a_call__.13} parent=0 // pred_check_branch
    %84 = sbr.rel (0) target = $region21
  $region20: #{a_call__.13} parent=0 // pred_region
    _
  $region21: #{a_call__.13} parent=0 // pred_fallthru
    _
  // Predicated region
  $region22: #{a_call__.13} parent=0 // pred_check
    _
  $region23: #{a_call__.13} parent=0 // pred_check_branch
    %86 = sbr.rel (0) target = $region25
  $region24: #{a_call__.13} parent=0 // pred_region
    _
  $region25: #{a_call__.13} parent=0 // pred_fallthru
    _

// kernel: a_call__.14
$region0: #{a_call__.14}
  #allocation0 [shape = 'u32[]', space=smem, size = 0x4, offset = 0x4, fixed_abs, tag = 'smem constant byte address 0x4 - core index']
  #allocation1 [shape = 'u32[72,128]{1,0:T(1,128)}', space=vmem, size = 0x9000, scoped, tag = 'internal scratch']
  %s0 = inlined_call_operand.vmem [shape: bf16[128,32], index: 0, kind: input, shape index: {}]
  %s1 = inlined_call_operand.vmem [shape: f32[1,32], index: 1, kind: input, shape index: {}]
  %s2 = inlined_call_operand.vmem [shape: f32[1,32], index: 2, kind: input, shape index: {}]
  %s3 = inlined_call_operand.vmem [shape: bf16[32,256], index: 3, kind: input, shape index: {}]
  %s4 = inlined_call_operand.vmem [shape: bf16[128,256], index: 4, kind: output, shape index: {}]
  %s5 = sld [smem:[#allocation0]]
  $region26: #{a_call__.14} parent=0
    _
  %s7 = ssub.s32 1, %s5
  %s8 = scalar_select 0, %s7, %s5
  // Predicated region
  $region2: #{a_call__.14} parent=0 // pred_check
    _
  $region3: #{a_call__.14} parent=0 // pred_check_branch
    %10 = sbr.rel (0) target = $region5
  $region4: #{a_call__.14} parent=0 // pred_region
    _
  $region5: #{a_call__.14} parent=0 // pred_fallthru
    _
  // Predicated region
  $region6: #{a_call__.14} parent=0 // pred_check
    _
  $region7: #{a_call__.14} parent=0 // pred_check_branch
    %12 = sbr.rel (0) target = $region9
  $region8: #{a_call__.14} parent=0 // pred_region
    _
  $region9: #{a_call__.14} parent=0 // pred_fallthru
    _
  // Predicated region
  $region10: #{a_call__.14} parent=0 // pred_check
    _
  $region11: #{a_call__.14} parent=0 // pred_check_branch
    %14 = sbr.rel (0) target = $region13
  $region12: #{a_call__.14} parent=0 // pred_region
    _
  $region13: #{a_call__.14} parent=0 // pred_fallthru
    _
  // Predicated region
  $region14: #{a_call__.14} parent=0 // pred_check
    _
  $region15: #{a_call__.14} parent=0 // pred_check_branch
    %16 = sbr.rel (0) target = $region17
  $region16: #{a_call__.14} parent=0 // pred_region
    _
  $region17: #{a_call__.14} parent=0 // pred_fallthru
    _
  %v18 = vld [vmem:[%s0] sm:$0xf]
  %v19 = vld [vmem:[%s0 + $0x4] sm:$0xf]
  %v20 = vld [vmem:[%s0 + $0x8] sm:$0xf]
  %v21 = vld [vmem:[%s0 + $0xc] sm:$0xf]
  %v22 = vld [vmem:[%s0 + $0x10] sm:$0xf]
  %v23 = vld [vmem:[%s0 + $0x14] sm:$0xf]
  %v24 = vld [vmem:[%s0 + $0x18] sm:$0xf]
  %v25 = vld [vmem:[%s0 + $0x1c] sm:$0xf]
  %v26 = vld [vmem:[%s0 + $0x20] sm:$0xf]
  %v27 = vld [vmem:[%s0 + $0x24] sm:$0xf]
  %v28 = vld [vmem:[%s0 + $0x28] sm:$0xf]
  %v29 = vld [vmem:[%s0 + $0x2c] sm:$0xf]
  %v30 = vld [vmem:[%s0 + $0x30] sm:$0xf]
  %v31 = vld [vmem:[%s0 + $0x34] sm:$0xf]
  %v32 = vld [vmem:[%s0 + $0x38] sm:$0xf]
  %v33 = vld [vmem:[%s0 + $0x3c] sm:$0xf]
  %v34 = vunpack.c.l.bf16 %v18
  %v35 = vunpack.c.l.bf16 %v19
  %v36 = vunpack.c.l.bf16 %v20
  %v37 = vunpack.c.l.bf16 %v21
  %v38 = vunpack.c.l.bf16 %v22
  %v39 = vunpack.c.l.bf16 %v23
  %v40 = vunpack.c.l.bf16 %v24
  %v41 = vunpack.c.l.bf16 %v25
  %v42 = vunpack.c.l.bf16 %v26
  %v43 = vunpack.c.l.bf16 %v27
  %v44 = vunpack.c.l.bf16 %v28
  %v45 = vunpack.c.l.bf16 %v29
  %v46 = vunpack.c.l.bf16 %v30
  %v47 = vunpack.c.l.bf16 %v31
  %v48 = vunpack.c.l.bf16 %v32
  %v49 = vunpack.c.l.bf16 %v33
  %v50 = vld [vmem:[%s1] sm:$0x1]
  %v52 = vperm.slane %v50, 0
  %v54 = vmul.f32 %v34, %v52
  %v55 = vmul.f32 %v35, %v52
  %v56 = vmul.f32 %v36, %v52
  %v57 = vmul.f32 %v37, %v52
  %v58 = vmul.f32 %v38, %v52
  %v59 = vmul.f32 %v39, %v52
  %v60 = vmul.f32 %v40, %v52
  %v61 = vmul.f32 %v41, %v52
  %v62 = vmul.f32 %v42, %v52
  %v63 = vmul.f32 %v43, %v52
  %v64 = vmul.f32 %v44, %v52
  %v65 = vmul.f32 %v45, %v52
  %v66 = vmul.f32 %v46, %v52
  %v67 = vmul.f32 %v47, %v52
  %v68 = vmul.f32 %v48, %v52
  %v69 = vmul.f32 %v49, %v52
  %v70 = vld [vmem:[%s2] sm:$0x1]
  %v72 = vperm.slane %v70, 0
  %v74 = vadd.f32 %v54, %v72
  %v75 = vadd.f32 %v55, %v72
  %v76 = vadd.f32 %v56, %v72
  %v77 = vadd.f32 %v57, %v72
  %v78 = vadd.f32 %v58, %v72
  %v79 = vadd.f32 %v59, %v72
  %v80 = vadd.f32 %v60, %v72
  %v81 = vadd.f32 %v61, %v72
  %v82 = vadd.f32 %v62, %v72
  %v83 = vadd.f32 %v63, %v72
  %v84 = vadd.f32 %v64, %v72
  %v85 = vadd.f32 %v65, %v72
  %v86 = vadd.f32 %v66, %v72
  %v87 = vadd.f32 %v67, %v72
  %v88 = vadd.f32 %v68, %v72
  %v89 = vadd.f32 %v69, %v72
  %v90 = vmax.f32 %v74, 0.0
  %v91 = vmax.f32 %v75, 0.0
  %v92 = vmax.f32 %v76, 0.0
  %v93 = vmax.f32 %v77, 0.0
  %v94 = vmax.f32 %v78, 0.0
  %v95 = vmax.f32 %v79, 0.0
  %v96 = vmax.f32 %v80, 0.0
  %v97 = vmax.f32 %v81, 0.0
  %v98 = vmax.f32 %v82, 0.0
  %v99 = vmax.f32 %v83, 0.0
  %v100 = vmax.f32 %v84, 0.0
  %v101 = vmax.f32 %v85, 0.0
  %v102 = vmax.f32 %v86, 0.0
  %v103 = vmax.f32 %v87, 0.0
  %v104 = vmax.f32 %v88, 0.0
  %v105 = vmax.f32 %v89, 0.0
  %v106 = vpack.c.bf16 %v91, %v90
  %v107 = vpack.c.bf16 %v93, %v92
  %v108 = vpack.c.bf16 %v95, %v94
  %v109 = vpack.c.bf16 %v97, %v96
  %v110 = vpack.c.bf16 %v99, %v98
  %v111 = vpack.c.bf16 %v101, %v100
  %v112 = vpack.c.bf16 %v103, %v102
  %v113 = vpack.c.bf16 %v105, %v104
  %v114 = vld [vmem:[%s3] sm:$0xff]
  %v115 = vld [vmem:[%s3 + $0x8] sm:$0xff]
  %v116 = vld [vmem:[%s3 + $0x10] sm:$0xff]
  %v117 = vld [vmem:[%s3 + $0x18] sm:$0xff]
  %v122 = vunpack.c.l.b16 %v114
  %v123 = vunpack.c.h.b16 %v114
  %v124 = vunpack.c.l.b16 %v115
  %v125 = vunpack.c.h.b16 %v115
  %v126 = vunpack.c.l.b16 %v116
  %v127 = vunpack.c.h.b16 %v116
  %v128 = vunpack.c.l.b16 %v117
  %v129 = vunpack.c.h.b16 %v117
  %v130 = vpack.c.b16 %v124, %v122
  %v131 = vpack.c.b16 %v125, %v123
  %v132 = vpack.c.b16 %v128, %v126
  %v133 = vpack.c.b16 %v129, %v127
  %vm138 = vcmask 261120
  %v140 = vsel %vm138, %v106, 0
  %v143 = vsel %vm138, %v107, 0
  %v146 = vsel %vm138, %v108, 0
  %v149 = vsel %vm138, %v109, 0
  %v152 = vsel %vm138, %v110, 0
  %v155 = vsel %vm138, %v111, 0
  %v158 = vsel %vm138, %v112, 0
  %v161 = vsel %vm138, %v113, 0
  %163 = vmatpush.bf16.msra.mxu0 0
  %164 = vmatpush.bf16.msra.mxu0 0
  %165 = vmatpush.bf16.msra.mxu0 0
  %166 = vmatpush.bf16.msra.mxu0 0
  %167 = vmatpush.bf16.msra.mxu0 0
  %168 = vmatpush.bf16.msra.mxu0 0
  %169 = vmatpush.bf16.msra.mxu0 %v132
  %170 = vmatpush.bf16.msra.mxu0 %v130
  %171 = vmatmul.bf16.gmra.mxu0 %v140
  %v172 = vpop.f32.mrf.mxu0
  %v173 = vadd.f32 0.0, %v172
  %v174 = vpop.f32.mrf.mxu0
  %v175 = vadd.f32 0.0, %v174
  %176 = vmatmul.bf16.gmra.mxu0 %v143
  %v177 = vpop.f32.mrf.mxu0
  %v178 = vadd.f32 0.0, %v177
  %v179 = vpop.f32.mrf.mxu0
  %v180 = vadd.f32 0.0, %v179
  %181 = vmatmul.bf16.gmra.mxu0 %v146
  %v182 = vpop.f32.mrf.mxu0
  %v183 = vadd.f32 0.0, %v182
  %v184 = vpop.f32.mrf.mxu0
  %v185 = vadd.f32 0.0, %v184
  %186 = vmatmul.bf16.gmra.mxu0 %v149
  %v187 = vpop.f32.mrf.mxu0
  %v188 = vadd.f32 0.0, %v187
  %v189 = vpop.f32.mrf.mxu0
  %v190 = vadd.f32 0.0, %v189
  %191 = vmatmul.bf16.gmra.mxu0 %v152
  %v192 = vpop.f32.mrf.mxu0
  %v193 = vadd.f32 0.0, %v192
  %v194 = vpop.f32.mrf.mxu0
  %v195 = vadd.f32 0.0, %v194
  %196 = vmatmul.bf16.gmra.mxu0 %v155
  %v197 = vpop.f32.mrf.mxu0
  %v198 = vadd.f32 0.0, %v197
  %v199 = vpop.f32.mrf.mxu0
  %v200 = vadd.f32 0.0, %v199
  %201 = vmatmul.bf16.gmra.mxu0 %v158
  %v202 = vpop.f32.mrf.mxu0
  %v203 = vadd.f32 0.0, %v202
  %v204 = vpop.f32.mrf.mxu0
  %v205 = vadd.f32 0.0, %v204
  %206 = vmatmul.bf16.gmra.mxu0 %v161
  %v207 = vpop.f32.mrf.mxu0
  %v208 = vadd.f32 0.0, %v207
  %v209 = vpop.f32.mrf.mxu0
  %v210 = vadd.f32 0.0, %v209
  %211 = vdwg.mxu0
  %212 = vmatpush.bf16.msra.mxu0 0
  %213 = vmatpush.bf16.msra.mxu0 0
  %214 = vmatpush.bf16.msra.mxu0 0
  %215 = vmatpush.bf16.msra.mxu0 0
  %216 = vmatpush.bf16.msra.mxu0 0
  %217 = vmatpush.bf16.msra.mxu0 0
  %218 = vmatpush.bf16.msra.mxu0 %v133
  %219 = vmatpush.bf16.msra.mxu0 %v131
  %220 = vmatmul.bf16.gmra.mxu0 %v140
  %v221 = vpop.f32.mrf.mxu0
  %v222 = vadd.f32 0.0, %v221
  %v223 = vpop.f32.mrf.mxu0
  %v224 = vadd.f32 0.0, %v223
  %225 = vmatmul.bf16.gmra.mxu0 %v143
  %v226 = vpop.f32.mrf.mxu0
  %v227 = vadd.f32 0.0, %v226
  %v228 = vpop.f32.mrf.mxu0
  %v229 = vadd.f32 0.0, %v228
  %230 = vmatmul.bf16.gmra.mxu0 %v146
  %v231 = vpop.f32.mrf.mxu0
  %v232 = vadd.f32 0.0, %v231
  %v233 = vpop.f32.mrf.mxu0
  %v234 = vadd.f32 0.0, %v233
  %235 = vmatmul.bf16.gmra.mxu0 %v149
  %v236 = vpop.f32.mrf.mxu0
  %v237 = vadd.f32 0.0, %v236
  %v238 = vpop.f32.mrf.mxu0
  %v239 = vadd.f32 0.0, %v238
  %240 = vmatmul.bf16.gmra.mxu0 %v152
  %v241 = vpop.f32.mrf.mxu0
  %v242 = vadd.f32 0.0, %v241
  %v243 = vpop.f32.mrf.mxu0
  %v244 = vadd.f32 0.0, %v243
  %245 = vmatmul.bf16.gmra.mxu0 %v155
  %v246 = vpop.f32.mrf.mxu0
  %v247 = vadd.f32 0.0, %v246
  %v248 = vpop.f32.mrf.mxu0
  %v249 = vadd.f32 0.0, %v248
  %250 = vmatmul.bf16.gmra.mxu0 %v158
  %v251 = vpop.f32.mrf.mxu0
  %v252 = vadd.f32 0.0, %v251
  %v253 = vpop.f32.mrf.mxu0
  %v254 = vadd.f32 0.0, %v253
  %255 = vmatmul.bf16.gmra.mxu0 %v161
  %v256 = vpop.f32.mrf.mxu0
  %v257 = vadd.f32 0.0, %v256
  %v258 = vpop.f32.mrf.mxu0
  %v259 = vadd.f32 0.0, %v258
  %260 = vdwg.mxu0
  %v261 = vpack.c.bf16 %v222, %v173
  %v262 = vpack.c.bf16 %v224, %v175
  %v263 = vpack.c.bf16 %v227, %v178
  %v264 = vpack.c.bf16 %v229, %v180
  %v265 = vpack.c.bf16 %v232, %v183
  %v266 = vpack.c.bf16 %v234, %v185
  %v267 = vpack.c.bf16 %v237, %v188
  %v268 = vpack.c.bf16 %v239, %v190
  %v269 = vpack.c.bf16 %v242, %v193
  %v270 = vpack.c.bf16 %v244, %v195
  %v271 = vpack.c.bf16 %v247, %v198
  %v272 = vpack.c.bf16 %v249, %v200
  %v273 = vpack.c.bf16 %v252, %v203
  %v274 = vpack.c.bf16 %v254, %v205
  %v275 = vpack.c.bf16 %v257, %v208
  %v276 = vpack.c.bf16 %v259, %v210
  %277 = vst [vmem:[%s4] sm:$0xff] %v261
  %278 = vst [vmem:[%s4 + $0x8] sm:$0xff] %v262
  %279 = vst [vmem:[%s4 + $0x10] sm:$0xff] %v263
  %280 = vst [vmem:[%s4 + $0x18] sm:$0xff] %v264
  %281 = vst [vmem:[%s4 + $0x20] sm:$0xff] %v265
  %282 = vst [vmem:[%s4 + $0x28] sm:$0xff] %v266
  %283 = vst [vmem:[%s4 + $0x30] sm:$0xff] %v267
  %284 = vst [vmem:[%s4 + $0x38] sm:$0xff] %v268
  %285 = vst [vmem:[%s4 + $0x40] sm:$0xff] %v269
  %286 = vst [vmem:[%s4 + $0x48] sm:$0xff] %v270
  %287 = vst [vmem:[%s4 + $0x50] sm:$0xff] %v271
  %288 = vst [vmem:[%s4 + $0x58] sm:$0xff] %v272
  %289 = vst [vmem:[%s4 + $0x60] sm:$0xff] %v273
  %290 = vst [vmem:[%s4 + $0x68] sm:$0xff] %v274
  %291 = vst [vmem:[%s4 + $0x70] sm:$0xff] %v275
  %292 = vst [vmem:[%s4 + $0x78] sm:$0xff] %v276
  // Predicated region
  $region18: #{a_call__.14} parent=0 // pred_check
    _
  $region19: #{a_call__.14} parent=0 // pred_check_branch
    %294 = sbr.rel (0) target = $region21
  $region20: #{a_call__.14} parent=0 // pred_region
    _
  $region21: #{a_call__.14} parent=0 // pred_fallthru
    _
  // Predicated region
  $region22: #{a_call__.14} parent=0 // pred_check
    _
  $region23: #{a_call__.14} parent=0 // pred_check_branch
    %296 = sbr.rel (0) target = $region25
  $region24: #{a_call__.14} parent=0 // pred_region
    _
  $region25: #{a_call__.14} parent=0 // pred_fallthru
    _

// kernel: a_call__.15
$region0: #{a_call__.15}
  #allocation0 [shape = 'u32[]', space=smem, size = 0x4, offset = 0x4, fixed_abs, tag = 'smem constant byte address 0x4 - core index']
  #allocation1 [shape = 'u32[72,128]{1,0:T(1,128)}', space=vmem, size = 0x9000, scoped, tag = 'internal scratch']
  %s0 = inlined_call_operand.vmem [shape: bf16[32,256], index: 0, kind: input, shape index: {}]
  %s1 = inlined_call_operand.vmem [shape: f32[1,256], index: 1, kind: output, shape index: {0}]
  %s2 = inlined_call_operand.vmem [shape: f32[1,256], index: 2, kind: output, shape index: {1}]
  %3 = xla_tuple %s1, %s2
  %s4 = sld [smem:[#allocation0]]
  $region26: #{a_call__.15} parent=0
    _
  %s6 = ssub.s32 1, %s4
  %s7 = scalar_select 0, %s6, %s4
  // Predicated region
  $region2: #{a_call__.15} parent=0 // pred_check
    _
  $region3: #{a_call__.15} parent=0 // pred_check_branch
    %9 = sbr.rel (0) target = $region5
  $region4: #{a_call__.15} parent=0 // pred_region
    _
  $region5: #{a_call__.15} parent=0 // pred_fallthru
    _
  %p10 = scmp.eq.s32.totalorder 0, 0
  // Predicated region
  $region6: #{a_call__.15} parent=0 // pred_check
    %p11 = pneg %p10
  $region7: #{a_call__.15} parent=0 // pred_check_branch
    %13 = sbr.rel (%p11) target = $region9
  $region8: #{a_call__.15} parent=0 // pred_region
    %v14 = vlaneseq
    %vm15 = vcmp.ge.s32.totalorder %v14, 0
    %vm16 = vcmp.lt.s32.totalorder %v14, 256
    %vm17 = vmand %vm15, %vm16
    %18 = vst.msk [vmem:[%s1] sm:$0x3] %vm17, 0.0
    %19 = vst.msk [vmem:[%s2] sm:$0x3] %vm17, 0.0
  $region9: #{a_call__.15} parent=0 // pred_fallthru
    _
  %v20 = vld [vmem:[%s0] sm:$0xff]
  %v21 = vld [vmem:[%s0 + $0x8] sm:$0xff]
  %v22 = vld [vmem:[%s0 + $0x10] sm:$0xff]
  %v23 = vld [vmem:[%s0 + $0x18] sm:$0xff]
  %v24 = vunpack.c.l.bf16 %v20
  %v25 = vunpack.c.h.bf16 %v20
  %v26 = vunpack.c.l.bf16 %v21
  %v27 = vunpack.c.h.bf16 %v21
  %v28 = vunpack.c.l.bf16 %v22
  %v29 = vunpack.c.h.bf16 %v22
  %v30 = vunpack.c.l.bf16 %v23
  %v31 = vunpack.c.h.bf16 %v23
  %v32 = vld [vmem:[%s1] sm:$0x3]
  %v33 = vadd.f32 %v24, %v26
  %v34 = vadd.f32 %v33, %v28
  %v35 = vadd.f32 %v34, %v30
  %v36 = vrot.slane %v35, 4
  %v37 = vadd.f32 %v35, %v36
  %v38 = vrot.slane %v37, 2
  %v39 = vadd.f32 %v37, %v38
  %v40 = vrot.slane %v39, 1
  %v41 = vadd.f32 %v39, %v40
  %v42 = vadd.f32 %v25, %v27
  %v43 = vadd.f32 %v42, %v29
  %v44 = vadd.f32 %v43, %v31
  %v45 = vrot.slane %v44, 4
  %v46 = vadd.f32 %v44, %v45
  %v47 = vrot.slane %v46, 2
  %v48 = vadd.f32 %v46, %v47
  %v49 = vrot.slane %v48, 1
  %v50 = vadd.f32 %v48, %v49
  %v53 = vrot.slane %v50, 7
  %vm54 = vcmask 1040384
  %v55 = vsel %vm54, %v41, %v53
  %v57 = vadd.f32 %v32, %v55
  %v58 = vlaneseq
  %vm59 = vcmp.ge.s32.totalorder %v58, 0
  %vm60 = vcmp.lt.s32.totalorder %v58, 256
  %vm61 = vmand %vm59, %vm60
  %62 = vst.msk [vmem:[%s1] sm:$0x3] %vm61, %v57
  %v63 = vld [vmem:[%s2] sm:$0x3]
  %v64 = vmul.f32 %v24, %v24
  %v65 = vmul.f32 %v25, %v25
  %v66 = vmul.f32 %v26, %v26
  %v67 = vmul.f32 %v27, %v27
  %v68 = vmul.f32 %v28, %v28
  %v69 = vmul.f32 %v29, %v29
  %v70 = vmul.f32 %v30, %v30
  %v71 = vmul.f32 %v31, %v31
  %v72 = vadd.f32 %v64, %v66
  %v73 = vadd.f32 %v72, %v68
  %v74 = vadd.f32 %v73, %v70
  %v75 = vrot.slane %v74, 4
  %v76 = vadd.f32 %v74, %v75
  %v77 = vrot.slane %v76, 2
  %v78 = vadd.f32 %v76, %v77
  %v79 = vrot.slane %v78, 1
  %v80 = vadd.f32 %v78, %v79
  %v81 = vadd.f32 %v65, %v67
  %v82 = vadd.f32 %v81, %v69
  %v83 = vadd.f32 %v82, %v71
  %v84 = vrot.slane %v83, 4
  %v85 = vadd.f32 %v83, %v84
  %v86 = vrot.slane %v85, 2
  %v87 = vadd.f32 %v85, %v86
  %v88 = vrot.slane %v87, 1
  %v89 = vadd.f32 %v87, %v88
  %v92 = vrot.slane %v89, 7
  %v93 = vsel %vm54, %v80, %v92
  %v95 = vadd.f32 %v63, %v93
  %96 = vst.msk [vmem:[%s2] sm:$0x3] %vm61, %v95
  // Predicated region
  $region10: #{a_call__.15} parent=0 // pred_check
    _
  $region11: #{a_call__.15} parent=0 // pred_check_branch
    %98 = sbr.rel (0) target = $region13
  $region12: #{a_call__.15} parent=0 // pred_region
    _
  $region13: #{a_call__.15} parent=0 // pred_fallthru
    _
  // Predicated region
  $region14: #{a_call__.15} parent=0 // pred_check
    _
  $region15: #{a_call__.15} parent=0 // pred_check_branch
    %100 = sbr.rel (0) target = $region17
  $region16: #{a_call__.15} parent=0 // pred_region
    _
  $region17: #{a_call__.15} parent=0 // pred_fallthru
    _
  // Predicated region
  $region18: #{a_call__.15} parent=0 // pred_check
    _
  $region19: #{a_call__.15} parent=0 // pred_check_branch
    %102 = sbr.rel (0) target = $region21
  $region20: #{a_call__.15} parent=0 // pred_region
    _
  $region21: #{a_call__.15} parent=0 // pred_fallthru
    _
  // Predicated region
  $region22: #{a_call__.15} parent=0 // pred_check
    _
  $region23: #{a_call__.15} parent=0 // pred_check_branch
    %104 = sbr.rel (0) target = $region25
  $region24: #{a_call__.15} parent=0 // pred_region
    _
  $region25: #{a_call__.15} parent=0 // pred_fallthru
    _

// kernel: a_call__.16
$region0: #{a_call__.16}
  #allocation0 [shape = 'u32[]', space=smem, size = 0x4, offset = 0x4, fixed_abs, tag = 'smem constant byte address 0x4 - core index']
  #allocation1 [shape = 'u32[72,128]{1,0:T(1,128)}', space=vmem, size = 0x9000, scoped, tag = 'internal scratch']
  %s0 = inlined_call_operand.vmem [shape: bf16[512,16], index: 0, kind: input, shape index: {}]
  %s1 = inlined_call_operand.vmem [shape: f32[1,16], index: 1, kind: input, shape index: {}]
  %s2 = inlined_call_operand.vmem [shape: f32[1,16], index: 2, kind: input, shape index: {}]
  %s3 = inlined_call_operand.vmem [shape: bf16[16,128], index: 3, kind: input, shape index: {}]
  %s4 = inlined_call_operand.vmem [shape: bf16[512,128], index: 4, kind: output, shape index: {}]
  %s5 = sld [smem:[#allocation0]]
  $region26: #{a_call__.16} parent=0
    _
  %s7 = ssub.s32 1, %s5
  %s8 = scalar_select 0, %s7, %s5
  // Predicated region
  $region2: #{a_call__.16} parent=0 // pred_check
    _
  $region3: #{a_call__.16} parent=0 // pred_check_branch
    %10 = sbr.rel (0) target = $region5
  $region4: #{a_call__.16} parent=0 // pred_region
    _
  $region5: #{a_call__.16} parent=0 // pred_fallthru
    _
  // Predicated region
  $region6: #{a_call__.16} parent=0 // pred_check
    _
  $region7: #{a_call__.16} parent=0 // pred_check_branch
    %12 = sbr.rel (0) target = $region9
  $region8: #{a_call__.16} parent=0 // pred_region
    _
  $region9: #{a_call__.16} parent=0 // pred_fallthru
    _
  // Predicated region
  $region10: #{a_call__.16} parent=0 // pred_check
    _
  $region11: #{a_call__.16} parent=0 // pred_check_branch
    %14 = sbr.rel (0) target = $region13
  $region12: #{a_call__.16} parent=0 // pred_region
    _
  $region13: #{a_call__.16} parent=0 // pred_fallthru
    _
  // Predicated region
  $region14: #{a_call__.16} parent=0 // pred_check
    _
  $region15: #{a_call__.16} parent=0 // pred_check_branch
    %16 = sbr.rel (0) target = $region17
  $region16: #{a_call__.16} parent=0 // pred_region
    _
  $region17: #{a_call__.16} parent=0 // pred_fallthru
    _
  %v18 = vld [vmem:[%s0] sm:$0xf]
  %v19 = vld [vmem:[%s0 + $0x4] sm:$0xf]
  %v20 = vld [vmem:[%s0 + $0x8] sm:$0xf]
  %v21 = vld [vmem:[%s0 + $0xc] sm:$0xf]
  %v22 = vld [vmem:[%s0 + $0x10] sm:$0xf]
  %v23 = vld [vmem:[%s0 + $0x14] sm:$0xf]
  %v24 = vld [vmem:[%s0 + $0x18] sm:$0xf]
  %v25 = vld [vmem:[%s0 + $0x1c] sm:$0xf]
  %v26 = vld [vmem:[%s0 + $0x20] sm:$0xf]
  %v27 = vld [vmem:[%s0 + $0x24] sm:$0xf]
  %v28 = vld [vmem:[%s0 + $0x28] sm:$0xf]
  %v29 = vld [vmem:[%s0 + $0x2c] sm:$0xf]
  %v30 = vld [vmem:[%s0 + $0x30] sm:$0xf]
  %v31 = vld [vmem:[%s0 + $0x34] sm:$0xf]
  %v32 = vld [vmem:[%s0 + $0x38] sm:$0xf]
  %v33 = vld [vmem:[%s0 + $0x3c] sm:$0xf]
  %v34 = vld [vmem:[%s0 + $0x40] sm:$0xf]
  %v35 = vld [vmem:[%s0 + $0x44] sm:$0xf]
  %v36 = vld [vmem:[%s0 + $0x48] sm:$0xf]
  %v37 = vld [vmem:[%s0 + $0x4c] sm:$0xf]
  %v38 = vld [vmem:[%s0 + $0x50] sm:$0xf]
  %v39 = vld [vmem:[%s0 + $0x54] sm:$0xf]
  %v40 = vld [vmem:[%s0 + $0x58] sm:$0xf]
  %v41 = vld [vmem:[%s0 + $0x5c] sm:$0xf]
  %v42 = vld [vmem:[%s0 + $0x60] sm:$0xf]
  %v43 = vld [vmem:[%s0 + $0x64] sm:$0xf]
  %v44 = vld [vmem:[%s0 + $0x68] sm:$0xf]
  %v45 = vld [vmem:[%s0 + $0x6c] sm:$0xf]
  %v46 = vld [vmem:[%s0 + $0x70] sm:$0xf]
  %v47 = vld [vmem:[%s0 + $0x74] sm:$0xf]
  %v48 = vld [vmem:[%s0 + $0x78] sm:$0xf]
  %v49 = vld [vmem:[%s0 + $0x7c] sm:$0xf]
  %v50 = vld [vmem:[%s0 + $0x80] sm:$0xf]
  %v51 = vld [vmem:[%s0 + $0x84] sm:$0xf]
  %v52 = vld [vmem:[%s0 + $0x88] sm:$0xf]
  %v53 = vld [vmem:[%s0 + $0x8c] sm:$0xf]
  %v54 = vld [vmem:[%s0 + $0x90] sm:$0xf]
  %v55 = vld [vmem:[%s0 + $0x94] sm:$0xf]
  %v56 = vld [vmem:[%s0 + $0x98] sm:$0xf]
  %v57 = vld [vmem:[%s0 + $0x9c] sm:$0xf]
  %v58 = vld [vmem:[%s0 + $0xa0] sm:$0xf]
  %v59 = vld [vmem:[%s0 + $0xa4] sm:$0xf]
  %v60 = vld [vmem:[%s0 + $0xa8] sm:$0xf]
  %v61 = vld [vmem:[%s0 + $0xac] sm:$0xf]
  %v62 = vld [vmem:[%s0 + $0xb0] sm:$0xf]
  %v63 = vld [vmem:[%s0 + $0xb4] sm:$0xf]
  %v64 = vld [vmem:[%s0 + $0xb8] sm:$0xf]
  %v65 = vld [vmem:[%s0 + $0xbc] sm:$0xf]
  %v66 = vld [vmem:[%s0 + $0xc0] sm:$0xf]
  %v67 = vld [vmem:[%s0 + $0xc4] sm:$0xf]
  %v68 = vld [vmem:[%s0 + $0xc8] sm:$0xf]
  %v69 = vld [vmem:[%s0 + $0xcc] sm:$0xf]
  %v70 = vld [vmem:[%s0 + $0xd0] sm:$0xf]
  %v71 = vld [vmem:[%s0 + $0xd4] sm:$0xf]
  %v72 = vld [vmem:[%s0 + $0xd8] sm:$0xf]
  %v73 = vld [vmem:[%s0 + $0xdc] sm:$0xf]
  %v74 = vld [vmem:[%s0 + $0xe0] sm:$0xf]
  %v75 = vld [vmem:[%s0 + $0xe4] sm:$0xf]
  %v76 = vld [vmem:[%s0 + $0xe8] sm:$0xf]
  %v77 = vld [vmem:[%s0 + $0xec] sm:$0xf]
  %v78 = vld [vmem:[%s0 + $0xf0] sm:$0xf]
  %v79 = vld [vmem:[%s0 + $0xf4] sm:$0xf]
  %v80 = vld [vmem:[%s0 + $0xf8] sm:$0xf]
  %v81 = vld [vmem:[%s0 + $0xfc] sm:$0xf]
  %v82 = vunpack.c.l.bf16 %v18
  %v83 = vunpack.c.l.bf16 %v19
  %v84 = vunpack.c.l.bf16 %v20
  %v85 = vunpack.c.l.bf16 %v21
  %v86 = vunpack.c.l.bf16 %v22
  %v87 = vunpack.c.l.bf16 %v23
  %v88 = vunpack.c.l.bf16 %v24
  %v89 = vunpack.c.l.bf16 %v25
  %v90 = vunpack.c.l.bf16 %v26
  %v91 = vunpack.c.l.bf16 %v27
  %v92 = vunpack.c.l.bf16 %v28
  %v93 = vunpack.c.l.bf16 %v29
  %v94 = vunpack.c.l.bf16 %v30
  %v95 = vunpack.c.l.bf16 %v31
  %v96 = vunpack.c.l.bf16 %v32
  %v97 = vunpack.c.l.bf16 %v33
  %v98 = vunpack.c.l.bf16 %v34
  %v99 = vunpack.c.l.bf16 %v35
  %v100 = vunpack.c.l.bf16 %v36
  %v101 = vunpack.c.l.bf16 %v37
  %v102 = vunpack.c.l.bf16 %v38
  %v103 = vunpack.c.l.bf16 %v39
  %v104 = vunpack.c.l.bf16 %v40
  %v105 = vunpack.c.l.bf16 %v41
  %v106 = vunpack.c.l.bf16 %v42
  %v107 = vunpack.c.l.bf16 %v43
  %v108 = vunpack.c.l.bf16 %v44
  %v109 = vunpack.c.l.bf16 %v45
  %v110 = vunpack.c.l.bf16 %v46
  %v111 = vunpack.c.l.bf16 %v47
  %v112 = vunpack.c.l.bf16 %v48
  %v113 = vunpack.c.l.bf16 %v49
  %v114 = vunpack.c.l.bf16 %v50
  %v115 = vunpack.c.l.bf16 %v51
  %v116 = vunpack.c.l.bf16 %v52
  %v117 = vunpack.c.l.bf16 %v53
  %v118 = vunpack.c.l.bf16 %v54
  %v119 = vunpack.c.l.bf16 %v55
  %v120 = vunpack.c.l.bf16 %v56
  %v121 = vunpack.c.l.bf16 %v57
  %v122 = vunpack.c.l.bf16 %v58
  %v123 = vunpack.c.l.bf16 %v59
  %v124 = vunpack.c.l.bf16 %v60
  %v125 = vunpack.c.l.bf16 %v61
  %v126 = vunpack.c.l.bf16 %v62
  %v127 = vunpack.c.l.bf16 %v63
  %v128 = vunpack.c.l.bf16 %v64
  %v129 = vunpack.c.l.bf16 %v65
  %v130 = vunpack.c.l.bf16 %v66
  %v131 = vunpack.c.l.bf16 %v67
  %v132 = vunpack.c.l.bf16 %v68
  %v133 = vunpack.c.l.bf16 %v69
  %v134 = vunpack.c.l.bf16 %v70
  %v135 = vunpack.c.l.bf16 %v71
  %v136 = vunpack.c.l.bf16 %v72
  %v137 = vunpack.c.l.bf16 %v73
  %v138 = vunpack.c.l.bf16 %v74
  %v139 = vunpack.c.l.bf16 %v75
  %v140 = vunpack.c.l.bf16 %v76
  %v141 = vunpack.c.l.bf16 %v77
  %v142 = vunpack.c.l.bf16 %v78
  %v143 = vunpack.c.l.bf16 %v79
  %v144 = vunpack.c.l.bf16 %v80
  %v145 = vunpack.c.l.bf16 %v81
  %v146 = vld [vmem:[%s1] sm:$0x1]
  %v148 = vperm.slane %v146, 0
  %v150 = vmul.f32 %v82, %v148
  %v151 = vmul.f32 %v83, %v148
  %v152 = vmul.f32 %v84, %v148
  %v153 = vmul.f32 %v85, %v148
  %v154 = vmul.f32 %v86, %v148
  %v155 = vmul.f32 %v87, %v148
  %v156 = vmul.f32 %v88, %v148
  %v157 = vmul.f32 %v89, %v148
  %v158 = vmul.f32 %v90, %v148
  %v159 = vmul.f32 %v91, %v148
  %v160 = vmul.f32 %v92, %v148
  %v161 = vmul.f32 %v93, %v148
  %v162 = vmul.f32 %v94, %v148
  %v163 = vmul.f32 %v95, %v148
  %v164 = vmul.f32 %v96, %v148
  %v165 = vmul.f32 %v97, %v148
  %v166 = vmul.f32 %v98, %v148
  %v167 = vmul.f32 %v99, %v148
  %v168 = vmul.f32 %v100, %v148
  %v169 = vmul.f32 %v101, %v148
  %v170 = vmul.f32 %v102, %v148
  %v171 = vmul.f32 %v103, %v148
  %v172 = vmul.f32 %v104, %v148
  %v173 = vmul.f32 %v105, %v148
  %v174 = vmul.f32 %v106, %v148
  %v175 = vmul.f32 %v107, %v148
  %v176 = vmul.f32 %v108, %v148
  %v177 = vmul.f32 %v109, %v148
  %v178 = vmul.f32 %v110, %v148
  %v179 = vmul.f32 %v111, %v148
  %v180 = vmul.f32 %v112, %v148
  %v181 = vmul.f32 %v113, %v148
  %v182 = vmul.f32 %v114, %v148
  %v183 = vmul.f32 %v115, %v148
  %v184 = vmul.f32 %v116, %v148
  %v185 = vmul.f32 %v117, %v148
  %v186 = vmul.f32 %v118, %v148
  %v187 = vmul.f32 %v119, %v148
  %v188 = vmul.f32 %v120, %v148
  %v189 = vmul.f32 %v121, %v148
  %v190 = vmul.f32 %v122, %v148
  %v191 = vmul.f32 %v123, %v148
  %v192 = vmul.f32 %v124, %v148
  %v193 = vmul.f32 %v125, %v148
  %v194 = vmul.f32 %v126, %v148
  %v195 = vmul.f32 %v127, %v148
  %v196 = vmul.f32 %v128, %v148
  %v197 = vmul.f32 %v129, %v148
  %v198 = vmul.f32 %v130, %v148
  %v199 = vmul.f32 %v131, %v148
  %v200 = vmul.f32 %v132, %v148
  %v201 = vmul.f32 %v133, %v148
  %v202 = vmul.f32 %v134, %v148
  %v203 = vmul.f32 %v135, %v148
  %v204 = vmul.f32 %v136, %v148
  %v205 = vmul.f32 %v137, %v148
  %v206 = vmul.f32 %v138, %v148
  %v207 = vmul.f32 %v139, %v148
  %v208 = vmul.f32 %v140, %v148
  %v209 = vmul.f32 %v141, %v148
  %v210 = vmul.f32 %v142, %v148
  %v211 = vmul.f32 %v143, %v148
  %v212 = vmul.f32 %v144, %v148
  %v213 = vmul.f32 %v145, %v148
  %v214 = vld [vmem:[%s2] sm:$0x1]
  %v216 = vperm.slane %v214, 0
  %v218 = vadd.f32 %v150, %v216
  %v219 = vadd.f32 %v151, %v216
  %v220 = vadd.f32 %v152, %v216
  %v221 = vadd.f32 %v153, %v216
  %v222 = vadd.f32 %v154, %v216
  %v223 = vadd.f32 %v155, %v216
  %v224 = vadd.f32 %v156, %v216
  %v225 = vadd.f32 %v157, %v216
  %v226 = vadd.f32 %v158, %v216
  %v227 = vadd.f32 %v159, %v216
  %v228 = vadd.f32 %v160, %v216
  %v229 = vadd.f32 %v161, %v216
  %v230 = vadd.f32 %v162, %v216
  %v231 = vadd.f32 %v163, %v216
  %v232 = vadd.f32 %v164, %v216
  %v233 = vadd.f32 %v165, %v216
  %v234 = vadd.f32 %v166, %v216
  %v235 = vadd.f32 %v167, %v216
  %v236 = vadd.f32 %v168, %v216
  %v237 = vadd.f32 %v169, %v216
  %v238 = vadd.f32 %v170, %v216
  %v239 = vadd.f32 %v171, %v216
  %v240 = vadd.f32 %v172, %v216
  %v241 = vadd.f32 %v173, %v216
  %v242 = vadd.f32 %v174, %v216
  %v243 = vadd.f32 %v175, %v216
  %v244 = vadd.f32 %v176, %v216
  %v245 = vadd.f32 %v177, %v216
  %v246 = vadd.f32 %v178, %v216
  %v247 = vadd.f32 %v179, %v216
  %v248 = vadd.f32 %v180, %v216
  %v249 = vadd.f32 %v181, %v216
  %v250 = vadd.f32 %v182, %v216
  %v251 = vadd.f32 %v183, %v216
  %v252 = vadd.f32 %v184, %v216
  %v253 = vadd.f32 %v185, %v216
  %v254 = vadd.f32 %v186, %v216
  %v255 = vadd.f32 %v187, %v216
  %v256 = vadd.f32 %v188, %v216
  %v257 = vadd.f32 %v189, %v216
  %v258 = vadd.f32 %v190, %v216
  %v259 = vadd.f32 %v191, %v216
  %v260 = vadd.f32 %v192, %v216
  %v261 = vadd.f32 %v193, %v216
  %v262 = vadd.f32 %v194, %v216
  %v263 = vadd.f32 %v195, %v216
  %v264 = vadd.f32 %v196, %v216
  %v265 = vadd.f32 %v197, %v216
  %v266 = vadd.f32 %v198, %v216
  %v267 = vadd.f32 %v199, %v216
  %v268 = vadd.f32 %v200, %v216
  %v269 = vadd.f32 %v201, %v216
  %v270 = vadd.f32 %v202, %v216
  %v271 = vadd.f32 %v203, %v216
  %v272 = vadd.f32 %v204, %v216
  %v273 = vadd.f32 %v205, %v216
  %v274 = vadd.f32 %v206, %v216
  %v275 = vadd.f32 %v207, %v216
  %v276 = vadd.f32 %v208, %v216
  %v277 = vadd.f32 %v209, %v216
  %v278 = vadd.f32 %v210, %v216
  %v279 = vadd.f32 %v211, %v216
  %v280 = vadd.f32 %v212, %v216
  %v281 = vadd.f32 %v213, %v216
  %v282 = vmax.f32 %v218, 0.0
  %v283 = vmax.f32 %v219, 0.0
  %v284 = vmax.f32 %v220, 0.0
  %v285 = vmax.f32 %v221, 0.0
  %v286 = vmax.f32 %v222, 0.0
  %v287 = vmax.f32 %v223, 0.0
  %v288 = vmax.f32 %v224, 0.0
  %v289 = vmax.f32 %v225, 0.0
  %v290 = vmax.f32 %v226, 0.0
  %v291 = vmax.f32 %v227, 0.0
  %v292 = vmax.f32 %v228, 0.0
  %v293 = vmax.f32 %v229, 0.0
  %v294 = vmax.f32 %v230, 0.0
  %v295 = vmax.f32 %v231, 0.0
  %v296 = vmax.f32 %v232, 0.0
  %v297 = vmax.f32 %v233, 0.0
  %v298 = vmax.f32 %v234, 0.0
  %v299 = vmax.f32 %v235, 0.0
  %v300 = vmax.f32 %v236, 0.0
  %v301 = vmax.f32 %v237, 0.0
  %v302 = vmax.f32 %v238, 0.0
  %v303 = vmax.f32 %v239, 0.0
  %v304 = vmax.f32 %v240, 0.0
  %v305 = vmax.f32 %v241, 0.0
  %v306 = vmax.f32 %v242, 0.0
  %v307 = vmax.f32 %v243, 0.0
  %v308 = vmax.f32 %v244, 0.0
  %v309 = vmax.f32 %v245, 0.0
  %v310 = vmax.f32 %v246, 0.0
  %v311 = vmax.f32 %v247, 0.0
  %v312 = vmax.f32 %v248, 0.0
  %v313 = vmax.f32 %v249, 0.0
  %v314 = vmax.f32 %v250, 0.0
  %v315 = vmax.f32 %v251, 0.0
  %v316 = vmax.f32 %v252, 0.0
  %v317 = vmax.f32 %v253, 0.0
  %v318 = vmax.f32 %v254, 0.0
  %v319 = vmax.f32 %v255, 0.0
  %v320 = vmax.f32 %v256, 0.0
  %v321 = vmax.f32 %v257, 0.0
  %v322 = vmax.f32 %v258, 0.0
  %v323 = vmax.f32 %v259, 0.0
  %v324 = vmax.f32 %v260, 0.0
  %v325 = vmax.f32 %v261, 0.0
  %v326 = vmax.f32 %v262, 0.0
  %v327 = vmax.f32 %v263, 0.0
  %v328 = vmax.f32 %v264, 0.0
  %v329 = vmax.f32 %v265, 0.0
  %v330 = vmax.f32 %v266, 0.0
  %v331 = vmax.f32 %v267, 0.0
  %v332 = vmax.f32 %v268, 0.0
  %v333 = vmax.f32 %v269, 0.0
  %v334 = vmax.f32 %v270, 0.0
  %v335 = vmax.f32 %v271, 0.0
  %v336 = vmax.f32 %v272, 0.0
  %v337 = vmax.f32 %v273, 0.0
  %v338 = vmax.f32 %v274, 0.0
  %v339 = vmax.f32 %v275, 0.0
  %v340 = vmax.f32 %v276, 0.0
  %v341 = vmax.f32 %v277, 0.0
  %v342 = vmax.f32 %v278, 0.0
  %v343 = vmax.f32 %v279, 0.0
  %v344 = vmax.f32 %v280, 0.0
  %v345 = vmax.f32 %v281, 0.0
  %v346 = vpack.c.bf16 %v283, %v282
  %v347 = vpack.c.bf16 %v285, %v284
  %v348 = vpack.c.bf16 %v287, %v286
  %v349 = vpack.c.bf16 %v289, %v288
  %v350 = vpack.c.bf16 %v291, %v290
  %v351 = vpack.c.bf16 %v293, %v292
  %v352 = vpack.c.bf16 %v295, %v294
  %v353 = vpack.c.bf16 %v297, %v296
  %v354 = vpack.c.bf16 %v299, %v298
  %v355 = vpack.c.bf16 %v301, %v300
  %v356 = vpack.c.bf16 %v303, %v302
  %v357 = vpack.c.bf16 %v305, %v304
  %v358 = vpack.c.bf16 %v307, %v306
  %v359 = vpack.c.bf16 %v309, %v308
  %v360 = vpack.c.bf16 %v311, %v310
  %v361 = vpack.c.bf16 %v313, %v312
  %v362 = vpack.c.bf16 %v315, %v314
  %v363 = vpack.c.bf16 %v317, %v316
  %v364 = vpack.c.bf16 %v319, %v318
  %v365 = vpack.c.bf16 %v321, %v320
  %v366 = vpack.c.bf16 %v323, %v322
  %v367 = vpack.c.bf16 %v325, %v324
  %v368 = vpack.c.bf16 %v327, %v326
  %v369 = vpack.c.bf16 %v329, %v328
  %v370 = vpack.c.bf16 %v331, %v330
  %v371 = vpack.c.bf16 %v333, %v332
  %v372 = vpack.c.bf16 %v335, %v334
  %v373 = vpack.c.bf16 %v337, %v336
  %v374 = vpack.c.bf16 %v339, %v338
  %v375 = vpack.c.bf16 %v341, %v340
  %v376 = vpack.c.bf16 %v343, %v342
  %v377 = vpack.c.bf16 %v345, %v344
  %v378 = vld [vmem:[%s3] sm:$0xf]
  %v379 = vld [vmem:[%s3 + $0x4] sm:$0xf]
  %v382 = vunpack.c.l.b16 %v378
  %v383 = vunpack.c.l.b16 %v379
  %v384 = vpack.c.b16 %v383, %v382
  %vm386 = vcmask 130048
  %v388 = vsel %vm386, %v346, 0
  %v391 = vsel %vm386, %v347, 0
  %v394 = vsel %vm386, %v348, 0
  %v397 = vsel %vm386, %v349, 0
  %v400 = vsel %vm386, %v350, 0
  %v403 = vsel %vm386, %v351, 0
  %v406 = vsel %vm386, %v352, 0
  %v409 = vsel %vm386, %v353, 0
  %v412 = vsel %vm386, %v354, 0
  %v415 = vsel %vm386, %v355, 0
  %v418 = vsel %vm386, %v356, 0
  %v421 = vsel %vm386, %v357, 0
  %v424 = vsel %vm386, %v358, 0
  %v427 = vsel %vm386, %v359, 0
  %v430 = vsel %vm386, %v360, 0
  %v433 = vsel %vm386, %v361, 0
  %v436 = vsel %vm386, %v362, 0
  %v439 = vsel %vm386, %v363, 0
  %v442 = vsel %vm386, %v364, 0
  %v445 = vsel %vm386, %v365, 0
  %v448 = vsel %vm386, %v366, 0
  %v451 = vsel %vm386, %v367, 0
  %v454 = vsel %vm386, %v368, 0
  %v457 = vsel %vm386, %v369, 0
  %v460 = vsel %vm386, %v370, 0
  %v463 = vsel %vm386, %v371, 0
  %v466 = vsel %vm386, %v372, 0
  %v469 = vsel %vm386, %v373, 0
  %v472 = vsel %vm386, %v374, 0
  %v475 = vsel %vm386, %v375, 0
  %v478 = vsel %vm386, %v376, 0
  %v481 = vsel %vm386, %v377, 0
  %483 = vmatpush.bf16.msra.mxu0 0
  %484 = vmatpush.bf16.msra.mxu0 0
  %485 = vmatpush.bf16.msra.mxu0 0
  %486 = vmatpush.bf16.msra.mxu0 0
  %487 = vmatpush.bf16.msra.mxu0 0
  %488 = vmatpush.bf16.msra.mxu0 0
  %489 = vmatpush.bf16.msra.mxu0 0
  %490 = vmatpush.bf16.msra.mxu0 %v384
  %491 = vmatmul.bf16.gmra.mxu0 %v388
  %v492 = vpop.f32.mrf.mxu0
  %v493 = vadd.f32 0.0, %v492
  %v494 = vpop.f32.mrf.mxu0
  %v495 = vadd.f32 0.0, %v494
  %496 = vmatmul.bf16.gmra.mxu0 %v391
  %v497 = vpop.f32.mrf.mxu0
  %v498 = vadd.f32 0.0, %v497
  %v499 = vpop.f32.mrf.mxu0
  %v500 = vadd.f32 0.0, %v499
  %501 = vmatmul.bf16.gmra.mxu0 %v394
  %v502 = vpop.f32.mrf.mxu0
  %v503 = vadd.f32 0.0, %v502
  %v504 = vpop.f32.mrf.mxu0
  %v505 = vadd.f32 0.0, %v504
  %506 = vmatmul.bf16.gmra.mxu0 %v397
  %v507 = vpop.f32.mrf.mxu0
  %v508 = vadd.f32 0.0, %v507
  %v509 = vpop.f32.mrf.mxu0
  %v510 = vadd.f32 0.0, %v509
  %511 = vmatmul.bf16.gmra.mxu0 %v400
  %v512 = vpop.f32.mrf.mxu0
  %v513 = vadd.f32 0.0, %v512
  %v514 = vpop.f32.mrf.mxu0
  %v515 = vadd.f32 0.0, %v514
  %516 = vmatmul.bf16.gmra.mxu0 %v403
  %v517 = vpop.f32.mrf.mxu0
  %v518 = vadd.f32 0.0, %v517
  %v519 = vpop.f32.mrf.mxu0
  %v520 = vadd.f32 0.0, %v519
  %521 = vmatmul.bf16.gmra.mxu0 %v406
  %v522 = vpop.f32.mrf.mxu0
  %v523 = vadd.f32 0.0, %v522
  %v524 = vpop.f32.mrf.mxu0
  %v525 = vadd.f32 0.0, %v524
  %526 = vmatmul.bf16.gmra.mxu0 %v409
  %v527 = vpop.f32.mrf.mxu0
  %v528 = vadd.f32 0.0, %v527
  %v529 = vpop.f32.mrf.mxu0
  %v530 = vadd.f32 0.0, %v529
  %531 = vmatmul.bf16.gmra.mxu0 %v412
  %v532 = vpop.f32.mrf.mxu0
  %v533 = vadd.f32 0.0, %v532
  %v534 = vpop.f32.mrf.mxu0
  %v535 = vadd.f32 0.0, %v534
  %536 = vmatmul.bf16.gmra.mxu0 %v415
  %v537 = vpop.f32.mrf.mxu0
  %v538 = vadd.f32 0.0, %v537
  %v539 = vpop.f32.mrf.mxu0
  %v540 = vadd.f32 0.0, %v539
  %541 = vmatmul.bf16.gmra.mxu0 %v418
  %v542 = vpop.f32.mrf.mxu0
  %v543 = vadd.f32 0.0, %v542
  %v544 = vpop.f32.mrf.mxu0
  %v545 = vadd.f32 0.0, %v544
  %546 = vmatmul.bf16.gmra.mxu0 %v421
  %v547 = vpop.f32.mrf.mxu0
  %v548 = vadd.f32 0.0, %v547
  %v549 = vpop.f32.mrf.mxu0
  %v550 = vadd.f32 0.0, %v549
  %551 = vmatmul.bf16.gmra.mxu0 %v424
  %v552 = vpop.f32.mrf.mxu0
  %v553 = vadd.f32 0.0, %v552
  %v554 = vpop.f32.mrf.mxu0
  %v555 = vadd.f32 0.0, %v554
  %556 = vmatmul.bf16.gmra.mxu0 %v427
  %v557 = vpop.f32.mrf.mxu0
  %v558 = vadd.f32 0.0, %v557
  %v559 = vpop.f32.mrf.mxu0
  %v560 = vadd.f32 0.0, %v559
  %561 = vmatmul.bf16.gmra.mxu0 %v430
  %v562 = vpop.f32.mrf.mxu0
  %v563 = vadd.f32 0.0, %v562
  %v564 = vpop.f32.mrf.mxu0
  %v565 = vadd.f32 0.0, %v564
  %566 = vmatmul.bf16.gmra.mxu0 %v433
  %v567 = vpop.f32.mrf.mxu0
  %v568 = vadd.f32 0.0, %v567
  %v569 = vpop.f32.mrf.mxu0
  %v570 = vadd.f32 0.0, %v569
  %571 = vmatmul.bf16.gmra.mxu0 %v436
  %v572 = vpop.f32.mrf.mxu0
  %v573 = vadd.f32 0.0, %v572
  %v574 = vpop.f32.mrf.mxu0
  %v575 = vadd.f32 0.0, %v574
  %576 = vmatmul.bf16.gmra.mxu0 %v439
  %v577 = vpop.f32.mrf.mxu0
  %v578 = vadd.f32 0.0, %v577
  %v579 = vpop.f32.mrf.mxu0
  %v580 = vadd.f32 0.0, %v579
  %581 = vmatmul.bf16.gmra.mxu0 %v442
  %v582 = vpop.f32.mrf.mxu0
  %v583 = vadd.f32 0.0, %v582
  %v584 = vpop.f32.mrf.mxu0
  %v585 = vadd.f32 0.0, %v584
  %586 = vmatmul.bf16.gmra.mxu0 %v445
  %v587 = vpop.f32.mrf.mxu0
  %v588 = vadd.f32 0.0, %v587
  %v589 = vpop.f32.mrf.mxu0
  %v590 = vadd.f32 0.0, %v589
  %591 = vmatmul.bf16.gmra.mxu0 %v448
  %v592 = vpop.f32.mrf.mxu0
  %v593 = vadd.f32 0.0, %v592
  %v594 = vpop.f32.mrf.mxu0
  %v595 = vadd.f32 0.0, %v594
  %596 = vmatmul.bf16.gmra.mxu0 %v451
  %v597 = vpop.f32.mrf.mxu0
  %v598 = vadd.f32 0.0, %v597
  %v599 = vpop.f32.mrf.mxu0
  %v600 = vadd.f32 0.0, %v599
  %601 = vmatmul.bf16.gmra.mxu0 %v454
  %v602 = vpop.f32.mrf.mxu0
  %v603 = vadd.f32 0.0, %v602
  %v604 = vpop.f32.mrf.mxu0
  %v605 = vadd.f32 0.0, %v604
  %606 = vmatmul.bf16.gmra.mxu0 %v457
  %v607 = vpop.f32.mrf.mxu0
  %v608 = vadd.f32 0.0, %v607
  %v609 = vpop.f32.mrf.mxu0
  %v610 = vadd.f32 0.0, %v609
  %611 = vmatmul.bf16.gmra.mxu0 %v460
  %v612 = vpop.f32.mrf.mxu0
  %v613 = vadd.f32 0.0, %v612
  %v614 = vpop.f32.mrf.mxu0
  %v615 = vadd.f32 0.0, %v614
  %616 = vmatmul.bf16.gmra.mxu0 %v463
  %v617 = vpop.f32.mrf.mxu0
  %v618 = vadd.f32 0.0, %v617
  %v619 = vpop.f32.mrf.mxu0
  %v620 = vadd.f32 0.0, %v619
  %621 = vmatmul.bf16.gmra.mxu0 %v466
  %v622 = vpop.f32.mrf.mxu0
  %v623 = vadd.f32 0.0, %v622
  %v624 = vpop.f32.mrf.mxu0
  %v625 = vadd.f32 0.0, %v624
  %626 = vmatmul.bf16.gmra.mxu0 %v469
  %v627 = vpop.f32.mrf.mxu0
  %v628 = vadd.f32 0.0, %v627
  %v629 = vpop.f32.mrf.mxu0
  %v630 = vadd.f32 0.0, %v629
  %631 = vmatmul.bf16.gmra.mxu0 %v472
  %v632 = vpop.f32.mrf.mxu0
  %v633 = vadd.f32 0.0, %v632
  %v634 = vpop.f32.mrf.mxu0
  %v635 = vadd.f32 0.0, %v634
  %636 = vmatmul.bf16.gmra.mxu0 %v475
  %v637 = vpop.f32.mrf.mxu0
  %v638 = vadd.f32 0.0, %v637
  %v639 = vpop.f32.mrf.mxu0
  %v640 = vadd.f32 0.0, %v639
  %641 = vmatmul.bf16.gmra.mxu0 %v478
  %v642 = vpop.f32.mrf.mxu0
  %v643 = vadd.f32 0.0, %v642
  %v644 = vpop.f32.mrf.mxu0
  %v645 = vadd.f32 0.0, %v644
  %646 = vmatmul.bf16.gmra.mxu0 %v481
  %v647 = vpop.f32.mrf.mxu0
  %v648 = vadd.f32 0.0, %v647
  %v649 = vpop.f32.mrf.mxu0
  %v650 = vadd.f32 0.0, %v649
  %651 = vdwg.mxu0
  %v652 = vpack.c.bf16 %v493, %v493
  %v653 = vpack.c.bf16 %v495, %v495
  %v654 = vpack.c.bf16 %v498, %v498
  %v655 = vpack.c.bf16 %v500, %v500
  %v656 = vpack.c.bf16 %v503, %v503
  %v657 = vpack.c.bf16 %v505, %v505
  %v658 = vpack.c.bf16 %v508, %v508
  %v659 = vpack.c.bf16 %v510, %v510
  %v660 = vpack.c.bf16 %v513, %v513
  %v661 = vpack.c.bf16 %v515, %v515
  %v662 = vpack.c.bf16 %v518, %v518
  %v663 = vpack.c.bf16 %v520, %v520
  %v664 = vpack.c.bf16 %v523, %v523
  %v665 = vpack.c.bf16 %v525, %v525
  %v666 = vpack.c.bf16 %v528, %v528
  %v667 = vpack.c.bf16 %v530, %v530
  %v668 = vpack.c.bf16 %v533, %v533
  %v669 = vpack.c.bf16 %v535, %v535
  %v670 = vpack.c.bf16 %v538, %v538
  %v671 = vpack.c.bf16 %v540, %v540
  %v672 = vpack.c.bf16 %v543, %v543
  %v673 = vpack.c.bf16 %v545, %v545
  %v674 = vpack.c.bf16 %v548, %v548
  %v675 = vpack.c.bf16 %v550, %v550
  %v676 = vpack.c.bf16 %v553, %v553
  %v677 = vpack.c.bf16 %v555, %v555
  %v678 = vpack.c.bf16 %v558, %v558
  %v679 = vpack.c.bf16 %v560, %v560
  %v680 = vpack.c.bf16 %v563, %v563
  %v681 = vpack.c.bf16 %v565, %v565
  %v682 = vpack.c.bf16 %v568, %v568
  %v683 = vpack.c.bf16 %v570, %v570
  %v684 = vpack.c.bf16 %v573, %v573
  %v685 = vpack.c.bf16 %v575, %v575
  %v686 = vpack.c.bf16 %v578, %v578
  %v687 = vpack.c.bf16 %v580, %v580
  %v688 = vpack.c.bf16 %v583, %v583
  %v689 = vpack.c.bf16 %v585, %v585
  %v690 = vpack.c.bf16 %v588, %v588
  %v691 = vpack.c.bf16 %v590, %v590
  %v692 = vpack.c.bf16 %v593, %v593
  %v693 = vpack.c.bf16 %v595, %v595
  %v694 = vpack.c.bf16 %v598, %v598
  %v695 = vpack.c.bf16 %v600, %v600
  %v696 = vpack.c.bf16 %v603, %v603
  %v697 = vpack.c.bf16 %v605, %v605
  %v698 = vpack.c.bf16 %v608, %v608
  %v699 = vpack.c.bf16 %v610, %v610
  %v700 = vpack.c.bf16 %v613, %v613
  %v701 = vpack.c.bf16 %v615, %v615
  %v702 = vpack.c.bf16 %v618, %v618
  %v703 = vpack.c.bf16 %v620, %v620
  %v704 = vpack.c.bf16 %v623, %v623
  %v705 = vpack.c.bf16 %v625, %v625
  %v706 = vpack.c.bf16 %v628, %v628
  %v707 = vpack.c.bf16 %v630, %v630
  %v708 = vpack.c.bf16 %v633, %v633
  %v709 = vpack.c.bf16 %v635, %v635
  %v710 = vpack.c.bf16 %v638, %v638
  %v711 = vpack.c.bf16 %v640, %v640
  %v712 = vpack.c.bf16 %v643, %v643
  %v713 = vpack.c.bf16 %v645, %v645
  %v714 = vpack.c.bf16 %v648, %v648
  %v715 = vpack.c.bf16 %v650, %v650
  %716 = vst [vmem:[%s4] sm:$0xf] %v652
  %717 = vst [vmem:[%s4 + $0x4] sm:$0xf] %v653
  %718 = vst [vmem:[%s4 + $0x8] sm:$0xf] %v654
  %719 = vst [vmem:[%s4 + $0xc] sm:$0xf] %v655
  %720 = vst [vmem:[%s4 + $0x10] sm:$0xf] %v656
  %721 = vst [vmem:[%s4 + $0x14] sm:$0xf] %v657
  %722 = vst [vmem:[%s4 + $0x18] sm:$0xf] %v658
  %723 = vst [vmem:[%s4 + $0x1c] sm:$0xf] %v659
  %724 = vst [vmem:[%s4 + $0x20] sm:$0xf] %v660
  %725 = vst [vmem:[%s4 + $0x24] sm:$0xf] %v661
  %726 = vst [vmem:[%s4 + $0x28] sm:$0xf] %v662
  %727 = vst [vmem:[%s4 + $0x2c] sm:$0xf] %v663
  %728 = vst [vmem:[%s4 + $0x30] sm:$0xf] %v664
  %729 = vst [vmem:[%s4 + $0x34] sm:$0xf] %v665
  %730 = vst [vmem:[%s4 + $0x38] sm:$0xf] %v666
  %731 = vst [vmem:[%s4 + $0x3c] sm:$0xf] %v667
  %732 = vst [vmem:[%s4 + $0x40] sm:$0xf] %v668
  %733 = vst [vmem:[%s4 + $0x44] sm:$0xf] %v669
  %734 = vst [vmem:[%s4 + $0x48] sm:$0xf] %v670
  %735 = vst [vmem:[%s4 + $0x4c] sm:$0xf] %v671
  %736 = vst [vmem:[%s4 + $0x50] sm:$0xf] %v672
  %737 = vst [vmem:[%s4 + $0x54] sm:$0xf] %v673
  %738 = vst [vmem:[%s4 + $0x58] sm:$0xf] %v674
  %739 = vst [vmem:[%s4 + $0x5c] sm:$0xf] %v675
  %740 = vst [vmem:[%s4 + $0x60] sm:$0xf] %v676
  %741 = vst [vmem:[%s4 + $0x64] sm:$0xf] %v677
  %742 = vst [vmem:[%s4 + $0x68] sm:$0xf] %v678
  %743 = vst [vmem:[%s4 + $0x6c] sm:$0xf] %v679
  %744 = vst [vmem:[%s4 + $0x70] sm:$0xf] %v680
  %745 = vst [vmem:[%s4 + $0x74] sm:$0xf] %v681
  %746 = vst [vmem:[%s4 + $0x78] sm:$0xf] %v682
  %747 = vst [vmem:[%s4 + $0x7c] sm:$0xf] %v683
  %748 = vst [vmem:[%s4 + $0x80] sm:$0xf] %v684
  %749 = vst [vmem:[%s4 + $0x84] sm:$0xf] %v685
  %750 = vst [vmem:[%s4 + $0x88] sm:$0xf] %v686
  %751 = vst [vmem:[%s4 + $0x8c] sm:$0xf] %v687
  %752 = vst [vmem:[%s4 + $0x90] sm:$0xf] %v688
  %753 = vst [vmem:[%s4 + $0x94] sm:$0xf] %v689
  %754 = vst [vmem:[%s4 + $0x98] sm:$0xf] %v690
  %755 = vst [vmem:[%s4 + $0x9c] sm:$0xf] %v691
  %756 = vst [vmem:[%s4 + $0xa0] sm:$0xf] %v692
  %757 = vst [vmem:[%s4 + $0xa4] sm:$0xf] %v693
  %758 = vst [vmem:[%s4 + $0xa8] sm:$0xf] %v694
  %759 = vst [vmem:[%s4 + $0xac] sm:$0xf] %v695
  %760 = vst [vmem:[%s4 + $0xb0] sm:$0xf] %v696
  %761 = vst [vmem:[%s4 + $0xb4] sm:$0xf] %v697
  %762 = vst [vmem:[%s4 + $0xb8] sm:$0xf] %v698
  %763 = vst [vmem:[%s4 + $0xbc] sm:$0xf] %v699
  %764 = vst [vmem:[%s4 + $0xc0] sm:$0xf] %v700
  %765 = vst [vmem:[%s4 + $0xc4] sm:$0xf] %v701
  %766 = vst [vmem:[%s4 + $0xc8] sm:$0xf] %v702
  %767 = vst [vmem:[%s4 + $0xcc] sm:$0xf] %v703
  %768 = vst [vmem:[%s4 + $0xd0] sm:$0xf] %v704
  %769 = vst [vmem:[%s4 + $0xd4] sm:$0xf] %v705
  %770 = vst [vmem:[%s4 + $0xd8] sm:$0xf] %v706
  %771 = vst [vmem:[%s4 + $0xdc] sm:$0xf] %v707
  %772 = vst [vmem:[%s4 + $0xe0] sm:$0xf] %v708
  %773 = vst [vmem:[%s4 + $0xe4] sm:$0xf] %v709
  %774 = vst [vmem:[%s4 + $0xe8] sm:$0xf] %v710
  %775 = vst [vmem:[%s4 + $0xec] sm:$0xf] %v711
  %776 = vst [vmem:[%s4 + $0xf0] sm:$0xf] %v712
  %777 = vst [vmem:[%s4 + $0xf4] sm:$0xf] %v713
  %778 = vst [vmem:[%s4 + $0xf8] sm:$0xf] %v714
  %779 = vst [vmem:[%s4 + $0xfc] sm:$0xf] %v715
  // Predicated region
  $region18: #{a_call__.16} parent=0 // pred_check
    _
  $region19: #{a_call__.16} parent=0 // pred_check_branch
    %781 = sbr.rel (0) target = $region21
  $region20: #{a_call__.16} parent=0 // pred_region
    _
  $region21: #{a_call__.16} parent=0 // pred_fallthru
    _
  // Predicated region
  $region22: #{a_call__.16} parent=0 // pred_check
    _
  $region23: #{a_call__.16} parent=0 // pred_check_branch
    %783 = sbr.rel (0) target = $region25
  $region24: #{a_call__.16} parent=0 // pred_region
    _
  $region25: #{a_call__.16} parent=0 // pred_fallthru
    _

// kernel: a_call__.17
$region0: #{a_call__.17}
  #allocation0 [shape = 'u32[]', space=smem, size = 0x4, offset = 0x4, fixed_abs, tag = 'smem constant byte address 0x4 - core index']
  #allocation1 [shape = 'u32[72,128]{1,0:T(1,128)}', space=vmem, size = 0x9000, scoped, tag = 'internal scratch']
  %s0 = inlined_call_operand.vmem [shape: bf16[64,256], index: 0, kind: input, shape index: {}]
  %s1 = inlined_call_operand.vmem [shape: f32[1,256], index: 1, kind: output, shape index: {0}]
  %s2 = inlined_call_operand.vmem [shape: f32[1,256], index: 2, kind: output, shape index: {1}]
  %3 = xla_tuple %s1, %s2
  %s4 = sld [smem:[#allocation0]]
  $region26: #{a_call__.17} parent=0
    _
  %s6 = ssub.s32 1, %s4
  %s7 = scalar_select 0, %s6, %s4
  // Predicated region
  $region2: #{a_call__.17} parent=0 // pred_check
    _
  $region3: #{a_call__.17} parent=0 // pred_check_branch
    %9 = sbr.rel (0) target = $region5
  $region4: #{a_call__.17} parent=0 // pred_region
    _
  $region5: #{a_call__.17} parent=0 // pred_fallthru
    _
  %p10 = scmp.eq.s32.totalorder 0, 0
  // Predicated region
  $region6: #{a_call__.17} parent=0 // pred_check
    %p11 = pneg %p10
  $region7: #{a_call__.17} parent=0 // pred_check_branch
    %13 = sbr.rel (%p11) target = $region9
  $region8: #{a_call__.17} parent=0 // pred_region
    %v14 = vlaneseq
    %vm15 = vcmp.ge.s32.totalorder %v14, 0
    %vm16 = vcmp.lt.s32.totalorder %v14, 256
    %vm17 = vmand %vm15, %vm16
    %18 = vst.msk [vmem:[%s1] sm:$0x3] %vm17, 0.0
    %19 = vst.msk [vmem:[%s2] sm:$0x3] %vm17, 0.0
  $region9: #{a_call__.17} parent=0 // pred_fallthru
    _
  %v20 = vld [vmem:[%s0] sm:$0xff]
  %v21 = vld [vmem:[%s0 + $0x8] sm:$0xff]
  %v22 = vld [vmem:[%s0 + $0x10] sm:$0xff]
  %v23 = vld [vmem:[%s0 + $0x18] sm:$0xff]
  %v24 = vld [vmem:[%s0 + $0x20] sm:$0xff]
  %v25 = vld [vmem:[%s0 + $0x28] sm:$0xff]
  %v26 = vld [vmem:[%s0 + $0x30] sm:$0xff]
  %v27 = vld [vmem:[%s0 + $0x38] sm:$0xff]
  %v28 = vunpack.c.l.bf16 %v20
  %v29 = vunpack.c.h.bf16 %v20
  %v30 = vunpack.c.l.bf16 %v21
  %v31 = vunpack.c.h.bf16 %v21
  %v32 = vunpack.c.l.bf16 %v22
  %v33 = vunpack.c.h.bf16 %v22
  %v34 = vunpack.c.l.bf16 %v23
  %v35 = vunpack.c.h.bf16 %v23
  %v36 = vunpack.c.l.bf16 %v24
  %v37 = vunpack.c.h.bf16 %v24
  %v38 = vunpack.c.l.bf16 %v25
  %v39 = vunpack.c.h.bf16 %v25
  %v40 = vunpack.c.l.bf16 %v26
  %v41 = vunpack.c.h.bf16 %v26
  %v42 = vunpack.c.l.bf16 %v27
  %v43 = vunpack.c.h.bf16 %v27
  %v44 = vld [vmem:[%s1] sm:$0x3]
  %v45 = vadd.f32 %v28, %v30
  %v46 = vadd.f32 %v45, %v32
  %v47 = vadd.f32 %v46, %v34
  %v48 = vadd.f32 %v47, %v36
  %v49 = vadd.f32 %v48, %v38
  %v50 = vadd.f32 %v49, %v40
  %v51 = vadd.f32 %v50, %v42
  %v52 = vrot.slane %v51, 4
  %v53 = vadd.f32 %v51, %v52
  %v54 = vrot.slane %v53, 2
  %v55 = vadd.f32 %v53, %v54
  %v56 = vrot.slane %v55, 1
  %v57 = vadd.f32 %v55, %v56
  %v58 = vadd.f32 %v29, %v31
  %v59 = vadd.f32 %v58, %v33
  %v60 = vadd.f32 %v59, %v35
  %v61 = vadd.f32 %v60, %v37
  %v62 = vadd.f32 %v61, %v39
  %v63 = vadd.f32 %v62, %v41
  %v64 = vadd.f32 %v63, %v43
  %v65 = vrot.slane %v64, 4
  %v66 = vadd.f32 %v64, %v65
  %v67 = vrot.slane %v66, 2
  %v68 = vadd.f32 %v66, %v67
  %v69 = vrot.slane %v68, 1
  %v70 = vadd.f32 %v68, %v69
  %v73 = vrot.slane %v70, 7
  %vm74 = vcmask 1040384
  %v75 = vsel %vm74, %v57, %v73
  %v77 = vadd.f32 %v44, %v75
  %v78 = vlaneseq
  %vm79 = vcmp.ge.s32.totalorder %v78, 0
  %vm80 = vcmp.lt.s32.totalorder %v78, 256
  %vm81 = vmand %vm79, %vm80
  %82 = vst.msk [vmem:[%s1] sm:$0x3] %vm81, %v77
  %v83 = vld [vmem:[%s2] sm:$0x3]
  %v84 = vmul.f32 %v28, %v28
  %v85 = vmul.f32 %v29, %v29
  %v86 = vmul.f32 %v30, %v30
  %v87 = vmul.f32 %v31, %v31
  %v88 = vmul.f32 %v32, %v32
  %v89 = vmul.f32 %v33, %v33
  %v90 = vmul.f32 %v34, %v34
  %v91 = vmul.f32 %v35, %v35
  %v92 = vmul.f32 %v36, %v36
  %v93 = vmul.f32 %v37, %v37
  %v94 = vmul.f32 %v38, %v38
  %v95 = vmul.f32 %v39, %v39
  %v96 = vmul.f32 %v40, %v40
  %v97 = vmul.f32 %v41, %v41
  %v98 = vmul.f32 %v42, %v42
  %v99 = vmul.f32 %v43, %v43
  %v100 = vadd.f32 %v84, %v86
  %v101 = vadd.f32 %v100, %v88
  %v102 = vadd.f32 %v101, %v90
  %v103 = vadd.f32 %v102, %v92
  %v104 = vadd.f32 %v103, %v94
  %v105 = vadd.f32 %v104, %v96
  %v106 = vadd.f32 %v105, %v98
  %v107 = vrot.slane %v106, 4
  %v108 = vadd.f32 %v106, %v107
  %v109 = vrot.slane %v108, 2
  %v110 = vadd.f32 %v108, %v109
  %v111 = vrot.slane %v110, 1
  %v112 = vadd.f32 %v110, %v111
  %v113 = vadd.f32 %v85, %v87
  %v114 = vadd.f32 %v113, %v89
  %v115 = vadd.f32 %v114, %v91
  %v116 = vadd.f32 %v115, %v93
  %v117 = vadd.f32 %v116, %v95
  %v118 = vadd.f32 %v117, %v97
  %v119 = vadd.f32 %v118, %v99
  %v120 = vrot.slane %v119, 4
  %v121 = vadd.f32 %v119, %v120
  %v122 = vrot.slane %v121, 2
  %v123 = vadd.f32 %v121, %v122
  %v124 = vrot.slane %v123, 1
  %v125 = vadd.f32 %v123, %v124
  %v128 = vrot.slane %v125, 7
  %v129 = vsel %vm74, %v112, %v128
  %v131 = vadd.f32 %v83, %v129
  %132 = vst.msk [vmem:[%s2] sm:$0x3] %vm81, %v131
  // Predicated region
  $region10: #{a_call__.17} parent=0 // pred_check
    _
  $region11: #{a_call__.17} parent=0 // pred_check_branch
    %134 = sbr.rel (0) target = $region13
  $region12: #{a_call__.17} parent=0 // pred_region
    _
  $region13: #{a_call__.17} parent=0 // pred_fallthru
    _
  // Predicated region
  $region14: #{a_call__.17} parent=0 // pred_check
    _
  $region15: #{a_call__.17} parent=0 // pred_check_branch
    %136 = sbr.rel (0) target = $region17
  $region16: #{a_call__.17} parent=0 // pred_region
    _
  $region17: #{a_call__.17} parent=0 // pred_fallthru
    _
  // Predicated region
  $region18: #{a_call__.17} parent=0 // pred_check
    _
  $region19: #{a_call__.17} parent=0 // pred_check_branch
    %138 = sbr.rel (0) target = $region21
  $region20: #{a_call__.17} parent=0 // pred_region
    _
  $region21: #{a_call__.17} parent=0 // pred_fallthru
    _
  // Predicated region
  $region22: #{a_call__.17} parent=0 // pred_check
    _
  $region23: #{a_call__.17} parent=0 // pred_check_branch
    %140 = sbr.rel (0) target = $region25
  $region24: #{a_call__.17} parent=0 // pred_region
    _
  $region25: #{a_call__.17} parent=0 // pred_fallthru
    _

// kernel: a_call__.18
$region0: #{a_call__.18}
  #allocation0 [shape = 'u32[]', space=smem, size = 0x4, offset = 0x4, fixed_abs, tag = 'smem constant byte address 0x4 - core index']
  #allocation1 [shape = 'u32[72,128]{1,0:T(1,128)}', space=vmem, size = 0x9000, scoped, tag = 'internal scratch']
  %s0 = inlined_call_operand.vmem [shape: bf16[2048,8], index: 0, kind: input, shape index: {}]
  %s1 = inlined_call_operand.vmem [shape: f32[1,8], index: 1, kind: input, shape index: {}]
  %s2 = inlined_call_operand.vmem [shape: f32[1,8], index: 2, kind: input, shape index: {}]
  %s3 = inlined_call_operand.vmem [shape: bf16[8,48], index: 3, kind: input, shape index: {}]
  %s4 = inlined_call_operand.vmem [shape: f32[2048,48], index: 4, kind: output, shape index: {}]
  %s5 = sld [smem:[#allocation0]]
  $region49: #{a_call__.18} parent=0
    _
  %s7 = ssub.s32 1, %s5
  %s8 = scalar_select 0, %s7, %s5
  loop: start=0, step=1, limit=4
  $region2: #{a_call__.18} parent=0 // loop_pre_header
    _
  $region3: #{a_call__.18} parent=0 // loop_header
    %s10 = sphi 0, %s14
    %p11 = scmp.ge.s32.totalorder %s10, 4
    %s17 = sphi 0, %s29
    %s18 = sphi 0, %s25
    %s19 = sphi 0, %s17
    %s20 = sphi 0, %s18
    %s21 = sphi 0, %s19
    %s22 = sphi 0, %s20
    %s32 = sphi 0, %s34
    %s35 = sphi 0, %s32
    %s36 = sphi 0, %s35
    %s52 = sphi 0, %s36
    %s56 = sphi 0, %s56
    %s58 = sphi 0, %s56
    %s59 = sphi 0, %s58
    %s73 = sphi 0, %s59
    %s77 = sphi 0, %s77
    %s79 = sphi 0, %s77
    %s80 = sphi 0, %s79
    %s94 = sphi 0, %s80
    %s100 = sphi 0, %s102
    %s103 = sphi 0, %s100
    %s104 = sphi 0, %s103
    %s120 = sphi 0, %s104
    %s128 = sphi 0, %s130
    %s131 = sphi 0, %s128
    %s132 = sphi 0, %s131
    %s148 = sphi 0, %s132
  $region4: #{a_call__.18} parent=0 // loop_header_branch
    %13 = sbr.rel (%p11) target = $region8
  $region5: #{a_call__.18} parent=0 // loop_body
    %s15 = ssub.s32 %s10, 1
    %s16 = ssub.s32 %s10, 2
    %s23 = sadd.s32 1, %s18
    %p24 = scmp.ge.s32.totalorder %s23, 1
    %s25 = scalar_select %p24, 0, %s23
    %s26 = sadd.s32 1, %s17
    %s27 = scalar_select %p24, %s26, %s17
    %p28 = scmp.ge.s32.totalorder %s27, 2
    %s29 = scalar_select %p28, 0, %s27
    %s30 = ssub.s32 %s17, %s29
    %p31 = scmp.eq.s32.totalorder %s30, 0
    %s33 = sadd.s32 %s32, 1
    %s34 = scalar_select %p31, %s32, %s33
    %p37 = pneg %p31
    %p38 = scmp.eq.s32.totalorder %s10, 1
    %p39 = por %p37, %p38
    %p40 = scmp.ne.s32.totalorder %s32, %s35
    %p41 = scmp.eq.s32.totalorder %s10, 0
    %p42 = por %p40, %p41
    %p43 = scmp.ne.s32.totalorder %s32, %s35
    %p44 = scmp.eq.s32.totalorder %s15, 1
    %p45 = por %p43, %p44
    %p46 = scmp.ne.s32.totalorder %s35, %s36
    %p47 = scmp.eq.s32.totalorder %s15, 0
    %p48 = por %p46, %p47
    %p49 = scmp.ne.s32.totalorder %s35, %s36
    %p50 = scmp.eq.s32.totalorder %s16, 1
    %p51 = por %p49, %p50
    %p53 = scmp.ne.s32.totalorder %s36, %s52
    %p54 = scmp.eq.s32.totalorder %s16, 0
    %p55 = por %p53, %p54
    %s57 = sadd.s32 %s56, 1
    %p60 = scmp.eq.s32.totalorder %s10, 1
    %p61 = scmp.ne.s32.totalorder %s56, %s58
    %p62 = scmp.eq.s32.totalorder %s10, 0
    %p63 = por %p61, %p62
    %p64 = scmp.ne.s32.totalorder %s56, %s58
    %p65 = scmp.eq.s32.totalorder %s15, 1
    %p66 = por %p64, %p65
    %p67 = scmp.ne.s32.totalorder %s58, %s59
    %p68 = scmp.eq.s32.totalorder %s15, 0
    %p69 = por %p67, %p68
    %p70 = scmp.ne.s32.totalorder %s58, %s59
    %p71 = scmp.eq.s32.totalorder %s16, 1
    %p72 = por %p70, %p71
    %p74 = scmp.ne.s32.totalorder %s59, %s73
    %p75 = scmp.eq.s32.totalorder %s16, 0
    %p76 = por %p74, %p75
    %s78 = sadd.s32 %s77, 1
    %p81 = scmp.eq.s32.totalorder %s10, 1
    %p82 = scmp.ne.s32.totalorder %s77, %s79
    %p83 = scmp.eq.s32.totalorder %s10, 0
    %p84 = por %p82, %p83
    %p85 = scmp.ne.s32.totalorder %s77, %s79
    %p86 = scmp.eq.s32.totalorder %s15, 1
    %p87 = por %p85, %p86
    %p88 = scmp.ne.s32.totalorder %s79, %s80
    %p89 = scmp.eq.s32.totalorder %s15, 0
    %p90 = por %p88, %p89
    %p91 = scmp.ne.s32.totalorder %s79, %s80
    %p92 = scmp.eq.s32.totalorder %s16, 1
    %p93 = por %p91, %p92
    %p95 = scmp.ne.s32.totalorder %s80, %s94
    %p96 = scmp.eq.s32.totalorder %s16, 0
    %p97 = por %p95, %p96
    %s98 = ssub.s32 %s18, %s25
    %p99 = scmp.eq.s32.totalorder %s98, 0
    %s101 = sadd.s32 %s100, 1
    %s102 = scalar_select %p99, %s100, %s101
    %p105 = pneg %p99
    %p106 = scmp.eq.s32.totalorder %s10, 1
    %p107 = por %p105, %p106
    %p108 = scmp.ne.s32.totalorder %s100, %s103
    %p109 = scmp.eq.s32.totalorder %s10, 0
    %p110 = por %p108, %p109
    %p111 = scmp.ne.s32.totalorder %s100, %s103
    %p112 = scmp.eq.s32.totalorder %s15, 1
    %p113 = por %p111, %p112
    %p114 = scmp.ne.s32.totalorder %s103, %s104
    %p115 = scmp.eq.s32.totalorder %s15, 0
    %p116 = por %p114, %p115
    %p117 = scmp.ne.s32.totalorder %s103, %s104
    %p118 = scmp.eq.s32.totalorder %s16, 1
    %p119 = por %p117, %p118
    %p121 = scmp.ne.s32.totalorder %s104, %s120
    %p122 = scmp.eq.s32.totalorder %s16, 0
    %p123 = por %p121, %p122
    %s124 = ssub.s32 %s17, %s29
    %s125 = ssub.s32 %s18, %s25
    %s126 = sor.u32 %s124, %s125
    %p127 = scmp.eq.s32.totalorder %s126, 0
    %s129 = sadd.s32 %s128, 1
    %s130 = scalar_select %p127, %s128, %s129
    %p133 = pneg %p127
    %p134 = scmp.eq.s32.totalorder %s10, 1
    %p135 = por %p133, %p134
    %p136 = scmp.ne.s32.totalorder %s128, %s131
    %p137 = scmp.eq.s32.totalorder %s10, 0
    %p138 = por %p136, %p137
    %p139 = scmp.ne.s32.totalorder %s128, %s131
    %p140 = scmp.eq.s32.totalorder %s15, 1
    %p141 = por %p139, %p140
    %p142 = scmp.ne.s32.totalorder %s131, %s132
    %p143 = scmp.eq.s32.totalorder %s15, 0
    %p144 = por %p142, %p143
    %p145 = scmp.ne.s32.totalorder %s131, %s132
    %p146 = scmp.eq.s32.totalorder %s16, 1
    %p147 = por %p145, %p146
    %p149 = scmp.ne.s32.totalorder %s132, %s148
    %p150 = scmp.eq.s32.totalorder %s16, 0
    %p151 = por %p149, %p150
    %p152 = scmp.le.s32.totalorder 1, %s10
    %p153 = scmp.lt.s32.totalorder %s10, 3
    %p154 = pnand %p152, %p153
    %p155 = pneg %p154
    // Predicated region
    $region9: #{a_call__.18} parent=5 // pred_check
      _
    $region10: #{a_call__.18} parent=5 // pred_check_branch
      %157 = sbr.rel (%p154) target = $region12
    $region11: #{a_call__.18} parent=5 // pred_region
      %s158 = ssub.s32 %s10, 1
      // Predicated region
      $region13: #{a_call__.18} parent=11 // pred_check
        %p159 = pneg %p69
      $region14: #{a_call__.18} parent=11 // pred_check_branch
        %161 = sbr.rel (%p159) target = $region16
      $region15: #{a_call__.18} parent=11 // pred_region
        _
      $region16: #{a_call__.18} parent=11 // pred_fallthru
        _
      // Predicated region
      $region17: #{a_call__.18} parent=11 // pred_check
        %p162 = pneg %p90
      $region18: #{a_call__.18} parent=11 // pred_check_branch
        %164 = sbr.rel (%p162) target = $region20
      $region19: #{a_call__.18} parent=11 // pred_region
        _
      $region20: #{a_call__.18} parent=11 // pred_fallthru
        _
      // Predicated region
      $region21: #{a_call__.18} parent=11 // pred_check
        %p165 = pneg %p116
      $region22: #{a_call__.18} parent=11 // pred_check_branch
        %167 = sbr.rel (%p165) target = $region24
      $region23: #{a_call__.18} parent=11 // pred_region
        %p168 = scmp.lt.s32.totalorder %s20, 0
        %s169 = scalar_select %p168, %s20, 0
        %s170 = smul.addr %s169, 4
        %s171 = scalar_lea.vmem %s3, %s170
      $region24: #{a_call__.18} parent=11 // pred_fallthru
        _
    $region12: #{a_call__.18} parent=5 // pred_fallthru
      _
    %p172 = scmp.lt.s32.totalorder %s10, 2
    // Predicated region
    $region25: #{a_call__.18} parent=5 // pred_check
      %p173 = pneg %p172
    $region26: #{a_call__.18} parent=5 // pred_check_branch
      %175 = sbr.rel (%p173) target = $region28
    $region27: #{a_call__.18} parent=5 // pred_region
      // Predicated region
      $region29: #{a_call__.18} parent=27 // pred_check
        %p176 = pneg %p42
      $region30: #{a_call__.18} parent=27 // pred_check_branch
        %178 = sbr.rel (%p176) target = $region32
      $region31: #{a_call__.18} parent=27 // pred_region
        %s179 = smul.u32 128, %s17
        %p180 = scmp.lt.s32.totalorder %s179, 255
        %s181 = scalar_select %p180, %s179, 255
        %s182 = smul.addr %s181, 4
        %s183 = scalar_lea.vmem %s0, %s182
        %s184 = smul.u32 128, %s17
      $region32: #{a_call__.18} parent=27 // pred_fallthru
        _
    $region28: #{a_call__.18} parent=5 // pred_fallthru
      _
    %p185 = scmp.le.s32.totalorder 1, %s10
    %p186 = scmp.lt.s32.totalorder %s10, 3
    %p187 = pnand %p185, %p186
    %p188 = pneg %p187
    // Predicated region
    $region33: #{a_call__.18} parent=5 // pred_check
      _
    $region34: #{a_call__.18} parent=5 // pred_check_branch
      %190 = sbr.rel (%p187) target = $region36
    $region35: #{a_call__.18} parent=5 // pred_region
      %s191 = ssub.s32 %s10, 1
      %s192 = smul.u32 128, %s19
      %p193 = scmp.lt.s32.totalorder %s192, 255
      %s194 = scalar_select %p193, %s192, 255
      %s195 = smul.addr %s194, 4
      %s196 = scalar_lea.vmem %s0, %s195
      %p197 = pneg %p48
      %p198 = pneg %p45
      %p199 = pneg %p69
      %p200 = pneg %p66
      %p201 = pneg %p90
      %p202 = pneg %p87
      %p203 = scmp.lt.s32.totalorder %s20, 0
      %s204 = scalar_select %p203, %s20, 0
      %s205 = smul.addr %s204, 4
      %s206 = scalar_lea.vmem %s3, %s205
      %p207 = pneg %p116
      %p208 = pneg %p113
      %p209 = pneg %p144
      %p210 = pneg %p141
      %s211 = smul.u32 128, %s19
      %p212 = scmp.lt.s32.totalorder %s211, 255
      %s213 = scalar_select %p212, %s211, 255
      %p214 = scmp.lt.s32.totalorder %s20, 0
      %s215 = scalar_select %p214, %s20, 0
      %s216 = sadd.s32 %s215, %s213
      %s217 = smul.addr %s216, 8
      %s218 = scalar_lea.vmem %s4, %s217
      %s219 = smul.u32 128, %s19
      %p220 = scmp.lt.s32.totalorder %s219, 255
      %s221 = scalar_select %p220, %s219, 255
      %s222 = smul.addr %s221, 4
      %s223 = scalar_lea.vmem %s0, %s222
      %s224 = smul.u32 128, %s19
      %p225 = scmp.lt.s32.totalorder %s20, 0
      %s226 = scalar_select %p225, %s20, 0
      %s227 = smul.addr %s226, 4
      %s228 = scalar_lea.vmem %s3, %s227
      %s229 = smul.u32 128, %s19
      %p230 = scmp.lt.s32.totalorder %s229, 255
      %s231 = scalar_select %p230, %s229, 255
      %p232 = scmp.lt.s32.totalorder %s20, 0
      %s233 = scalar_select %p232, %s20, 0
      %s234 = sadd.s32 %s233, %s231
      %s235 = smul.addr %s234, 8
      %s236 = scalar_lea.vmem %s4, %s235
      %s237 = smul.u32 128, %s19
      %v239 = vld [vmem:[%s223] sm:$0xf]
      %v240 = vld [vmem:[%s223 + $0x4] sm:$0xf]
      %v241 = vld [vmem:[%s223 + $0x8] sm:$0xf]
      %v242 = vld [vmem:[%s223 + $0xc] sm:$0xf]
      %v243 = vld [vmem:[%s223 + $0x10] sm:$0xf]
      %v244 = vld [vmem:[%s223 + $0x14] sm:$0xf]
      %v245 = vld [vmem:[%s223 + $0x18] sm:$0xf]
      %v246 = vld [vmem:[%s223 + $0x1c] sm:$0xf]
      %v247 = vld [vmem:[%s223 + $0x20] sm:$0xf]
      %v248 = vld [vmem:[%s223 + $0x24] sm:$0xf]
      %v249 = vld [vmem:[%s223 + $0x28] sm:$0xf]
      %v250 = vld [vmem:[%s223 + $0x2c] sm:$0xf]
      %v251 = vld [vmem:[%s223 + $0x30] sm:$0xf]
      %v252 = vld [vmem:[%s223 + $0x34] sm:$0xf]
      %v253 = vld [vmem:[%s223 + $0x38] sm:$0xf]
      %v254 = vld [vmem:[%s223 + $0x3c] sm:$0xf]
      %v255 = vld [vmem:[%s223 + $0x40] sm:$0xf]
      %v256 = vld [vmem:[%s223 + $0x44] sm:$0xf]
      %v257 = vld [vmem:[%s223 + $0x48] sm:$0xf]
      %v258 = vld [vmem:[%s223 + $0x4c] sm:$0xf]
      %v259 = vld [vmem:[%s223 + $0x50] sm:$0xf]
      %v260 = vld [vmem:[%s223 + $0x54] sm:$0xf]
      %v261 = vld [vmem:[%s223 + $0x58] sm:$0xf]
      %v262 = vld [vmem:[%s223 + $0x5c] sm:$0xf]
      %v263 = vld [vmem:[%s223 + $0x60] sm:$0xf]
      %v264 = vld [vmem:[%s223 + $0x64] sm:$0xf]
      %v265 = vld [vmem:[%s223 + $0x68] sm:$0xf]
      %v266 = vld [vmem:[%s223 + $0x6c] sm:$0xf]
      %v267 = vld [vmem:[%s223 + $0x70] sm:$0xf]
      %v268 = vld [vmem:[%s223 + $0x74] sm:$0xf]
      %v269 = vld [vmem:[%s223 + $0x78] sm:$0xf]
      %v270 = vld [vmem:[%s223 + $0x7c] sm:$0xf]
      %v271 = vld [vmem:[%s223 + $0x80] sm:$0xf]
      %v272 = vld [vmem:[%s223 + $0x84] sm:$0xf]
      %v273 = vld [vmem:[%s223 + $0x88] sm:$0xf]
      %v274 = vld [vmem:[%s223 + $0x8c] sm:$0xf]
      %v275 = vld [vmem:[%s223 + $0x90] sm:$0xf]
      %v276 = vld [vmem:[%s223 + $0x94] sm:$0xf]
      %v277 = vld [vmem:[%s223 + $0x98] sm:$0xf]
      %v278 = vld [vmem:[%s223 + $0x9c] sm:$0xf]
      %v279 = vld [vmem:[%s223 + $0xa0] sm:$0xf]
      %v280 = vld [vmem:[%s223 + $0xa4] sm:$0xf]
      %v281 = vld [vmem:[%s223 + $0xa8] sm:$0xf]
      %v282 = vld [vmem:[%s223 + $0xac] sm:$0xf]
      %v283 = vld [vmem:[%s223 + $0xb0] sm:$0xf]
      %v284 = vld [vmem:[%s223 + $0xb4] sm:$0xf]
      %v285 = vld [vmem:[%s223 + $0xb8] sm:$0xf]
      %v286 = vld [vmem:[%s223 + $0xbc] sm:$0xf]
      %v287 = vld [vmem:[%s223 + $0xc0] sm:$0xf]
      %v288 = vld [vmem:[%s223 + $0xc4] sm:$0xf]
      %v289 = vld [vmem:[%s223 + $0xc8] sm:$0xf]
      %v290 = vld [vmem:[%s223 + $0xcc] sm:$0xf]
      %v291 = vld [vmem:[%s223 + $0xd0] sm:$0xf]
      %v292 = vld [vmem:[%s223 + $0xd4] sm:$0xf]
      %v293 = vld [vmem:[%s223 + $0xd8] sm:$0xf]
      %v294 = vld [vmem:[%s223 + $0xdc] sm:$0xf]
      %v295 = vld [vmem:[%s223 + $0xe0] sm:$0xf]
      %v296 = vld [vmem:[%s223 + $0xe4] sm:$0xf]
      %v297 = vld [vmem:[%s223 + $0xe8] sm:$0xf]
      %v298 = vld [vmem:[%s223 + $0xec] sm:$0xf]
      %v299 = vld [vmem:[%s223 + $0xf0] sm:$0xf]
      %v300 = vld [vmem:[%s223 + $0xf4] sm:$0xf]
      %v301 = vld [vmem:[%s223 + $0xf8] sm:$0xf]
      %v302 = vld [vmem:[%s223 + $0xfc] sm:$0xf]
      %v303 = vld [vmem:[%s223 + $0x100] sm:$0xf]
      %v304 = vld [vmem:[%s223 + $0x104] sm:$0xf]
      %v305 = vld [vmem:[%s223 + $0x108] sm:$0xf]
      %v306 = vld [vmem:[%s223 + $0x10c] sm:$0xf]
      %v307 = vld [vmem:[%s223 + $0x110] sm:$0xf]
      %v308 = vld [vmem:[%s223 + $0x114] sm:$0xf]
      %v309 = vld [vmem:[%s223 + $0x118] sm:$0xf]
      %v310 = vld [vmem:[%s223 + $0x11c] sm:$0xf]
      %v311 = vld [vmem:[%s223 + $0x120] sm:$0xf]
      %v312 = vld [vmem:[%s223 + $0x124] sm:$0xf]
      %v313 = vld [vmem:[%s223 + $0x128] sm:$0xf]
      %v314 = vld [vmem:[%s223 + $0x12c] sm:$0xf]
      %v315 = vld [vmem:[%s223 + $0x130] sm:$0xf]
      %v316 = vld [vmem:[%s223 + $0x134] sm:$0xf]
      %v317 = vld [vmem:[%s223 + $0x138] sm:$0xf]
      %v318 = vld [vmem:[%s223 + $0x13c] sm:$0xf]
      %v319 = vld [vmem:[%s223 + $0x140] sm:$0xf]
      %v320 = vld [vmem:[%s223 + $0x144] sm:$0xf]
      %v321 = vld [vmem:[%s223 + $0x148] sm:$0xf]
      %v322 = vld [vmem:[%s223 + $0x14c] sm:$0xf]
      %v323 = vld [vmem:[%s223 + $0x150] sm:$0xf]
      %v324 = vld [vmem:[%s223 + $0x154] sm:$0xf]
      %v325 = vld [vmem:[%s223 + $0x158] sm:$0xf]
      %v326 = vld [vmem:[%s223 + $0x15c] sm:$0xf]
      %v327 = vld [vmem:[%s223 + $0x160] sm:$0xf]
      %v328 = vld [vmem:[%s223 + $0x164] sm:$0xf]
      %v329 = vld [vmem:[%s223 + $0x168] sm:$0xf]
      %v330 = vld [vmem:[%s223 + $0x16c] sm:$0xf]
      %v331 = vld [vmem:[%s223 + $0x170] sm:$0xf]
      %v332 = vld [vmem:[%s223 + $0x174] sm:$0xf]
      %v333 = vld [vmem:[%s223 + $0x178] sm:$0xf]
      %v334 = vld [vmem:[%s223 + $0x17c] sm:$0xf]
      %v335 = vld [vmem:[%s223 + $0x180] sm:$0xf]
      %v336 = vld [vmem:[%s223 + $0x184] sm:$0xf]
      %v337 = vld [vmem:[%s223 + $0x188] sm:$0xf]
      %v338 = vld [vmem:[%s223 + $0x18c] sm:$0xf]
      %v339 = vld [vmem:[%s223 + $0x190] sm:$0xf]
      %v340 = vld [vmem:[%s223 + $0x194] sm:$0xf]
      %v341 = vld [vmem:[%s223 + $0x198] sm:$0xf]
      %v342 = vld [vmem:[%s223 + $0x19c] sm:$0xf]
      %v343 = vld [vmem:[%s223 + $0x1a0] sm:$0xf]
      %v344 = vld [vmem:[%s223 + $0x1a4] sm:$0xf]
      %v345 = vld [vmem:[%s223 + $0x1a8] sm:$0xf]
      %v346 = vld [vmem:[%s223 + $0x1ac] sm:$0xf]
      %v347 = vld [vmem:[%s223 + $0x1b0] sm:$0xf]
      %v348 = vld [vmem:[%s223 + $0x1b4] sm:$0xf]
      %v349 = vld [vmem:[%s223 + $0x1b8] sm:$0xf]
      %v350 = vld [vmem:[%s223 + $0x1bc] sm:$0xf]
      %v351 = vld [vmem:[%s223 + $0x1c0] sm:$0xf]
      %v352 = vld [vmem:[%s223 + $0x1c4] sm:$0xf]
      %v353 = vld [vmem:[%s223 + $0x1c8] sm:$0xf]
      %v354 = vld [vmem:[%s223 + $0x1cc] sm:$0xf]
      %v355 = vld [vmem:[%s223 + $0x1d0] sm:$0xf]
      %v356 = vld [vmem:[%s223 + $0x1d4] sm:$0xf]
      %v357 = vld [vmem:[%s223 + $0x1d8] sm:$0xf]
      %v358 = vld [vmem:[%s223 + $0x1dc] sm:$0xf]
      %v359 = vld [vmem:[%s223 + $0x1e0] sm:$0xf]
      %v360 = vld [vmem:[%s223 + $0x1e4] sm:$0xf]
      %v361 = vld [vmem:[%s223 + $0x1e8] sm:$0xf]
      %v362 = vld [vmem:[%s223 + $0x1ec] sm:$0xf]
      %v363 = vld [vmem:[%s223 + $0x1f0] sm:$0xf]
      %v364 = vld [vmem:[%s223 + $0x1f4] sm:$0xf]
      %v365 = vld [vmem:[%s223 + $0x1f8] sm:$0xf]
      %v366 = vld [vmem:[%s223 + $0x1fc] sm:$0xf]
      %v367 = vunpack.c.l.bf16 %v239
      %v368 = vunpack.c.l.bf16 %v240
      %v369 = vunpack.c.l.bf16 %v241
      %v370 = vunpack.c.l.bf16 %v242
      %v371 = vunpack.c.l.bf16 %v243
      %v372 = vunpack.c.l.bf16 %v244
      %v373 = vunpack.c.l.bf16 %v245
      %v374 = vunpack.c.l.bf16 %v246
      %v375 = vunpack.c.l.bf16 %v247
      %v376 = vunpack.c.l.bf16 %v248
      %v377 = vunpack.c.l.bf16 %v249
      %v378 = vunpack.c.l.bf16 %v250
      %v379 = vunpack.c.l.bf16 %v251
      %v380 = vunpack.c.l.bf16 %v252
      %v381 = vunpack.c.l.bf16 %v253
      %v382 = vunpack.c.l.bf16 %v254
      %v383 = vunpack.c.l.bf16 %v255
      %v384 = vunpack.c.l.bf16 %v256
      %v385 = vunpack.c.l.bf16 %v257
      %v386 = vunpack.c.l.bf16 %v258
      %v387 = vunpack.c.l.bf16 %v259
      %v388 = vunpack.c.l.bf16 %v260
      %v389 = vunpack.c.l.bf16 %v261
      %v390 = vunpack.c.l.bf16 %v262
      %v391 = vunpack.c.l.bf16 %v263
      %v392 = vunpack.c.l.bf16 %v264
      %v393 = vunpack.c.l.bf16 %v265
      %v394 = vunpack.c.l.bf16 %v266
      %v395 = vunpack.c.l.bf16 %v267
      %v396 = vunpack.c.l.bf16 %v268
      %v397 = vunpack.c.l.bf16 %v269
      %v398 = vunpack.c.l.bf16 %v270
      %v399 = vunpack.c.l.bf16 %v271
      %v400 = vunpack.c.l.bf16 %v272
      %v401 = vunpack.c.l.bf16 %v273
      %v402 = vunpack.c.l.bf16 %v274
      %v403 = vunpack.c.l.bf16 %v275
      %v404 = vunpack.c.l.bf16 %v276
      %v405 = vunpack.c.l.bf16 %v277
      %v406 = vunpack.c.l.bf16 %v278
      %v407 = vunpack.c.l.bf16 %v279
      %v408 = vunpack.c.l.bf16 %v280
      %v409 = vunpack.c.l.bf16 %v281
      %v410 = vunpack.c.l.bf16 %v282
      %v411 = vunpack.c.l.bf16 %v283
      %v412 = vunpack.c.l.bf16 %v284
      %v413 = vunpack.c.l.bf16 %v285
      %v414 = vunpack.c.l.bf16 %v286
      %v415 = vunpack.c.l.bf16 %v287
      %v416 = vunpack.c.l.bf16 %v288
      %v417 = vunpack.c.l.bf16 %v289
      %v418 = vunpack.c.l.bf16 %v290
      %v419 = vunpack.c.l.bf16 %v291
      %v420 = vunpack.c.l.bf16 %v292
      %v421 = vunpack.c.l.bf16 %v293
      %v422 = vunpack.c.l.bf16 %v294
      %v423 = vunpack.c.l.bf16 %v295
      %v424 = vunpack.c.l.bf16 %v296
      %v425 = vunpack.c.l.bf16 %v297
      %v426 = vunpack.c.l.bf16 %v298
      %v427 = vunpack.c.l.bf16 %v299
      %v428 = vunpack.c.l.bf16 %v300
      %v429 = vunpack.c.l.bf16 %v301
      %v430 = vunpack.c.l.bf16 %v302
      %v431 = vunpack.c.l.bf16 %v303
      %v432 = vunpack.c.l.bf16 %v304
      %v433 = vunpack.c.l.bf16 %v305
      %v434 = vunpack.c.l.bf16 %v306
      %v435 = vunpack.c.l.bf16 %v307
      %v436 = vunpack.c.l.bf16 %v308
      %v437 = vunpack.c.l.bf16 %v309
      %v438 = vunpack.c.l.bf16 %v310
      %v439 = vunpack.c.l.bf16 %v311
      %v440 = vunpack.c.l.bf16 %v312
      %v441 = vunpack.c.l.bf16 %v313
      %v442 = vunpack.c.l.bf16 %v314
      %v443 = vunpack.c.l.bf16 %v315
      %v444 = vunpack.c.l.bf16 %v316
      %v445 = vunpack.c.l.bf16 %v317
      %v446 = vunpack.c.l.bf16 %v318
      %v447 = vunpack.c.l.bf16 %v319
      %v448 = vunpack.c.l.bf16 %v320
      %v449 = vunpack.c.l.bf16 %v321
      %v450 = vunpack.c.l.bf16 %v322
      %v451 = vunpack.c.l.bf16 %v323
      %v452 = vunpack.c.l.bf16 %v324
      %v453 = vunpack.c.l.bf16 %v325
      %v454 = vunpack.c.l.bf16 %v326
      %v455 = vunpack.c.l.bf16 %v327
      %v456 = vunpack.c.l.bf16 %v328
      %v457 = vunpack.c.l.bf16 %v329
      %v458 = vunpack.c.l.bf16 %v330
      %v459 = vunpack.c.l.bf16 %v331
      %v460 = vunpack.c.l.bf16 %v332
      %v461 = vunpack.c.l.bf16 %v333
      %v462 = vunpack.c.l.bf16 %v334
      %v463 = vunpack.c.l.bf16 %v335
      %v464 = vunpack.c.l.bf16 %v336
      %v465 = vunpack.c.l.bf16 %v337
      %v466 = vunpack.c.l.bf16 %v338
      %v467 = vunpack.c.l.bf16 %v339
      %v468 = vunpack.c.l.bf16 %v340
      %v469 = vunpack.c.l.bf16 %v341
      %v470 = vunpack.c.l.bf16 %v342
      %v471 = vunpack.c.l.bf16 %v343
      %v472 = vunpack.c.l.bf16 %v344
      %v473 = vunpack.c.l.bf16 %v345
      %v474 = vunpack.c.l.bf16 %v346
      %v475 = vunpack.c.l.bf16 %v347
      %v476 = vunpack.c.l.bf16 %v348
      %v477 = vunpack.c.l.bf16 %v349
      %v478 = vunpack.c.l.bf16 %v350
      %v479 = vunpack.c.l.bf16 %v351
      %v480 = vunpack.c.l.bf16 %v352
      %v481 = vunpack.c.l.bf16 %v353
      %v482 = vunpack.c.l.bf16 %v354
      %v483 = vunpack.c.l.bf16 %v355
      %v484 = vunpack.c.l.bf16 %v356
      %v485 = vunpack.c.l.bf16 %v357
      %v486 = vunpack.c.l.bf16 %v358
      %v487 = vunpack.c.l.bf16 %v359
      %v488 = vunpack.c.l.bf16 %v360
      %v489 = vunpack.c.l.bf16 %v361
      %v490 = vunpack.c.l.bf16 %v362
      %v491 = vunpack.c.l.bf16 %v363
      %v492 = vunpack.c.l.bf16 %v364
      %v493 = vunpack.c.l.bf16 %v365
      %v494 = vunpack.c.l.bf16 %v366
      %v495 = vld [vmem:[%s1] sm:$0x1]
      %v497 = vperm.slane %v495, 0
      %v499 = vmul.f32 %v367, %v497
      %v500 = vmul.f32 %v368, %v497
      %v501 = vmul.f32 %v369, %v497
      %v502 = vmul.f32 %v370, %v497
      %v503 = vmul.f32 %v371, %v497
      %v504 = vmul.f32 %v372, %v497
      %v505 = vmul.f32 %v373, %v497
      %v506 = vmul.f32 %v374, %v497
      %v507 = vmul.f32 %v375, %v497
      %v508 = vmul.f32 %v376, %v497
      %v509 = vmul.f32 %v377, %v497
      %v510 = vmul.f32 %v378, %v497
      %v511 = vmul.f32 %v379, %v497
      %v512 = vmul.f32 %v380, %v497
      %v513 = vmul.f32 %v381, %v497
      %v514 = vmul.f32 %v382, %v497
      %v515 = vmul.f32 %v383, %v497
      %v516 = vmul.f32 %v384, %v497
      %v517 = vmul.f32 %v385, %v497
      %v518 = vmul.f32 %v386, %v497
      %v519 = vmul.f32 %v387, %v497
      %v520 = vmul.f32 %v388, %v497
      %v521 = vmul.f32 %v389, %v497
      %v522 = vmul.f32 %v390, %v497
      %v523 = vmul.f32 %v391, %v497
      %v524 = vmul.f32 %v392, %v497
      %v525 = vmul.f32 %v393, %v497
      %v526 = vmul.f32 %v394, %v497
      %v527 = vmul.f32 %v395, %v497
      %v528 = vmul.f32 %v396, %v497
      %v529 = vmul.f32 %v397, %v497
      %v530 = vmul.f32 %v398, %v497
      %v531 = vmul.f32 %v399, %v497
      %v532 = vmul.f32 %v400, %v497
      %v533 = vmul.f32 %v401, %v497
      %v534 = vmul.f32 %v402, %v497
      %v535 = vmul.f32 %v403, %v497
      %v536 = vmul.f32 %v404, %v497
      %v537 = vmul.f32 %v405, %v497
      %v538 = vmul.f32 %v406, %v497
      %v539 = vmul.f32 %v407, %v497
      %v540 = vmul.f32 %v408, %v497
      %v541 = vmul.f32 %v409, %v497
      %v542 = vmul.f32 %v410, %v497
      %v543 = vmul.f32 %v411, %v497
      %v544 = vmul.f32 %v412, %v497
      %v545 = vmul.f32 %v413, %v497
      %v546 = vmul.f32 %v414, %v497
      %v547 = vmul.f32 %v415, %v497
      %v548 = vmul.f32 %v416, %v497
      %v549 = vmul.f32 %v417, %v497
      %v550 = vmul.f32 %v418, %v497
      %v551 = vmul.f32 %v419, %v497
      %v552 = vmul.f32 %v420, %v497
      %v553 = vmul.f32 %v421, %v497
      %v554 = vmul.f32 %v422, %v497
      %v555 = vmul.f32 %v423, %v497
      %v556 = vmul.f32 %v424, %v497
      %v557 = vmul.f32 %v425, %v497
      %v558 = vmul.f32 %v426, %v497
      %v559 = vmul.f32 %v427, %v497
      %v560 = vmul.f32 %v428, %v497
      %v561 = vmul.f32 %v429, %v497
      %v562 = vmul.f32 %v430, %v497
      %v563 = vmul.f32 %v431, %v497
      %v564 = vmul.f32 %v432, %v497
      %v565 = vmul.f32 %v433, %v497
      %v566 = vmul.f32 %v434, %v497
      %v567 = vmul.f32 %v435, %v497
      %v568 = vmul.f32 %v436, %v497
      %v569 = vmul.f32 %v437, %v497
      %v570 = vmul.f32 %v438, %v497
      %v571 = vmul.f32 %v439, %v497
      %v572 = vmul.f32 %v440, %v497
      %v573 = vmul.f32 %v441, %v497
      %v574 = vmul.f32 %v442, %v497
      %v575 = vmul.f32 %v443, %v497
      %v576 = vmul.f32 %v444, %v497
      %v577 = vmul.f32 %v445, %v497
      %v578 = vmul.f32 %v446, %v497
      %v579 = vmul.f32 %v447, %v497
      %v580 = vmul.f32 %v448, %v497
      %v581 = vmul.f32 %v449, %v497
      %v582 = vmul.f32 %v450, %v497
      %v583 = vmul.f32 %v451, %v497
      %v584 = vmul.f32 %v452, %v497
      %v585 = vmul.f32 %v453, %v497
      %v586 = vmul.f32 %v454, %v497
      %v587 = vmul.f32 %v455, %v497
      %v588 = vmul.f32 %v456, %v497
      %v589 = vmul.f32 %v457, %v497
      %v590 = vmul.f32 %v458, %v497
      %v591 = vmul.f32 %v459, %v497
      %v592 = vmul.f32 %v460, %v497
      %v593 = vmul.f32 %v461, %v497
      %v594 = vmul.f32 %v462, %v497
      %v595 = vmul.f32 %v463, %v497
      %v596 = vmul.f32 %v464, %v497
      %v597 = vmul.f32 %v465, %v497
      %v598 = vmul.f32 %v466, %v497
      %v599 = vmul.f32 %v467, %v497
      %v600 = vmul.f32 %v468, %v497
      %v601 = vmul.f32 %v469, %v497
      %v602 = vmul.f32 %v470, %v497
      %v603 = vmul.f32 %v471, %v497
      %v604 = vmul.f32 %v472, %v497
      %v605 = vmul.f32 %v473, %v497
      %v606 = vmul.f32 %v474, %v497
      %v607 = vmul.f32 %v475, %v497
      %v608 = vmul.f32 %v476, %v497
      %v609 = vmul.f32 %v477, %v497
      %v610 = vmul.f32 %v478, %v497
      %v611 = vmul.f32 %v479, %v497
      %v612 = vmul.f32 %v480, %v497
      %v613 = vmul.f32 %v481, %v497
      %v614 = vmul.f32 %v482, %v497
      %v615 = vmul.f32 %v483, %v497
      %v616 = vmul.f32 %v484, %v497
      %v617 = vmul.f32 %v485, %v497
      %v618 = vmul.f32 %v486, %v497
      %v619 = vmul.f32 %v487, %v497
      %v620 = vmul.f32 %v488, %v497
      %v621 = vmul.f32 %v489, %v497
      %v622 = vmul.f32 %v490, %v497
      %v623 = vmul.f32 %v491, %v497
      %v624 = vmul.f32 %v492, %v497
      %v625 = vmul.f32 %v493, %v497
      %v626 = vmul.f32 %v494, %v497
      %v627 = vld [vmem:[%s2] sm:$0x1]
      %v629 = vperm.slane %v627, 0
      %v631 = vadd.f32 %v499, %v629
      %v632 = vadd.f32 %v500, %v629
      %v633 = vadd.f32 %v501, %v629
      %v634 = vadd.f32 %v502, %v629
      %v635 = vadd.f32 %v503, %v629
      %v636 = vadd.f32 %v504, %v629
      %v637 = vadd.f32 %v505, %v629
      %v638 = vadd.f32 %v506, %v629
      %v639 = vadd.f32 %v507, %v629
      %v640 = vadd.f32 %v508, %v629
      %v641 = vadd.f32 %v509, %v629
      %v642 = vadd.f32 %v510, %v629
      %v643 = vadd.f32 %v511, %v629
      %v644 = vadd.f32 %v512, %v629
      %v645 = vadd.f32 %v513, %v629
      %v646 = vadd.f32 %v514, %v629
      %v647 = vadd.f32 %v515, %v629
      %v648 = vadd.f32 %v516, %v629
      %v649 = vadd.f32 %v517, %v629
      %v650 = vadd.f32 %v518, %v629
      %v651 = vadd.f32 %v519, %v629
      %v652 = vadd.f32 %v520, %v629
      %v653 = vadd.f32 %v521, %v629
      %v654 = vadd.f32 %v522, %v629
      %v655 = vadd.f32 %v523, %v629
      %v656 = vadd.f32 %v524, %v629
      %v657 = vadd.f32 %v525, %v629
      %v658 = vadd.f32 %v526, %v629
      %v659 = vadd.f32 %v527, %v629
      %v660 = vadd.f32 %v528, %v629
      %v661 = vadd.f32 %v529, %v629
      %v662 = vadd.f32 %v530, %v629
      %v663 = vadd.f32 %v531, %v629
      %v664 = vadd.f32 %v532, %v629
      %v665 = vadd.f32 %v533, %v629
      %v666 = vadd.f32 %v534, %v629
      %v667 = vadd.f32 %v535, %v629
      %v668 = vadd.f32 %v536, %v629
      %v669 = vadd.f32 %v537, %v629
      %v670 = vadd.f32 %v538, %v629
      %v671 = vadd.f32 %v539, %v629
      %v672 = vadd.f32 %v540, %v629
      %v673 = vadd.f32 %v541, %v629
      %v674 = vadd.f32 %v542, %v629
      %v675 = vadd.f32 %v543, %v629
      %v676 = vadd.f32 %v544, %v629
      %v677 = vadd.f32 %v545, %v629
      %v678 = vadd.f32 %v546, %v629
      %v679 = vadd.f32 %v547, %v629
      %v680 = vadd.f32 %v548, %v629
      %v681 = vadd.f32 %v549, %v629
      %v682 = vadd.f32 %v550, %v629
      %v683 = vadd.f32 %v551, %v629
      %v684 = vadd.f32 %v552, %v629
      %v685 = vadd.f32 %v553, %v629
      %v686 = vadd.f32 %v554, %v629
      %v687 = vadd.f32 %v555, %v629
      %v688 = vadd.f32 %v556, %v629
      %v689 = vadd.f32 %v557, %v629
      %v690 = vadd.f32 %v558, %v629
      %v691 = vadd.f32 %v559, %v629
      %v692 = vadd.f32 %v560, %v629
      %v693 = vadd.f32 %v561, %v629
      %v694 = vadd.f32 %v562, %v629
      %v695 = vadd.f32 %v563, %v629
      %v696 = vadd.f32 %v564, %v629
      %v697 = vadd.f32 %v565, %v629
      %v698 = vadd.f32 %v566, %v629
      %v699 = vadd.f32 %v567, %v629
      %v700 = vadd.f32 %v568, %v629
      %v701 = vadd.f32 %v569, %v629
      %v702 = vadd.f32 %v570, %v629
      %v703 = vadd.f32 %v571, %v629
      %v704 = vadd.f32 %v572, %v629
      %v705 = vadd.f32 %v573, %v629
      %v706 = vadd.f32 %v574, %v629
      %v707 = vadd.f32 %v575, %v629
      %v708 = vadd.f32 %v576, %v629
      %v709 = vadd.f32 %v577, %v629
      %v710 = vadd.f32 %v578, %v629
      %v711 = vadd.f32 %v579, %v629
      %v712 = vadd.f32 %v580, %v629
      %v713 = vadd.f32 %v581, %v629
      %v714 = vadd.f32 %v582, %v629
      %v715 = vadd.f32 %v583, %v629
      %v716 = vadd.f32 %v584, %v629
      %v717 = vadd.f32 %v585, %v629
      %v718 = vadd.f32 %v586, %v629
      %v719 = vadd.f32 %v587, %v629
      %v720 = vadd.f32 %v588, %v629
      %v721 = vadd.f32 %v589, %v629
      %v722 = vadd.f32 %v590, %v629
      %v723 = vadd.f32 %v591, %v629
      %v724 = vadd.f32 %v592, %v629
      %v725 = vadd.f32 %v593, %v629
      %v726 = vadd.f32 %v594, %v629
      %v727 = vadd.f32 %v595, %v629
      %v728 = vadd.f32 %v596, %v629
      %v729 = vadd.f32 %v597, %v629
      %v730 = vadd.f32 %v598, %v629
      %v731 = vadd.f32 %v599, %v629
      %v732 = vadd.f32 %v600, %v629
      %v733 = vadd.f32 %v601, %v629
      %v734 = vadd.f32 %v602, %v629
      %v735 = vadd.f32 %v603, %v629
      %v736 = vadd.f32 %v604, %v629
      %v737 = vadd.f32 %v605, %v629
      %v738 = vadd.f32 %v606, %v629
      %v739 = vadd.f32 %v607, %v629
      %v740 = vadd.f32 %v608, %v629
      %v741 = vadd.f32 %v609, %v629
      %v742 = vadd.f32 %v610, %v629
      %v743 = vadd.f32 %v611, %v629
      %v744 = vadd.f32 %v612, %v629
      %v745 = vadd.f32 %v613, %v629
      %v746 = vadd.f32 %v614, %v629
      %v747 = vadd.f32 %v615, %v629
      %v748 = vadd.f32 %v616, %v629
      %v749 = vadd.f32 %v617, %v629
      %v750 = vadd.f32 %v618, %v629
      %v751 = vadd.f32 %v619, %v629
      %v752 = vadd.f32 %v620, %v629
      %v753 = vadd.f32 %v621, %v629
      %v754 = vadd.f32 %v622, %v629
      %v755 = vadd.f32 %v623, %v629
      %v756 = vadd.f32 %v624, %v629
      %v757 = vadd.f32 %v625, %v629
      %v758 = vadd.f32 %v626, %v629
      %v759 = vmax.f32 %v631, 0.0
      %v760 = vmax.f32 %v632, 0.0
      %v761 = vmax.f32 %v633, 0.0
      %v762 = vmax.f32 %v634, 0.0
      %v763 = vmax.f32 %v635, 0.0
      %v764 = vmax.f32 %v636, 0.0
      %v765 = vmax.f32 %v637, 0.0
      %v766 = vmax.f32 %v638, 0.0
      %v767 = vmax.f32 %v639, 0.0
      %v768 = vmax.f32 %v640, 0.0
      %v769 = vmax.f32 %v641, 0.0
      %v770 = vmax.f32 %v642, 0.0
      %v771 = vmax.f32 %v643, 0.0
      %v772 = vmax.f32 %v644, 0.0
      %v773 = vmax.f32 %v645, 0.0
      %v774 = vmax.f32 %v646, 0.0
      %v775 = vmax.f32 %v647, 0.0
      %v776 = vmax.f32 %v648, 0.0
      %v777 = vmax.f32 %v649, 0.0
      %v778 = vmax.f32 %v650, 0.0
      %v779 = vmax.f32 %v651, 0.0
      %v780 = vmax.f32 %v652, 0.0
      %v781 = vmax.f32 %v653, 0.0
      %v782 = vmax.f32 %v654, 0.0
      %v783 = vmax.f32 %v655, 0.0
      %v784 = vmax.f32 %v656, 0.0
      %v785 = vmax.f32 %v657, 0.0
      %v786 = vmax.f32 %v658, 0.0
      %v787 = vmax.f32 %v659, 0.0
      %v788 = vmax.f32 %v660, 0.0
      %v789 = vmax.f32 %v661, 0.0
      %v790 = vmax.f32 %v662, 0.0
      %v791 = vmax.f32 %v663, 0.0
      %v792 = vmax.f32 %v664, 0.0
      %v793 = vmax.f32 %v665, 0.0
      %v794 = vmax.f32 %v666, 0.0
      %v795 = vmax.f32 %v667, 0.0
      %v796 = vmax.f32 %v668, 0.0
      %v797 = vmax.f32 %v669, 0.0
      %v798 = vmax.f32 %v670, 0.0
      %v799 = vmax.f32 %v671, 0.0
      %v800 = vmax.f32 %v672, 0.0
      %v801 = vmax.f32 %v673, 0.0
      %v802 = vmax.f32 %v674, 0.0
      %v803 = vmax.f32 %v675, 0.0
      %v804 = vmax.f32 %v676, 0.0
      %v805 = vmax.f32 %v677, 0.0
      %v806 = vmax.f32 %v678, 0.0
      %v807 = vmax.f32 %v679, 0.0
      %v808 = vmax.f32 %v680, 0.0
      %v809 = vmax.f32 %v681, 0.0
      %v810 = vmax.f32 %v682, 0.0
      %v811 = vmax.f32 %v683, 0.0
      %v812 = vmax.f32 %v684, 0.0
      %v813 = vmax.f32 %v685, 0.0
      %v814 = vmax.f32 %v686, 0.0
      %v815 = vmax.f32 %v687, 0.0
      %v816 = vmax.f32 %v688, 0.0
      %v817 = vmax.f32 %v689, 0.0
      %v818 = vmax.f32 %v690, 0.0
      %v819 = vmax.f32 %v691, 0.0
      %v820 = vmax.f32 %v692, 0.0
      %v821 = vmax.f32 %v693, 0.0
      %v822 = vmax.f32 %v694, 0.0
      %v823 = vmax.f32 %v695, 0.0
      %v824 = vmax.f32 %v696, 0.0
      %v825 = vmax.f32 %v697, 0.0
      %v826 = vmax.f32 %v698, 0.0
      %v827 = vmax.f32 %v699, 0.0
      %v828 = vmax.f32 %v700, 0.0
      %v829 = vmax.f32 %v701, 0.0
      %v830 = vmax.f32 %v702, 0.0
      %v831 = vmax.f32 %v703, 0.0
      %v832 = vmax.f32 %v704, 0.0
      %v833 = vmax.f32 %v705, 0.0
      %v834 = vmax.f32 %v706, 0.0
      %v835 = vmax.f32 %v707, 0.0
      %v836 = vmax.f32 %v708, 0.0
      %v837 = vmax.f32 %v709, 0.0
      %v838 = vmax.f32 %v710, 0.0
      %v839 = vmax.f32 %v711, 0.0
      %v840 = vmax.f32 %v712, 0.0
      %v841 = vmax.f32 %v713, 0.0
      %v842 = vmax.f32 %v714, 0.0
      %v843 = vmax.f32 %v715, 0.0
      %v844 = vmax.f32 %v716, 0.0
      %v845 = vmax.f32 %v717, 0.0
      %v846 = vmax.f32 %v718, 0.0
      %v847 = vmax.f32 %v719, 0.0
      %v848 = vmax.f32 %v720, 0.0
      %v849 = vmax.f32 %v721, 0.0
      %v850 = vmax.f32 %v722, 0.0
      %v851 = vmax.f32 %v723, 0.0
      %v852 = vmax.f32 %v724, 0.0
      %v853 = vmax.f32 %v725, 0.0
      %v854 = vmax.f32 %v726, 0.0
      %v855 = vmax.f32 %v727, 0.0
      %v856 = vmax.f32 %v728, 0.0
      %v857 = vmax.f32 %v729, 0.0
      %v858 = vmax.f32 %v730, 0.0
      %v859 = vmax.f32 %v731, 0.0
      %v860 = vmax.f32 %v732, 0.0
      %v861 = vmax.f32 %v733, 0.0
      %v862 = vmax.f32 %v734, 0.0
      %v863 = vmax.f32 %v735, 0.0
      %v864 = vmax.f32 %v736, 0.0
      %v865 = vmax.f32 %v737, 0.0
      %v866 = vmax.f32 %v738, 0.0
      %v867 = vmax.f32 %v739, 0.0
      %v868 = vmax.f32 %v740, 0.0
      %v869 = vmax.f32 %v741, 0.0
      %v870 = vmax.f32 %v742, 0.0
      %v871 = vmax.f32 %v743, 0.0
      %v872 = vmax.f32 %v744, 0.0
      %v873 = vmax.f32 %v745, 0.0
      %v874 = vmax.f32 %v746, 0.0
      %v875 = vmax.f32 %v747, 0.0
      %v876 = vmax.f32 %v748, 0.0
      %v877 = vmax.f32 %v749, 0.0
      %v878 = vmax.f32 %v750, 0.0
      %v879 = vmax.f32 %v751, 0.0
      %v880 = vmax.f32 %v752, 0.0
      %v881 = vmax.f32 %v753, 0.0
      %v882 = vmax.f32 %v754, 0.0
      %v883 = vmax.f32 %v755, 0.0
      %v884 = vmax.f32 %v756, 0.0
      %v885 = vmax.f32 %v757, 0.0
      %v886 = vmax.f32 %v758, 0.0
      %v887 = vpack.c.bf16 %v760, %v759
      %v888 = vpack.c.bf16 %v762, %v761
      %v889 = vpack.c.bf16 %v764, %v763
      %v890 = vpack.c.bf16 %v766, %v765
      %v891 = vpack.c.bf16 %v768, %v767
      %v892 = vpack.c.bf16 %v770, %v769
      %v893 = vpack.c.bf16 %v772, %v771
      %v894 = vpack.c.bf16 %v774, %v773
      %v895 = vpack.c.bf16 %v776, %v775
      %v896 = vpack.c.bf16 %v778, %v777
      %v897 = vpack.c.bf16 %v780, %v779
      %v898 = vpack.c.bf16 %v782, %v781
      %v899 = vpack.c.bf16 %v784, %v783
      %v900 = vpack.c.bf16 %v786, %v785
      %v901 = vpack.c.bf16 %v788, %v787
      %v902 = vpack.c.bf16 %v790, %v789
      %v903 = vpack.c.bf16 %v792, %v791
      %v904 = vpack.c.bf16 %v794, %v793
      %v905 = vpack.c.bf16 %v796, %v795
      %v906 = vpack.c.bf16 %v798, %v797
      %v907 = vpack.c.bf16 %v800, %v799
      %v908 = vpack.c.bf16 %v802, %v801
      %v909 = vpack.c.bf16 %v804, %v803
      %v910 = vpack.c.bf16 %v806, %v805
      %v911 = vpack.c.bf16 %v808, %v807
      %v912 = vpack.c.bf16 %v810, %v809
      %v913 = vpack.c.bf16 %v812, %v811
      %v914 = vpack.c.bf16 %v814, %v813
      %v915 = vpack.c.bf16 %v816, %v815
      %v916 = vpack.c.bf16 %v818, %v817
      %v917 = vpack.c.bf16 %v820, %v819
      %v918 = vpack.c.bf16 %v822, %v821
      %v919 = vpack.c.bf16 %v824, %v823
      %v920 = vpack.c.bf16 %v826, %v825
      %v921 = vpack.c.bf16 %v828, %v827
      %v922 = vpack.c.bf16 %v830, %v829
      %v923 = vpack.c.bf16 %v832, %v831
      %v924 = vpack.c.bf16 %v834, %v833
      %v925 = vpack.c.bf16 %v836, %v835
      %v926 = vpack.c.bf16 %v838, %v837
      %v927 = vpack.c.bf16 %v840, %v839
      %v928 = vpack.c.bf16 %v842, %v841
      %v929 = vpack.c.bf16 %v844, %v843
      %v930 = vpack.c.bf16 %v846, %v845
      %v931 = vpack.c.bf16 %v848, %v847
      %v932 = vpack.c.bf16 %v850, %v849
      %v933 = vpack.c.bf16 %v852, %v851
      %v934 = vpack.c.bf16 %v854, %v853
      %v935 = vpack.c.bf16 %v856, %v855
      %v936 = vpack.c.bf16 %v858, %v857
      %v937 = vpack.c.bf16 %v860, %v859
      %v938 = vpack.c.bf16 %v862, %v861
      %v939 = vpack.c.bf16 %v864, %v863
      %v940 = vpack.c.bf16 %v866, %v865
      %v941 = vpack.c.bf16 %v868, %v867
      %v942 = vpack.c.bf16 %v870, %v869
      %v943 = vpack.c.bf16 %v872, %v871
      %v944 = vpack.c.bf16 %v874, %v873
      %v945 = vpack.c.bf16 %v876, %v875
      %v946 = vpack.c.bf16 %v878, %v877
      %v947 = vpack.c.bf16 %v880, %v879
      %v948 = vpack.c.bf16 %v882, %v881
      %v949 = vpack.c.bf16 %v884, %v883
      %v950 = vpack.c.bf16 %v886, %v885
      %v951 = vld [vmem:[%s228] sm:$0xf]
      %vm952 = vcmask 64512
      %v954 = vsel %vm952, %v887, 0
      %v957 = vsel %vm952, %v888, 0
      %v960 = vsel %vm952, %v889, 0
      %v963 = vsel %vm952, %v890, 0
      %v966 = vsel %vm952, %v891, 0
      %v969 = vsel %vm952, %v892, 0
      %v972 = vsel %vm952, %v893, 0
      %v975 = vsel %vm952, %v894, 0
      %v978 = vsel %vm952, %v895, 0
      %v981 = vsel %vm952, %v896, 0
      %v984 = vsel %vm952, %v897, 0
      %v987 = vsel %vm952, %v898, 0
      %v990 = vsel %vm952, %v899, 0
      %v993 = vsel %vm952, %v900, 0
      %v996 = vsel %vm952, %v901, 0
      %v999 = vsel %vm952, %v902, 0
      %v1002 = vsel %vm952, %v903, 0
      %v1005 = vsel %vm952, %v904, 0
      %v1008 = vsel %vm952, %v905, 0
      %v1011 = vsel %vm952, %v906, 0
      %v1014 = vsel %vm952, %v907, 0
      %v1017 = vsel %vm952, %v908, 0
      %v1020 = vsel %vm952, %v909, 0
      %v1023 = vsel %vm952, %v910, 0
      %v1026 = vsel %vm952, %v911, 0
      %v1029 = vsel %vm952, %v912, 0
      %v1032 = vsel %vm952, %v913, 0
      %v1035 = vsel %vm952, %v914, 0
      %v1038 = vsel %vm952, %v915, 0
      %v1041 = vsel %vm952, %v916, 0
      %v1044 = vsel %vm952, %v917, 0
      %v1047 = vsel %vm952, %v918, 0
      %v1050 = vsel %vm952, %v919, 0
      %v1053 = vsel %vm952, %v920, 0
      %v1056 = vsel %vm952, %v921, 0
      %v1059 = vsel %vm952, %v922, 0
      %v1062 = vsel %vm952, %v923, 0
      %v1065 = vsel %vm952, %v924, 0
      %v1068 = vsel %vm952, %v925, 0
      %v1071 = vsel %vm952, %v926, 0
      %v1074 = vsel %vm952, %v927, 0
      %v1077 = vsel %vm952, %v928, 0
      %v1080 = vsel %vm952, %v929, 0
      %v1083 = vsel %vm952, %v930, 0
      %v1086 = vsel %vm952, %v931, 0
      %v1089 = vsel %vm952, %v932, 0
      %v1092 = vsel %vm952, %v933, 0
      %v1095 = vsel %vm952, %v934, 0
      %v1098 = vsel %vm952, %v935, 0
      %v1101 = vsel %vm952, %v936, 0
      %v1104 = vsel %vm952, %v937, 0
      %v1107 = vsel %vm952, %v938, 0
      %v1110 = vsel %vm952, %v939, 0
      %v1113 = vsel %vm952, %v940, 0
      %v1116 = vsel %vm952, %v941, 0
      %v1119 = vsel %vm952, %v942, 0
      %v1122 = vsel %vm952, %v943, 0
      %v1125 = vsel %vm952, %v944, 0
      %v1128 = vsel %vm952, %v945, 0
      %v1131 = vsel %vm952, %v946, 0
      %v1134 = vsel %vm952, %v947, 0
      %v1137 = vsel %vm952, %v948, 0
      %v1140 = vsel %vm952, %v949, 0
      %v1143 = vsel %vm952, %v950, 0
      %vm1145 = vcmask 1043456
      %v1147 = vsel %vm1145, %v951, 0
      %1149 = vmatpush.bf16.msra.mxu0 0
      %1150 = vmatpush.bf16.msra.mxu0 0
      %1151 = vmatpush.bf16.msra.mxu0 0
      %1152 = vmatpush.bf16.msra.mxu0 0
      %1153 = vmatpush.bf16.msra.mxu0 0
      %1154 = vmatpush.bf16.msra.mxu0 0
      %1155 = vmatpush.bf16.msra.mxu0 0
      %1156 = vmatpush.bf16.msra.mxu0 %v1147
      %1157 = vmatmul.bf16.gmra.mxu0 %v954
      %v1158 = vpop.f32.mrf.mxu0
      %v1159 = vadd.f32 0.0, %v1158
      %v1160 = vpop.f32.mrf.mxu0
      %v1161 = vadd.f32 0.0, %v1160
      %1162 = vmatmul.bf16.gmra.mxu0 %v957
      %v1163 = vpop.f32.mrf.mxu0
      %v1164 = vadd.f32 0.0, %v1163
      %v1165 = vpop.f32.mrf.mxu0
      %v1166 = vadd.f32 0.0, %v1165
      %1167 = vmatmul.bf16.gmra.mxu0 %v960
      %v1168 = vpop.f32.mrf.mxu0
      %v1169 = vadd.f32 0.0, %v1168
      %v1170 = vpop.f32.mrf.mxu0
      %v1171 = vadd.f32 0.0, %v1170
      %1172 = vmatmul.bf16.gmra.mxu0 %v963
      %v1173 = vpop.f32.mrf.mxu0
      %v1174 = vadd.f32 0.0, %v1173
      %v1175 = vpop.f32.mrf.mxu0
      %v1176 = vadd.f32 0.0, %v1175
      %1177 = vmatmul.bf16.gmra.mxu0 %v966
      %v1178 = vpop.f32.mrf.mxu0
      %v1179 = vadd.f32 0.0, %v1178
      %v1180 = vpop.f32.mrf.mxu0
      %v1181 = vadd.f32 0.0, %v1180
      %1182 = vmatmul.bf16.gmra.mxu0 %v969
      %v1183 = vpop.f32.mrf.mxu0
      %v1184 = vadd.f32 0.0, %v1183
      %v1185 = vpop.f32.mrf.mxu0
      %v1186 = vadd.f32 0.0, %v1185
      %1187 = vmatmul.bf16.gmra.mxu0 %v972
      %v1188 = vpop.f32.mrf.mxu0
      %v1189 = vadd.f32 0.0, %v1188
      %v1190 = vpop.f32.mrf.mxu0
      %v1191 = vadd.f32 0.0, %v1190
      %1192 = vmatmul.bf16.gmra.mxu0 %v975
      %v1193 = vpop.f32.mrf.mxu0
      %v1194 = vadd.f32 0.0, %v1193
      %v1195 = vpop.f32.mrf.mxu0
      %v1196 = vadd.f32 0.0, %v1195
      %1197 = vmatmul.bf16.gmra.mxu0 %v978
      %v1198 = vpop.f32.mrf.mxu0
      %v1199 = vadd.f32 0.0, %v1198
      %v1200 = vpop.f32.mrf.mxu0
      %v1201 = vadd.f32 0.0, %v1200
      %1202 = vmatmul.bf16.gmra.mxu0 %v981
      %v1203 = vpop.f32.mrf.mxu0
      %v1204 = vadd.f32 0.0, %v1203
      %v1205 = vpop.f32.mrf.mxu0
      %v1206 = vadd.f32 0.0, %v1205
      %1207 = vmatmul.bf16.gmra.mxu0 %v984
      %v1208 = vpop.f32.mrf.mxu0
      %v1209 = vadd.f32 0.0, %v1208
      %v1210 = vpop.f32.mrf.mxu0
      %v1211 = vadd.f32 0.0, %v1210
      %1212 = vmatmul.bf16.gmra.mxu0 %v987
      %v1213 = vpop.f32.mrf.mxu0
      %v1214 = vadd.f32 0.0, %v1213
      %v1215 = vpop.f32.mrf.mxu0
      %v1216 = vadd.f32 0.0, %v1215
      %1217 = vmatmul.bf16.gmra.mxu0 %v990
      %v1218 = vpop.f32.mrf.mxu0
      %v1219 = vadd.f32 0.0, %v1218
      %v1220 = vpop.f32.mrf.mxu0
      %v1221 = vadd.f32 0.0, %v1220
      %1222 = vmatmul.bf16.gmra.mxu0 %v993
      %v1223 = vpop.f32.mrf.mxu0
      %v1224 = vadd.f32 0.0, %v1223
      %v1225 = vpop.f32.mrf.mxu0
      %v1226 = vadd.f32 0.0, %v1225
      %1227 = vmatmul.bf16.gmra.mxu0 %v996
      %v1228 = vpop.f32.mrf.mxu0
      %v1229 = vadd.f32 0.0, %v1228
      %v1230 = vpop.f32.mrf.mxu0
      %v1231 = vadd.f32 0.0, %v1230
      %1232 = vmatmul.bf16.gmra.mxu0 %v999
      %v1233 = vpop.f32.mrf.mxu0
      %v1234 = vadd.f32 0.0, %v1233
      %v1235 = vpop.f32.mrf.mxu0
      %v1236 = vadd.f32 0.0, %v1235
      %1237 = vmatmul.bf16.gmra.mxu0 %v1002
      %v1238 = vpop.f32.mrf.mxu0
      %v1239 = vadd.f32 0.0, %v1238
      %v1240 = vpop.f32.mrf.mxu0
      %v1241 = vadd.f32 0.0, %v1240
      %1242 = vmatmul.bf16.gmra.mxu0 %v1005
      %v1243 = vpop.f32.mrf.mxu0
      %v1244 = vadd.f32 0.0, %v1243
      %v1245 = vpop.f32.mrf.mxu0
      %v1246 = vadd.f32 0.0, %v1245
      %1247 = vmatmul.bf16.gmra.mxu0 %v1008
      %v1248 = vpop.f32.mrf.mxu0
      %v1249 = vadd.f32 0.0, %v1248
      %v1250 = vpop.f32.mrf.mxu0
      %v1251 = vadd.f32 0.0, %v1250
      %1252 = vmatmul.bf16.gmra.mxu0 %v1011
      %v1253 = vpop.f32.mrf.mxu0
      %v1254 = vadd.f32 0.0, %v1253
      %v1255 = vpop.f32.mrf.mxu0
      %v1256 = vadd.f32 0.0, %v1255
      %1257 = vmatmul.bf16.gmra.mxu0 %v1014
      %v1258 = vpop.f32.mrf.mxu0
      %v1259 = vadd.f32 0.0, %v1258
      %v1260 = vpop.f32.mrf.mxu0
      %v1261 = vadd.f32 0.0, %v1260
      %1262 = vmatmul.bf16.gmra.mxu0 %v1017
      %v1263 = vpop.f32.mrf.mxu0
      %v1264 = vadd.f32 0.0, %v1263
      %v1265 = vpop.f32.mrf.mxu0
      %v1266 = vadd.f32 0.0, %v1265
      %1267 = vmatmul.bf16.gmra.mxu0 %v1020
      %v1268 = vpop.f32.mrf.mxu0
      %v1269 = vadd.f32 0.0, %v1268
      %v1270 = vpop.f32.mrf.mxu0
      %v1271 = vadd.f32 0.0, %v1270
      %1272 = vmatmul.bf16.gmra.mxu0 %v1023
      %v1273 = vpop.f32.mrf.mxu0
      %v1274 = vadd.f32 0.0, %v1273
      %v1275 = vpop.f32.mrf.mxu0
      %v1276 = vadd.f32 0.0, %v1275
      %1277 = vmatmul.bf16.gmra.mxu0 %v1026
      %v1278 = vpop.f32.mrf.mxu0
      %v1279 = vadd.f32 0.0, %v1278
      %v1280 = vpop.f32.mrf.mxu0
      %v1281 = vadd.f32 0.0, %v1280
      %1282 = vmatmul.bf16.gmra.mxu0 %v1029
      %v1283 = vpop.f32.mrf.mxu0
      %v1284 = vadd.f32 0.0, %v1283
      %v1285 = vpop.f32.mrf.mxu0
      %v1286 = vadd.f32 0.0, %v1285
      %1287 = vmatmul.bf16.gmra.mxu0 %v1032
      %v1288 = vpop.f32.mrf.mxu0
      %v1289 = vadd.f32 0.0, %v1288
      %v1290 = vpop.f32.mrf.mxu0
      %v1291 = vadd.f32 0.0, %v1290
      %1292 = vmatmul.bf16.gmra.mxu0 %v1035
      %v1293 = vpop.f32.mrf.mxu0
      %v1294 = vadd.f32 0.0, %v1293
      %v1295 = vpop.f32.mrf.mxu0
      %v1296 = vadd.f32 0.0, %v1295
      %1297 = vmatmul.bf16.gmra.mxu0 %v1038
      %v1298 = vpop.f32.mrf.mxu0
      %v1299 = vadd.f32 0.0, %v1298
      %v1300 = vpop.f32.mrf.mxu0
      %v1301 = vadd.f32 0.0, %v1300
      %1302 = vmatmul.bf16.gmra.mxu0 %v1041
      %v1303 = vpop.f32.mrf.mxu0
      %v1304 = vadd.f32 0.0, %v1303
      %v1305 = vpop.f32.mrf.mxu0
      %v1306 = vadd.f32 0.0, %v1305
      %1307 = vmatmul.bf16.gmra.mxu0 %v1044
      %v1308 = vpop.f32.mrf.mxu0
      %v1309 = vadd.f32 0.0, %v1308
      %v1310 = vpop.f32.mrf.mxu0
      %v1311 = vadd.f32 0.0, %v1310
      %1312 = vmatmul.bf16.gmra.mxu0 %v1047
      %v1313 = vpop.f32.mrf.mxu0
      %v1314 = vadd.f32 0.0, %v1313
      %v1315 = vpop.f32.mrf.mxu0
      %v1316 = vadd.f32 0.0, %v1315
      %1317 = vmatmul.bf16.gmra.mxu0 %v1050
      %v1318 = vpop.f32.mrf.mxu0
      %v1319 = vadd.f32 0.0, %v1318
      %v1320 = vpop.f32.mrf.mxu0
      %v1321 = vadd.f32 0.0, %v1320
      %1322 = vmatmul.bf16.gmra.mxu0 %v1053
      %v1323 = vpop.f32.mrf.mxu0
      %v1324 = vadd.f32 0.0, %v1323
      %v1325 = vpop.f32.mrf.mxu0
      %v1326 = vadd.f32 0.0, %v1325
      %1327 = vmatmul.bf16.gmra.mxu0 %v1056
      %v1328 = vpop.f32.mrf.mxu0
      %v1329 = vadd.f32 0.0, %v1328
      %v1330 = vpop.f32.mrf.mxu0
      %v1331 = vadd.f32 0.0, %v1330
      %1332 = vmatmul.bf16.gmra.mxu0 %v1059
      %v1333 = vpop.f32.mrf.mxu0
      %v1334 = vadd.f32 0.0, %v1333
      %v1335 = vpop.f32.mrf.mxu0
      %v1336 = vadd.f32 0.0, %v1335
      %1337 = vmatmul.bf16.gmra.mxu0 %v1062
      %v1338 = vpop.f32.mrf.mxu0
      %v1339 = vadd.f32 0.0, %v1338
      %v1340 = vpop.f32.mrf.mxu0
      %v1341 = vadd.f32 0.0, %v1340
      %1342 = vmatmul.bf16.gmra.mxu0 %v1065
      %v1343 = vpop.f32.mrf.mxu0
      %v1344 = vadd.f32 0.0, %v1343
      %v1345 = vpop.f32.mrf.mxu0
      %v1346 = vadd.f32 0.0, %v1345
      %1347 = vmatmul.bf16.gmra.mxu0 %v1068
      %v1348 = vpop.f32.mrf.mxu0
      %v1349 = vadd.f32 0.0, %v1348
      %v1350 = vpop.f32.mrf.mxu0
      %v1351 = vadd.f32 0.0, %v1350
      %1352 = vmatmul.bf16.gmra.mxu0 %v1071
      %v1353 = vpop.f32.mrf.mxu0
      %v1354 = vadd.f32 0.0, %v1353
      %v1355 = vpop.f32.mrf.mxu0
      %v1356 = vadd.f32 0.0, %v1355
      %1357 = vmatmul.bf16.gmra.mxu0 %v1074
      %v1358 = vpop.f32.mrf.mxu0
      %v1359 = vadd.f32 0.0, %v1358
      %v1360 = vpop.f32.mrf.mxu0
      %v1361 = vadd.f32 0.0, %v1360
      %1362 = vmatmul.bf16.gmra.mxu0 %v1077
      %v1363 = vpop.f32.mrf.mxu0
      %v1364 = vadd.f32 0.0, %v1363
      %v1365 = vpop.f32.mrf.mxu0
      %v1366 = vadd.f32 0.0, %v1365
      %1367 = vmatmul.bf16.gmra.mxu0 %v1080
      %v1368 = vpop.f32.mrf.mxu0
      %v1369 = vadd.f32 0.0, %v1368
      %v1370 = vpop.f32.mrf.mxu0
      %v1371 = vadd.f32 0.0, %v1370
      %1372 = vmatmul.bf16.gmra.mxu0 %v1083
      %v1373 = vpop.f32.mrf.mxu0
      %v1374 = vadd.f32 0.0, %v1373
      %v1375 = vpop.f32.mrf.mxu0
      %v1376 = vadd.f32 0.0, %v1375
      %1377 = vmatmul.bf16.gmra.mxu0 %v1086
      %v1378 = vpop.f32.mrf.mxu0
      %v1379 = vadd.f32 0.0, %v1378
      %v1380 = vpop.f32.mrf.mxu0
      %v1381 = vadd.f32 0.0, %v1380
      %1382 = vmatmul.bf16.gmra.mxu0 %v1089
      %v1383 = vpop.f32.mrf.mxu0
      %v1384 = vadd.f32 0.0, %v1383
      %v1385 = vpop.f32.mrf.mxu0
      %v1386 = vadd.f32 0.0, %v1385
      %1387 = vmatmul.bf16.gmra.mxu0 %v1092
      %v1388 = vpop.f32.mrf.mxu0
      %v1389 = vadd.f32 0.0, %v1388
      %v1390 = vpop.f32.mrf.mxu0
      %v1391 = vadd.f32 0.0, %v1390
      %1392 = vmatmul.bf16.gmra.mxu0 %v1095
      %v1393 = vpop.f32.mrf.mxu0
      %v1394 = vadd.f32 0.0, %v1393
      %v1395 = vpop.f32.mrf.mxu0
      %v1396 = vadd.f32 0.0, %v1395
      %1397 = vmatmul.bf16.gmra.mxu0 %v1098
      %v1398 = vpop.f32.mrf.mxu0
      %v1399 = vadd.f32 0.0, %v1398
      %v1400 = vpop.f32.mrf.mxu0
      %v1401 = vadd.f32 0.0, %v1400
      %1402 = vmatmul.bf16.gmra.mxu0 %v1101
      %v1403 = vpop.f32.mrf.mxu0
      %v1404 = vadd.f32 0.0, %v1403
      %v1405 = vpop.f32.mrf.mxu0
      %v1406 = vadd.f32 0.0, %v1405
      %1407 = vmatmul.bf16.gmra.mxu0 %v1104
      %v1408 = vpop.f32.mrf.mxu0
      %v1409 = vadd.f32 0.0, %v1408
      %v1410 = vpop.f32.mrf.mxu0
      %v1411 = vadd.f32 0.0, %v1410
      %1412 = vmatmul.bf16.gmra.mxu0 %v1107
      %v1413 = vpop.f32.mrf.mxu0
      %v1414 = vadd.f32 0.0, %v1413
      %v1415 = vpop.f32.mrf.mxu0
      %v1416 = vadd.f32 0.0, %v1415
      %1417 = vmatmul.bf16.gmra.mxu0 %v1110
      %v1418 = vpop.f32.mrf.mxu0
      %v1419 = vadd.f32 0.0, %v1418
      %v1420 = vpop.f32.mrf.mxu0
      %v1421 = vadd.f32 0.0, %v1420
      %1422 = vmatmul.bf16.gmra.mxu0 %v1113
      %v1423 = vpop.f32.mrf.mxu0
      %v1424 = vadd.f32 0.0, %v1423
      %v1425 = vpop.f32.mrf.mxu0
      %v1426 = vadd.f32 0.0, %v1425
      %1427 = vmatmul.bf16.gmra.mxu0 %v1116
      %v1428 = vpop.f32.mrf.mxu0
      %v1429 = vadd.f32 0.0, %v1428
      %v1430 = vpop.f32.mrf.mxu0
      %v1431 = vadd.f32 0.0, %v1430
      %1432 = vmatmul.bf16.gmra.mxu0 %v1119
      %v1433 = vpop.f32.mrf.mxu0
      %v1434 = vadd.f32 0.0, %v1433
      %v1435 = vpop.f32.mrf.mxu0
      %v1436 = vadd.f32 0.0, %v1435
      %1437 = vmatmul.bf16.gmra.mxu0 %v1122
      %v1438 = vpop.f32.mrf.mxu0
      %v1439 = vadd.f32 0.0, %v1438
      %v1440 = vpop.f32.mrf.mxu0
      %v1441 = vadd.f32 0.0, %v1440
      %1442 = vmatmul.bf16.gmra.mxu0 %v1125
      %v1443 = vpop.f32.mrf.mxu0
      %v1444 = vadd.f32 0.0, %v1443
      %v1445 = vpop.f32.mrf.mxu0
      %v1446 = vadd.f32 0.0, %v1445
      %1447 = vmatmul.bf16.gmra.mxu0 %v1128
      %v1448 = vpop.f32.mrf.mxu0
      %v1449 = vadd.f32 0.0, %v1448
      %v1450 = vpop.f32.mrf.mxu0
      %v1451 = vadd.f32 0.0, %v1450
      %1452 = vmatmul.bf16.gmra.mxu0 %v1131
      %v1453 = vpop.f32.mrf.mxu0
      %v1454 = vadd.f32 0.0, %v1453
      %v1455 = vpop.f32.mrf.mxu0
      %v1456 = vadd.f32 0.0, %v1455
      %1457 = vmatmul.bf16.gmra.mxu0 %v1134
      %v1458 = vpop.f32.mrf.mxu0
      %v1459 = vadd.f32 0.0, %v1458
      %v1460 = vpop.f32.mrf.mxu0
      %v1461 = vadd.f32 0.0, %v1460
      %1462 = vmatmul.bf16.gmra.mxu0 %v1137
      %v1463 = vpop.f32.mrf.mxu0
      %v1464 = vadd.f32 0.0, %v1463
      %v1465 = vpop.f32.mrf.mxu0
      %v1466 = vadd.f32 0.0, %v1465
      %1467 = vmatmul.bf16.gmra.mxu0 %v1140
      %v1468 = vpop.f32.mrf.mxu0
      %v1469 = vadd.f32 0.0, %v1468
      %v1470 = vpop.f32.mrf.mxu0
      %v1471 = vadd.f32 0.0, %v1470
      %1472 = vmatmul.bf16.gmra.mxu0 %v1143
      %v1473 = vpop.f32.mrf.mxu0
      %v1474 = vadd.f32 0.0, %v1473
      %v1475 = vpop.f32.mrf.mxu0
      %v1476 = vadd.f32 0.0, %v1475
      %1477 = vdwg.mxu0
      %vm1478 = vcmask 392192
      %1479 = vst.msk [vmem:[%s236] sm:$0xff] %vm1478, %v1159
      %1480 = vst.msk [vmem:[%s236 + $0x8] sm:$0xff] %vm1478, %v1161
      %1481 = vst.msk [vmem:[%s236 + $0x10] sm:$0xff] %vm1478, %v1164
      %1482 = vst.msk [vmem:[%s236 + $0x18] sm:$0xff] %vm1478, %v1166
      %1483 = vst.msk [vmem:[%s236 + $0x20] sm:$0xff] %vm1478, %v1169
      %1484 = vst.msk [vmem:[%s236 + $0x28] sm:$0xff] %vm1478, %v1171
      %1485 = vst.msk [vmem:[%s236 + $0x30] sm:$0xff] %vm1478, %v1174
      %1486 = vst.msk [vmem:[%s236 + $0x38] sm:$0xff] %vm1478, %v1176
      %1487 = vst.msk [vmem:[%s236 + $0x40] sm:$0xff] %vm1478, %v1179
      %1488 = vst.msk [vmem:[%s236 + $0x48] sm:$0xff] %vm1478, %v1181
      %1489 = vst.msk [vmem:[%s236 + $0x50] sm:$0xff] %vm1478, %v1184
      %1490 = vst.msk [vmem:[%s236 + $0x58] sm:$0xff] %vm1478, %v1186
      %1491 = vst.msk [vmem:[%s236 + $0x60] sm:$0xff] %vm1478, %v1189
      %1492 = vst.msk [vmem:[%s236 + $0x68] sm:$0xff] %vm1478, %v1191
      %1493 = vst.msk [vmem:[%s236 + $0x70] sm:$0xff] %vm1478, %v1194
      %1494 = vst.msk [vmem:[%s236 + $0x78] sm:$0xff] %vm1478, %v1196
      %1495 = vst.msk [vmem:[%s236 + $0x80] sm:$0xff] %vm1478, %v1199
      %1496 = vst.msk [vmem:[%s236 + $0x88] sm:$0xff] %vm1478, %v1201
      %1497 = vst.msk [vmem:[%s236 + $0x90] sm:$0xff] %vm1478, %v1204
      %1498 = vst.msk [vmem:[%s236 + $0x98] sm:$0xff] %vm1478, %v1206
      %1499 = vst.msk [vmem:[%s236 + $0xa0] sm:$0xff] %vm1478, %v1209
      %1500 = vst.msk [vmem:[%s236 + $0xa8] sm:$0xff] %vm1478, %v1211
      %1501 = vst.msk [vmem:[%s236 + $0xb0] sm:$0xff] %vm1478, %v1214
      %1502 = vst.msk [vmem:[%s236 + $0xb8] sm:$0xff] %vm1478, %v1216
      %1503 = vst.msk [vmem:[%s236 + $0xc0] sm:$0xff] %vm1478, %v1219
      %1504 = vst.msk [vmem:[%s236 + $0xc8] sm:$0xff] %vm1478, %v1221
      %1505 = vst.msk [vmem:[%s236 + $0xd0] sm:$0xff] %vm1478, %v1224
      %1506 = vst.msk [vmem:[%s236 + $0xd8] sm:$0xff] %vm1478, %v1226
      %1507 = vst.msk [vmem:[%s236 + $0xe0] sm:$0xff] %vm1478, %v1229
      %1508 = vst.msk [vmem:[%s236 + $0xe8] sm:$0xff] %vm1478, %v1231
      %1509 = vst.msk [vmem:[%s236 + $0xf0] sm:$0xff] %vm1478, %v1234
      %1510 = vst.msk [vmem:[%s236 + $0xf8] sm:$0xff] %vm1478, %v1236
      %1511 = vst.msk [vmem:[%s236 + $0x100] sm:$0xff] %vm1478, %v1239
      %1512 = vst.msk [vmem:[%s236 + $0x108] sm:$0xff] %vm1478, %v1241
      %1513 = vst.msk [vmem:[%s236 + $0x110] sm:$0xff] %vm1478, %v1244
      %1514 = vst.msk [vmem:[%s236 + $0x118] sm:$0xff] %vm1478, %v1246
      %1515 = vst.msk [vmem:[%s236 + $0x120] sm:$0xff] %vm1478, %v1249
      %1516 = vst.msk [vmem:[%s236 + $0x128] sm:$0xff] %vm1478, %v1251
      %1517 = vst.msk [vmem:[%s236 + $0x130] sm:$0xff] %vm1478, %v1254
      %1518 = vst.msk [vmem:[%s236 + $0x138] sm:$0xff] %vm1478, %v1256
      %1519 = vst.msk [vmem:[%s236 + $0x140] sm:$0xff] %vm1478, %v1259
      %1520 = vst.msk [vmem:[%s236 + $0x148] sm:$0xff] %vm1478, %v1261
      %1521 = vst.msk [vmem:[%s236 + $0x150] sm:$0xff] %vm1478, %v1264
      %1522 = vst.msk [vmem:[%s236 + $0x158] sm:$0xff] %vm1478, %v1266
      %1523 = vst.msk [vmem:[%s236 + $0x160] sm:$0xff] %vm1478, %v1269
      %1524 = vst.msk [vmem:[%s236 + $0x168] sm:$0xff] %vm1478, %v1271
      %1525 = vst.msk [vmem:[%s236 + $0x170] sm:$0xff] %vm1478, %v1274
      %1526 = vst.msk [vmem:[%s236 + $0x178] sm:$0xff] %vm1478, %v1276
      %1527 = vst.msk [vmem:[%s236 + $0x180] sm:$0xff] %vm1478, %v1279
      %1528 = vst.msk [vmem:[%s236 + $0x188] sm:$0xff] %vm1478, %v1281
      %1529 = vst.msk [vmem:[%s236 + $0x190] sm:$0xff] %vm1478, %v1284
      %1530 = vst.msk [vmem:[%s236 + $0x198] sm:$0xff] %vm1478, %v1286
      %1531 = vst.msk [vmem:[%s236 + $0x1a0] sm:$0xff] %vm1478, %v1289
      %1532 = vst.msk [vmem:[%s236 + $0x1a8] sm:$0xff] %vm1478, %v1291
      %1533 = vst.msk [vmem:[%s236 + $0x1b0] sm:$0xff] %vm1478, %v1294
      %1534 = vst.msk [vmem:[%s236 + $0x1b8] sm:$0xff] %vm1478, %v1296
      %1535 = vst.msk [vmem:[%s236 + $0x1c0] sm:$0xff] %vm1478, %v1299
      %1536 = vst.msk [vmem:[%s236 + $0x1c8] sm:$0xff] %vm1478, %v1301
      %1537 = vst.msk [vmem:[%s236 + $0x1d0] sm:$0xff] %vm1478, %v1304
      %1538 = vst.msk [vmem:[%s236 + $0x1d8] sm:$0xff] %vm1478, %v1306
      %1539 = vst.msk [vmem:[%s236 + $0x1e0] sm:$0xff] %vm1478, %v1309
      %1540 = vst.msk [vmem:[%s236 + $0x1e8] sm:$0xff] %vm1478, %v1311
      %1541 = vst.msk [vmem:[%s236 + $0x1f0] sm:$0xff] %vm1478, %v1314
      %1542 = vst.msk [vmem:[%s236 + $0x1f8] sm:$0xff] %vm1478, %v1316
      %1543 = vst.msk [vmem:[%s236 + $0x200] sm:$0xff] %vm1478, %v1319
      %1544 = vst.msk [vmem:[%s236 + $0x208] sm:$0xff] %vm1478, %v1321
      %1545 = vst.msk [vmem:[%s236 + $0x210] sm:$0xff] %vm1478, %v1324
      %1546 = vst.msk [vmem:[%s236 + $0x218] sm:$0xff] %vm1478, %v1326
      %1547 = vst.msk [vmem:[%s236 + $0x220] sm:$0xff] %vm1478, %v1329
      %1548 = vst.msk [vmem:[%s236 + $0x228] sm:$0xff] %vm1478, %v1331
      %1549 = vst.msk [vmem:[%s236 + $0x230] sm:$0xff] %vm1478, %v1334
      %1550 = vst.msk [vmem:[%s236 + $0x238] sm:$0xff] %vm1478, %v1336
      %1551 = vst.msk [vmem:[%s236 + $0x240] sm:$0xff] %vm1478, %v1339
      %1552 = vst.msk [vmem:[%s236 + $0x248] sm:$0xff] %vm1478, %v1341
      %1553 = vst.msk [vmem:[%s236 + $0x250] sm:$0xff] %vm1478, %v1344
      %1554 = vst.msk [vmem:[%s236 + $0x258] sm:$0xff] %vm1478, %v1346
      %1555 = vst.msk [vmem:[%s236 + $0x260] sm:$0xff] %vm1478, %v1349
      %1556 = vst.msk [vmem:[%s236 + $0x268] sm:$0xff] %vm1478, %v1351
      %1557 = vst.msk [vmem:[%s236 + $0x270] sm:$0xff] %vm1478, %v1354
      %1558 = vst.msk [vmem:[%s236 + $0x278] sm:$0xff] %vm1478, %v1356
      %1559 = vst.msk [vmem:[%s236 + $0x280] sm:$0xff] %vm1478, %v1359
      %1560 = vst.msk [vmem:[%s236 + $0x288] sm:$0xff] %vm1478, %v1361
      %1561 = vst.msk [vmem:[%s236 + $0x290] sm:$0xff] %vm1478, %v1364
      %1562 = vst.msk [vmem:[%s236 + $0x298] sm:$0xff] %vm1478, %v1366
      %1563 = vst.msk [vmem:[%s236 + $0x2a0] sm:$0xff] %vm1478, %v1369
      %1564 = vst.msk [vmem:[%s236 + $0x2a8] sm:$0xff] %vm1478, %v1371
      %1565 = vst.msk [vmem:[%s236 + $0x2b0] sm:$0xff] %vm1478, %v1374
      %1566 = vst.msk [vmem:[%s236 + $0x2b8] sm:$0xff] %vm1478, %v1376
      %1567 = vst.msk [vmem:[%s236 + $0x2c0] sm:$0xff] %vm1478, %v1379
      %1568 = vst.msk [vmem:[%s236 + $0x2c8] sm:$0xff] %vm1478, %v1381
      %1569 = vst.msk [vmem:[%s236 + $0x2d0] sm:$0xff] %vm1478, %v1384
      %1570 = vst.msk [vmem:[%s236 + $0x2d8] sm:$0xff] %vm1478, %v1386
      %1571 = vst.msk [vmem:[%s236 + $0x2e0] sm:$0xff] %vm1478, %v1389
      %1572 = vst.msk [vmem:[%s236 + $0x2e8] sm:$0xff] %vm1478, %v1391
      %1573 = vst.msk [vmem:[%s236 + $0x2f0] sm:$0xff] %vm1478, %v1394
      %1574 = vst.msk [vmem:[%s236 + $0x2f8] sm:$0xff] %vm1478, %v1396
      %1575 = vst.msk [vmem:[%s236 + $0x300] sm:$0xff] %vm1478, %v1399
      %1576 = vst.msk [vmem:[%s236 + $0x308] sm:$0xff] %vm1478, %v1401
      %1577 = vst.msk [vmem:[%s236 + $0x310] sm:$0xff] %vm1478, %v1404
      %1578 = vst.msk [vmem:[%s236 + $0x318] sm:$0xff] %vm1478, %v1406
      %1579 = vst.msk [vmem:[%s236 + $0x320] sm:$0xff] %vm1478, %v1409
      %1580 = vst.msk [vmem:[%s236 + $0x328] sm:$0xff] %vm1478, %v1411
      %1581 = vst.msk [vmem:[%s236 + $0x330] sm:$0xff] %vm1478, %v1414
      %1582 = vst.msk [vmem:[%s236 + $0x338] sm:$0xff] %vm1478, %v1416
      %1583 = vst.msk [vmem:[%s236 + $0x340] sm:$0xff] %vm1478, %v1419
      %1584 = vst.msk [vmem:[%s236 + $0x348] sm:$0xff] %vm1478, %v1421
      %1585 = vst.msk [vmem:[%s236 + $0x350] sm:$0xff] %vm1478, %v1424
      %1586 = vst.msk [vmem:[%s236 + $0x358] sm:$0xff] %vm1478, %v1426
      %1587 = vst.msk [vmem:[%s236 + $0x360] sm:$0xff] %vm1478, %v1429
      %1588 = vst.msk [vmem:[%s236 + $0x368] sm:$0xff] %vm1478, %v1431
      %1589 = vst.msk [vmem:[%s236 + $0x370] sm:$0xff] %vm1478, %v1434
      %1590 = vst.msk [vmem:[%s236 + $0x378] sm:$0xff] %vm1478, %v1436
      %1591 = vst.msk [vmem:[%s236 + $0x380] sm:$0xff] %vm1478, %v1439
      %1592 = vst.msk [vmem:[%s236 + $0x388] sm:$0xff] %vm1478, %v1441
      %1593 = vst.msk [vmem:[%s236 + $0x390] sm:$0xff] %vm1478, %v1444
      %1594 = vst.msk [vmem:[%s236 + $0x398] sm:$0xff] %vm1478, %v1446
      %1595 = vst.msk [vmem:[%s236 + $0x3a0] sm:$0xff] %vm1478, %v1449
      %1596 = vst.msk [vmem:[%s236 + $0x3a8] sm:$0xff] %vm1478, %v1451
      %1597 = vst.msk [vmem:[%s236 + $0x3b0] sm:$0xff] %vm1478, %v1454
      %1598 = vst.msk [vmem:[%s236 + $0x3b8] sm:$0xff] %vm1478, %v1456
      %1599 = vst.msk [vmem:[%s236 + $0x3c0] sm:$0xff] %vm1478, %v1459
      %1600 = vst.msk [vmem:[%s236 + $0x3c8] sm:$0xff] %vm1478, %v1461
      %1601 = vst.msk [vmem:[%s236 + $0x3d0] sm:$0xff] %vm1478, %v1464
      %1602 = vst.msk [vmem:[%s236 + $0x3d8] sm:$0xff] %vm1478, %v1466
      %1603 = vst.msk [vmem:[%s236 + $0x3e0] sm:$0xff] %vm1478, %v1469
      %1604 = vst.msk [vmem:[%s236 + $0x3e8] sm:$0xff] %vm1478, %v1471
      %1605 = vst.msk [vmem:[%s236 + $0x3f0] sm:$0xff] %vm1478, %v1474
      %1606 = vst.msk [vmem:[%s236 + $0x3f8] sm:$0xff] %vm1478, %v1476
      %s1607 = smul.u32 128, %s19
      %p1608 = scmp.lt.s32.totalorder %s1607, 255
      %s1609 = scalar_select %p1608, %s1607, 255
      %p1610 = scmp.lt.s32.totalorder %s20, 0
      %s1611 = scalar_select %p1610, %s20, 0
      %s1612 = sadd.s32 %s1611, %s1609
      %s1613 = smul.addr %s1612, 8
      %s1614 = scalar_lea.vmem %s4, %s1613
      // Predicated region
      $region37: #{a_call__.18} parent=35 // pred_check
        %p1615 = pneg %p141
      $region38: #{a_call__.18} parent=35 // pred_check_branch
        %1617 = sbr.rel (%p1615) target = $region40
      $region39: #{a_call__.18} parent=35 // pred_region
        %s1618 = smul.u32 128, %s19
      $region40: #{a_call__.18} parent=35 // pred_fallthru
        _
    $region36: #{a_call__.18} parent=5 // pred_fallthru
      _
    %p1619 = scmp.le.s32.totalorder 2, %s10
    // Predicated region
    $region41: #{a_call__.18} parent=5 // pred_check
      %p1620 = pneg %p1619
    $region42: #{a_call__.18} parent=5 // pred_check_branch
      %1622 = sbr.rel (%p1620) target = $region44
    $region43: #{a_call__.18} parent=5 // pred_region
      %s1623 = ssub.s32 %s10, 2
      // Predicated region
      $region45: #{a_call__.18} parent=43 // pred_check
        %p1624 = pneg %p147
      $region46: #{a_call__.18} parent=43 // pred_check_branch
        %1626 = sbr.rel (%p1624) target = $region48
      $region47: #{a_call__.18} parent=43 // pred_region
        %s1627 = smul.u32 128, %s21
        %p1628 = scmp.lt.s32.totalorder %s1627, 255
        %s1629 = scalar_select %p1628, %s1627, 255
        %p1630 = scmp.lt.s32.totalorder %s22, 0
        %s1631 = scalar_select %p1630, %s22, 0
        %s1632 = sadd.s32 %s1631, %s1629
        %s1633 = smul.addr %s1632, 8
        %s1634 = scalar_lea.vmem %s4, %s1633
      $region48: #{a_call__.18} parent=43 // pred_fallthru
        _
    $region44: #{a_call__.18} parent=5 // pred_fallthru
      _
  $region6: #{a_call__.18} parent=0 // loop_footer
    %s14 = sadd.s32 1, %s10
  $region7: #{a_call__.18} parent=0 // loop_footer_branch
    %9 = sbr.rel target = $region3
  $region8: #{a_call__.18} parent=0 // loop_exit
    _

// kernel: tile.6
$region0: #{tile.6}
  #allocation0 [shape = 's32[1]{0}', space=sflag, size = 0x4, scoped, tag = 'scoped memory for tile.6']
  %s0 = inlined_call_operand.vmem [shape: f32[3], index: 0, kind: input, shape index: {}]
  %s1 = inlined_call_operand.vmem [shape: f32[64,3], index: 1, kind: output, shape index: {}]
  // Predicated region
  $region2: #{tile.6} parent=0 // pred_check
    _
  $region3: #{tile.6} parent=0 // pred_check_branch
    %3 = sbr.rel (0) target = $region5
  $region4: #{tile.6} parent=0 // pred_region
    _
  $region5: #{tile.6} parent=0 // pred_fallthru
    _
  %v4 = vld [vmem:[%s0] ss:$0 sm:$0xff]
  %5 = vst [vmem:[%s1] sm:$0xff] %v4
  %s6 = scalar_lea.vmem %s1, 8
  %7 = vst [vmem:[%s6] sm:$0xff] %v4
  %s8 = scalar_lea.vmem %s1, 16
  %9 = vst [vmem:[%s8] sm:$0xff] %v4
  %s10 = scalar_lea.vmem %s1, 24
  %11 = vst [vmem:[%s10] sm:$0xff] %v4
  %s12 = scalar_lea.vmem %s1, 32
  %13 = vst [vmem:[%s12] sm:$0xff] %v4
  %s14 = scalar_lea.vmem %s1, 40
  %15 = vst [vmem:[%s14] sm:$0xff] %v4
  %s16 = scalar_lea.vmem %s1, 48
  %17 = vst [vmem:[%s16] sm:$0xff] %v4
  %s18 = scalar_lea.vmem %s1, 56
  %19 = vst [vmem:[%s18] sm:$0xff] %v4

// kernel: tile.7
$region0: #{tile.7}
  %s0 = inlined_call_operand.vmem [shape: f32[64,3], index: 0, kind: input, shape index: {}]
  %s1 = inlined_call_operand.vmem [shape: f32[1,192], index: 1, kind: output, shape index: {}]
  $region1: #{tile.7} parent=0
    #allocation0 [shape = 'u8[8192]{0}', space=vmem, size = 0x2000, scoped, tag = 'scoped mem for output reshape']
    %v2 = vld [vmem:[%s0] sm:$0x1]
    %vm3 = vcmask 23552
    %4 = vst.msk [vmem:[#allocation0] sm:$0x1] %vm3, %v2
    %s5 = scalar_lea.vmem %s0, 42
    %v6 = vld [vmem:[%s5] sm:$0x1]
    %s7 = scalar_lea.vmem %s0, 42
    %v8 = vld [vmem:[%s7] sm:$0x1]
    %vm9 = vcmask 15360
    %v10 = vsel %vm9, %v8, %v6
    %11 = vrot.lane.b32.xlu0 %v10, 126
    %v12 = vpop.permute.xlu0 %11
    %vm13 = vcmask 7168
    %s14 = scalar_lea.vmem [#allocation0], 8
    %15 = vst.msk [vmem:[%s14] sm:$0x1] %vm13, %v12
    %vm16 = vcmask 1048560
    %17 = vst.msk [vmem:[#allocation0] sm:$0x1] %vm16, %v12
    %s18 = scalar_lea.vmem %s0, 41
    %v19 = vld [vmem:[%s18] sm:$0x1]
    %20 = vrot.lane.b32.xlu0 %v19, 123
    %v21 = vpop.permute.xlu0 %20
    %vm22 = vcmask 1032152
    %23 = vst.msk [vmem:[#allocation0] sm:$0x1] %vm22, %v21
    %s24 = scalar_lea.vmem %s0, 40
    %v25 = vld [vmem:[%s24] sm:$0x1]
    %26 = vrot.lane.b32.xlu0 %v25, 120
    %v27 = vpop.permute.xlu0 %26
    %vm28 = vcmask 1007552
    %29 = vst.msk [vmem:[#allocation0] sm:$0x1] %vm28, %v27
    %s30 = scalar_lea.vmem %s0, 39
    %v31 = vld [vmem:[%s30] sm:$0x1]
    %32 = vrot.lane.b32.xlu0 %v31, 117
    %v33 = vpop.permute.xlu0 %32
    %vm34 = vcmask 982952
    %35 = vst.msk [vmem:[#allocation0] sm:$0x1] %vm34, %v33
    %s36 = scalar_lea.vmem %s0, 38
    %v37 = vld [vmem:[%s36] sm:$0x1]
    %38 = vrot.lane.b32.xlu0 %v37, 114
    %v39 = vpop.permute.xlu0 %38
    %vm40 = vcmask 958352
    %41 = vst.msk [vmem:[#allocation0] sm:$0x1] %vm40, %v39
    %s42 = scalar_lea.vmem %s0, 37
    %v43 = vld [vmem:[%s42] sm:$0x1]
    %44 = vrot.lane.b32.xlu0 %v43, 111
    %v45 = vpop.permute.xlu0 %44
    %vm46 = vcmask 933752
    %47 = vst.msk [vmem:[#allocation0] sm:$0x1] %vm46, %v45
    %s48 = scalar_lea.vmem %s0, 36
    %v49 = vld [vmem:[%s48] sm:$0x1]
    %50 = vrot.lane.b32.xlu0 %v49, 108
    %v51 = vpop.permute.xlu0 %50
    %vm52 = vcmask 909152
    %53 = vst.msk [vmem:[#allocation0] sm:$0x1] %vm52, %v51
    %s54 = scalar_lea.vmem %s0, 35
    %v55 = vld [vmem:[%s54] sm:$0x1]
    %56 = vrot.lane.b32.xlu0 %v55, 105
    %v57 = vpop.permute.xlu0 %56
    %vm58 = vcmask 884552
    %59 = vst.msk [vmem:[#allocation0] sm:$0x1] %vm58, %v57
    %s60 = scalar_lea.vmem %s0, 34
    %v61 = vld [vmem:[%s60] sm:$0x1]
    %62 = vrot.lane.b32.xlu0 %v61, 102
    %v63 = vpop.permute.xlu0 %62
    %vm64 = vcmask 859952
    %65 = vst.msk [vmem:[#allocation0] sm:$0x1] %vm64, %v63
    %s66 = scalar_lea.vmem %s0, 33
    %v67 = vld [vmem:[%s66] sm:$0x1]
    %68 = vrot.lane.b32.xlu0 %v67, 99
    %v69 = vpop.permute.xlu0 %68
    %vm70 = vcmask 835352
    %71 = vst.msk [vmem:[#allocation0] sm:$0x1] %vm70, %v69
    %s72 = scalar_lea.vmem %s0, 32
    %v73 = vld [vmem:[%s72] sm:$0x1]
    %74 = vrot.lane.b32.xlu0 %v73, 96
    %v75 = vpop.permute.xlu0 %74
    %vm76 = vcmask 810752
    %77 = vst.msk [vmem:[#allocation0] sm:$0x1] %vm76, %v75
    %s78 = scalar_lea.vmem %s0, 31
    %v79 = vld [vmem:[%s78] sm:$0x1]
    %80 = vrot.lane.b32.xlu0 %v79, 93
    %v81 = vpop.permute.xlu0 %80
    %vm82 = vcmask 786152
    %83 = vst.msk [vmem:[#allocation0] sm:$0x1] %vm82, %v81
    %s84 = scalar_lea.vmem %s0, 30
    %v85 = vld [vmem:[%s84] sm:$0x1]
    %86 = vrot.lane.b32.xlu0 %v85, 90
    %v87 = vpop.permute.xlu0 %86
    %vm88 = vcmask 761552
    %89 = vst.msk [vmem:[#allocation0] sm:$0x1] %vm88, %v87
    %s90 = scalar_lea.vmem %s0, 29
    %v91 = vld [vmem:[%s90] sm:$0x1]
    %92 = vrot.lane.b32.xlu0 %v91, 87
    %v93 = vpop.permute.xlu0 %92
    %vm94 = vcmask 736952
    %95 = vst.msk [vmem:[#allocation0] sm:$0x1] %vm94, %v93
    %s96 = scalar_lea.vmem %s0, 28
    %v97 = vld [vmem:[%s96] sm:$0x1]
    %98 = vrot.lane.b32.xlu0 %v97, 84
    %v99 = vpop.permute.xlu0 %98
    %vm100 = vcmask 712352
    %101 = vst.msk [vmem:[#allocation0] sm:$0x1] %vm100, %v99
    %s102 = scalar_lea.vmem %s0, 27
    %v103 = vld [vmem:[%s102] sm:$0x1]
    %104 = vrot.lane.b32.xlu0 %v103, 81
    %v105 = vpop.permute.xlu0 %104
    %vm106 = vcmask 687752
    %107 = vst.msk [vmem:[#allocation0] sm:$0x1] %vm106, %v105
    %s108 = scalar_lea.vmem %s0, 26
    %v109 = vld [vmem:[%s108] sm:$0x1]
    %110 = vrot.lane.b32.xlu0 %v109, 78
    %v111 = vpop.permute.xlu0 %110
    %vm112 = vcmask 663152
    %113 = vst.msk [vmem:[#allocation0] sm:$0x1] %vm112, %v111
    %s114 = scalar_lea.vmem %s0, 25
    %v115 = vld [vmem:[%s114] sm:$0x1]
    %116 = vrot.lane.b32.xlu0 %v115, 75
    %v117 = vpop.permute.xlu0 %116
    %vm118 = vcmask 638552
    %119 = vst.msk [vmem:[#allocation0] sm:$0x1] %vm118, %v117
    %s120 = scalar_lea.vmem %s0, 24
    %v121 = vld [vmem:[%s120] sm:$0x1]
    %122 = vrot.lane.b32.xlu0 %v121, 72
    %v123 = vpop.permute.xlu0 %122
    %vm124 = vcmask 613952
    %125 = vst.msk [vmem:[#allocation0] sm:$0x1] %vm124, %v123
    %s126 = scalar_lea.vmem %s0, 23
    %v127 = vld [vmem:[%s126] sm:$0x1]
    %128 = vrot.lane.b32.xlu0 %v127, 69
    %v129 = vpop.permute.xlu0 %128
    %vm130 = vcmask 589352
    %131 = vst.msk [vmem:[#allocation0] sm:$0x1] %vm130, %v129
    %s132 = scalar_lea.vmem %s0, 22
    %v133 = vld [vmem:[%s132] sm:$0x1]
    %134 = vrot.lane.b32.xlu0 %v133, 66
    %v135 = vpop.permute.xlu0 %134
    %vm136 = vcmask 564752
    %137 = vst.msk [vmem:[#allocation0] sm:$0x1] %vm136, %v135
    %s138 = scalar_lea.vmem %s0, 21
    %v139 = vld [vmem:[%s138] sm:$0x1]
    %140 = vrot.lane.b32.xlu0 %v139, 63
    %v141 = vpop.permute.xlu0 %140
    %vm142 = vcmask 540152
    %143 = vst.msk [vmem:[#allocation0] sm:$0x1] %vm142, %v141
    %s144 = scalar_lea.vmem %s0, 63
    %v145 = vld [vmem:[%s144] sm:$0x1]
    %146 = vrot.lane.b32.xlu0 %v145, 61
    %v147 = vpop.permute.xlu0 %146
    %vm148 = vcmask 523752
    %s149 = scalar_lea.vmem [#allocation0], 8
    %150 = vst.msk [vmem:[%s149] sm:$0x1] %vm148, %v147
    %s151 = scalar_lea.vmem %s0, 20
    %v152 = vld [vmem:[%s151] sm:$0x1]
    %153 = vrot.lane.b32.xlu0 %v152, 60
    %v154 = vpop.permute.xlu0 %153
    %vm155 = vcmask 515552
    %156 = vst.msk [vmem:[#allocation0] sm:$0x1] %vm155, %v154
    %s157 = scalar_lea.vmem %s0, 62
    %v158 = vld [vmem:[%s157] sm:$0x1]
    %159 = vrot.lane.b32.xlu0 %v158, 58
    %v160 = vpop.permute.xlu0 %159
    %vm161 = vcmask 499152
    %s162 = scalar_lea.vmem [#allocation0], 8
    %163 = vst.msk [vmem:[%s162] sm:$0x1] %vm161, %v160
    %s164 = scalar_lea.vmem %s0, 19
    %v165 = vld [vmem:[%s164] sm:$0x1]
    %166 = vrot.lane.b32.xlu0 %v165, 57
    %v167 = vpop.permute.xlu0 %166
    %vm168 = vcmask 490952
    %169 = vst.msk [vmem:[#allocation0] sm:$0x1] %vm168, %v167
    %s170 = scalar_lea.vmem %s0, 61
    %v171 = vld [vmem:[%s170] sm:$0x1]
    %172 = vrot.lane.b32.xlu0 %v171, 55
    %v173 = vpop.permute.xlu0 %172
    %vm174 = vcmask 474552
    %s175 = scalar_lea.vmem [#allocation0], 8
    %176 = vst.msk [vmem:[%s175] sm:$0x1] %vm174, %v173
    %s177 = scalar_lea.vmem %s0, 18
    %v178 = vld [vmem:[%s177] sm:$0x1]
    %179 = vrot.lane.b32.xlu0 %v178, 54
    %v180 = vpop.permute.xlu0 %179
    %vm181 = vcmask 466352
    %182 = vst.msk [vmem:[#allocation0] sm:$0x1] %vm181, %v180
    %s183 = scalar_lea.vmem %s0, 60
    %v184 = vld [vmem:[%s183] sm:$0x1]
    %185 = vrot.lane.b32.xlu0 %v184, 52
    %v186 = vpop.permute.xlu0 %185
    %vm187 = vcmask 449952
    %s188 = scalar_lea.vmem [#allocation0], 8
    %189 = vst.msk [vmem:[%s188] sm:$0x1] %vm187, %v186
    %s190 = scalar_lea.vmem %s0, 17
    %v191 = vld [vmem:[%s190] sm:$0x1]
    %192 = vrot.lane.b32.xlu0 %v191, 51
    %v193 = vpop.permute.xlu0 %192
    %vm194 = vcmask 441752
    %195 = vst.msk [vmem:[#allocation0] sm:$0x1] %vm194, %v193
    %s196 = scalar_lea.vmem %s0, 59
    %v197 = vld [vmem:[%s196] sm:$0x1]
    %198 = vrot.lane.b32.xlu0 %v197, 49
    %v199 = vpop.permute.xlu0 %198
    %vm200 = vcmask 425352
    %s201 = scalar_lea.vmem [#allocation0], 8
    %202 = vst.msk [vmem:[%s201] sm:$0x1] %vm200, %v199
    %s203 = scalar_lea.vmem %s0, 16
    %v204 = vld [vmem:[%s203] sm:$0x1]
    %205 = vrot.lane.b32.xlu0 %v204, 48
    %v206 = vpop.permute.xlu0 %205
    %vm207 = vcmask 417152
    %208 = vst.msk [vmem:[#allocation0] sm:$0x1] %vm207, %v206
    %s209 = scalar_lea.vmem %s0, 58
    %v210 = vld [vmem:[%s209] sm:$0x1]
    %211 = vrot.lane.b32.xlu0 %v210, 46
    %v212 = vpop.permute.xlu0 %211
    %vm213 = vcmask 400752
    %s214 = scalar_lea.vmem [#allocation0], 8
    %215 = vst.msk [vmem:[%s214] sm:$0x1] %vm213, %v212
    %s216 = scalar_lea.vmem %s0, 15
    %v217 = vld [vmem:[%s216] sm:$0x1]
    %218 = vrot.lane.b32.xlu0 %v217, 45
    %v219 = vpop.permute.xlu0 %218
    %vm220 = vcmask 392552
    %221 = vst.msk [vmem:[#allocation0] sm:$0x1] %vm220, %v219
    %s222 = scalar_lea.vmem %s0, 57
    %v223 = vld [vmem:[%s222] sm:$0x1]
    %224 = vrot.lane.b32.xlu0 %v223, 43
    %v225 = vpop.permute.xlu0 %224
    %vm226 = vcmask 376152
    %s227 = scalar_lea.vmem [#allocation0], 8
    %228 = vst.msk [vmem:[%s227] sm:$0x1] %vm226, %v225
    %s229 = scalar_lea.vmem %s0, 14
    %v230 = vld [vmem:[%s229] sm:$0x1]
    %231 = vrot.lane.b32.xlu0 %v230, 42
    %v232 = vpop.permute.xlu0 %231
    %vm233 = vcmask 367952
    %234 = vst.msk [vmem:[#allocation0] sm:$0x1] %vm233, %v232
    %s235 = scalar_lea.vmem %s0, 56
    %v236 = vld [vmem:[%s235] sm:$0x1]
    %237 = vrot.lane.b32.xlu0 %v236, 40
    %v238 = vpop.permute.xlu0 %237
    %vm239 = vcmask 351552
    %s240 = scalar_lea.vmem [#allocation0], 8
    %241 = vst.msk [vmem:[%s240] sm:$0x1] %vm239, %v238
    %s242 = scalar_lea.vmem %s0, 13
    %v243 = vld [vmem:[%s242] sm:$0x1]
    %244 = vrot.lane.b32.xlu0 %v243, 39
    %v245 = vpop.permute.xlu0 %244
    %vm246 = vcmask 343352
    %247 = vst.msk [vmem:[#allocation0] sm:$0x1] %vm246, %v245
    %s248 = scalar_lea.vmem %s0, 55
    %v249 = vld [vmem:[%s248] sm:$0x1]
    %250 = vrot.lane.b32.xlu0 %v249, 37
    %v251 = vpop.permute.xlu0 %250
    %vm252 = vcmask 326952
    %s253 = scalar_lea.vmem [#allocation0], 8
    %254 = vst.msk [vmem:[%s253] sm:$0x1] %vm252, %v251
    %s255 = scalar_lea.vmem %s0, 12
    %v256 = vld [vmem:[%s255] sm:$0x1]
    %257 = vrot.lane.b32.xlu0 %v256, 36
    %v258 = vpop.permute.xlu0 %257
    %vm259 = vcmask 318752
    %260 = vst.msk [vmem:[#allocation0] sm:$0x1] %vm259, %v258
    %s261 = scalar_lea.vmem %s0, 54
    %v262 = vld [vmem:[%s261] sm:$0x1]
    %263 = vrot.lane.b32.xlu0 %v262, 34
    %v264 = vpop.permute.xlu0 %263
    %vm265 = vcmask 302352
    %s266 = scalar_lea.vmem [#allocation0], 8
    %267 = vst.msk [vmem:[%s266] sm:$0x1] %vm265, %v264
    %s268 = scalar_lea.vmem %s0, 11
    %v269 = vld [vmem:[%s268] sm:$0x1]
    %270 = vrot.lane.b32.xlu0 %v269, 33
    %v271 = vpop.permute.xlu0 %270
    %vm272 = vcmask 294152
    %273 = vst.msk [vmem:[#allocation0] sm:$0x1] %vm272, %v271
    %s274 = scalar_lea.vmem %s0, 53
    %v275 = vld [vmem:[%s274] sm:$0x1]
    %276 = vrot.lane.b32.xlu0 %v275, 31
    %v277 = vpop.permute.xlu0 %276
    %vm278 = vcmask 277752
    %s279 = scalar_lea.vmem [#allocation0], 8
    %280 = vst.msk [vmem:[%s279] sm:$0x1] %vm278, %v277
    %s281 = scalar_lea.vmem %s0, 10
    %v282 = vld [vmem:[%s281] sm:$0x1]
    %283 = vrot.lane.b32.xlu0 %v282, 30
    %v284 = vpop.permute.xlu0 %283
    %vm285 = vcmask 269552
    %286 = vst.msk [vmem:[#allocation0] sm:$0x1] %vm285, %v284
    %s287 = scalar_lea.vmem %s0, 52
    %v288 = vld [vmem:[%s287] sm:$0x1]
    %289 = vrot.lane.b32.xlu0 %v288, 28
    %v290 = vpop.permute.xlu0 %289
    %vm291 = vcmask 253152
    %s292 = scalar_lea.vmem [#allocation0], 8
    %293 = vst.msk [vmem:[%s292] sm:$0x1] %vm291, %v290
    %s294 = scalar_lea.vmem %s0, 9
    %v295 = vld [vmem:[%s294] sm:$0x1]
    %296 = vrot.lane.b32.xlu0 %v295, 27
    %v297 = vpop.permute.xlu0 %296
    %vm298 = vcmask 244952
    %299 = vst.msk [vmem:[#allocation0] sm:$0x1] %vm298, %v297
    %s300 = scalar_lea.vmem %s0, 51
    %v301 = vld [vmem:[%s300] sm:$0x1]
    %302 = vrot.lane.b32.xlu0 %v301, 25
    %v303 = vpop.permute.xlu0 %302
    %vm304 = vcmask 228552
    %s305 = scalar_lea.vmem [#allocation0], 8
    %306 = vst.msk [vmem:[%s305] sm:$0x1] %vm304, %v303
    %s307 = scalar_lea.vmem %s0, 8
    %v308 = vld [vmem:[%s307] sm:$0x1]
    %309 = vrot.lane.b32.xlu0 %v308, 24
    %v310 = vpop.permute.xlu0 %309
    %vm311 = vcmask 220352
    %312 = vst.msk [vmem:[#allocation0] sm:$0x1] %vm311, %v310
    %s313 = scalar_lea.vmem %s0, 50
    %v314 = vld [vmem:[%s313] sm:$0x1]
    %315 = vrot.lane.b32.xlu0 %v314, 22
    %v316 = vpop.permute.xlu0 %315
    %vm317 = vcmask 203952
    %s318 = scalar_lea.vmem [#allocation0], 8
    %319 = vst.msk [vmem:[%s318] sm:$0x1] %vm317, %v316
    %s320 = scalar_lea.vmem %s0, 7
    %v321 = vld [vmem:[%s320] sm:$0x1]
    %322 = vrot.lane.b32.xlu0 %v321, 21
    %v323 = vpop.permute.xlu0 %322
    %vm324 = vcmask 195752
    %325 = vst.msk [vmem:[#allocation0] sm:$0x1] %vm324, %v323
    %s326 = scalar_lea.vmem %s0, 49
    %v327 = vld [vmem:[%s326] sm:$0x1]
    %328 = vrot.lane.b32.xlu0 %v327, 19
    %v329 = vpop.permute.xlu0 %328
    %vm330 = vcmask 179352
    %s331 = scalar_lea.vmem [#allocation0], 8
    %332 = vst.msk [vmem:[%s331] sm:$0x1] %vm330, %v329
    %s333 = scalar_lea.vmem %s0, 6
    %v334 = vld [vmem:[%s333] sm:$0x1]
    %335 = vrot.lane.b32.xlu0 %v334, 18
    %v336 = vpop.permute.xlu0 %335
    %vm337 = vcmask 171152
    %338 = vst.msk [vmem:[#allocation0] sm:$0x1] %vm337, %v336
    %s339 = scalar_lea.vmem %s0, 48
    %v340 = vld [vmem:[%s339] sm:$0x1]
    %341 = vrot.lane.b32.xlu0 %v340, 16
    %v342 = vpop.permute.xlu0 %341
    %vm343 = vcmask 154752
    %s344 = scalar_lea.vmem [#allocation0], 8
    %345 = vst.msk [vmem:[%s344] sm:$0x1] %vm343, %v342
    %s346 = scalar_lea.vmem %s0, 5
    %v347 = vld [vmem:[%s346] sm:$0x1]
    %348 = vrot.lane.b32.xlu0 %v347, 15
    %v349 = vpop.permute.xlu0 %348
    %vm350 = vcmask 146552
    %351 = vst.msk [vmem:[#allocation0] sm:$0x1] %vm350, %v349
    %s352 = scalar_lea.vmem %s0, 47
    %v353 = vld [vmem:[%s352] sm:$0x1]
    %354 = vrot.lane.b32.xlu0 %v353, 13
    %v355 = vpop.permute.xlu0 %354
    %vm356 = vcmask 130152
    %s357 = scalar_lea.vmem [#allocation0], 8
    %358 = vst.msk [vmem:[%s357] sm:$0x1] %vm356, %v355
    %s359 = scalar_lea.vmem %s0, 4
    %v360 = vld [vmem:[%s359] sm:$0x1]
    %361 = vrot.lane.b32.xlu0 %v360, 12
    %v362 = vpop.permute.xlu0 %361
    %vm363 = vcmask 121952
    %364 = vst.msk [vmem:[#allocation0] sm:$0x1] %vm363, %v362
    %s365 = scalar_lea.vmem %s0, 46
    %v366 = vld [vmem:[%s365] sm:$0x1]
    %367 = vrot.lane.b32.xlu0 %v366, 10
    %v368 = vpop.permute.xlu0 %367
    %vm369 = vcmask 105552
    %s370 = scalar_lea.vmem [#allocation0], 8
    %371 = vst.msk [vmem:[%s370] sm:$0x1] %vm369, %v368
    %s372 = scalar_lea.vmem %s0, 3
    %v373 = vld [vmem:[%s372] sm:$0x1]
    %374 = vrot.lane.b32.xlu0 %v373, 9
    %v375 = vpop.permute.xlu0 %374
    %vm376 = vcmask 97352
    %377 = vst.msk [vmem:[#allocation0] sm:$0x1] %vm376, %v375
    %s378 = scalar_lea.vmem %s0, 45
    %v379 = vld [vmem:[%s378] sm:$0x1]
    %380 = vrot.lane.b32.xlu0 %v379, 7
    %v381 = vpop.permute.xlu0 %380
    %vm382 = vcmask 80952
    %s383 = scalar_lea.vmem [#allocation0], 8
    %384 = vst.msk [vmem:[%s383] sm:$0x1] %vm382, %v381
    %s385 = scalar_lea.vmem %s0, 2
    %v386 = vld [vmem:[%s385] sm:$0x1]
    %387 = vrot.lane.b32.xlu0 %v386, 6
    %v388 = vpop.permute.xlu0 %387
    %vm389 = vcmask 72752
    %390 = vst.msk [vmem:[#allocation0] sm:$0x1] %vm389, %v388
    %s391 = scalar_lea.vmem %s0, 44
    %v392 = vld [vmem:[%s391] sm:$0x1]
    %393 = vrot.lane.b32.xlu0 %v392, 4
    %v394 = vpop.permute.xlu0 %393
    %vm395 = vcmask 56352
    %s396 = scalar_lea.vmem [#allocation0], 8
    %397 = vst.msk [vmem:[%s396] sm:$0x1] %vm395, %v394
    %s398 = scalar_lea.vmem %s0, 1
    %v399 = vld [vmem:[%s398] sm:$0x1]
    %400 = vrot.lane.b32.xlu0 %v399, 3
    %v401 = vpop.permute.xlu0 %400
    %vm402 = vcmask 48152
    %403 = vst.msk [vmem:[#allocation0] sm:$0x1] %vm402, %v401
    %s404 = scalar_lea.vmem %s0, 43
    %v405 = vld [vmem:[%s404] sm:$0x1]
    %406 = vrot.lane.b32.xlu0 %v405, 1
    %v407 = vpop.permute.xlu0 %406
    %vm408 = vcmask 31752
    %s409 = scalar_lea.vmem [#allocation0], 8
    %410 = vst.msk [vmem:[%s409] sm:$0x1] %vm408, %v407
    %s412 = ssub.s32 2, 1
    %v413 = vld [vmem:[#allocation0] sm:%s412]
    %s415 = ssub.s32 2, 1
    %416 = vst [vmem:[%s1] sm:%s415] %v413
    %s417 = scalar_lea.vmem [#allocation0], 8
    %v418 = vld [vmem:[%s417] sm:%s412]
    %s420 = ssub.s32 2, 1
    %s421 = scalar_lea.vmem %s1, 1
    %422 = vst [vmem:[%s421] sm:%s420] %v418

// kernel: a_call__.19
$region0: #{a_call__.19}
  #allocation0 [shape = 'u32[]', space=smem, size = 0x4, offset = 0x4, fixed_abs, tag = 'smem constant byte address 0x4 - core index']
  #allocation1 [shape = 'u32[72,128]{1,0:T(1,128)}', space=vmem, size = 0x9000, scoped, tag = 'internal scratch']
  %s0 = inlined_call_operand.vmem [shape: f32[128,192], index: 0, kind: input, shape index: {}]
  %s1 = inlined_call_operand.vmem [shape: f32[1,192], index: 1, kind: input, shape index: {}]
  %s2 = inlined_call_operand.vmem [shape: f32[128,192], index: 2, kind: output, shape index: {}]
  %s3 = sld [smem:[#allocation0]]
  $region18: #{a_call__.19} parent=0
    _
  %s5 = ssub.s32 1, %s3
  %s6 = scalar_select 0, %s5, %s3
  // Predicated region
  $region2: #{a_call__.19} parent=0 // pred_check
    _
  $region3: #{a_call__.19} parent=0 // pred_check_branch
    %8 = sbr.rel (0) target = $region5
  $region4: #{a_call__.19} parent=0 // pred_region
    _
  $region5: #{a_call__.19} parent=0 // pred_fallthru
    _
  // Predicated region
  $region6: #{a_call__.19} parent=0 // pred_check
    _
  $region7: #{a_call__.19} parent=0 // pred_check_branch
    %10 = sbr.rel (0) target = $region9
  $region8: #{a_call__.19} parent=0 // pred_region
    _
  $region9: #{a_call__.19} parent=0 // pred_fallthru
    _
  %v11 = vld [vmem:[%s0] sm:$0xff]
  %v12 = vld [vmem:[%s0 + $0x8] sm:$0xff]
  %v13 = vld [vmem:[%s0 + $0x10] sm:$0xff]
  %v14 = vld [vmem:[%s0 + $0x18] sm:$0xff]
  %v15 = vld [vmem:[%s0 + $0x20] sm:$0xff]
  %v16 = vld [vmem:[%s0 + $0x28] sm:$0xff]
  %v17 = vld [vmem:[%s0 + $0x30] sm:$0xff]
  %v18 = vld [vmem:[%s0 + $0x38] sm:$0xff]
  %v19 = vld [vmem:[%s0 + $0x40] sm:$0xff]
  %v20 = vld [vmem:[%s0 + $0x48] sm:$0xff]
  %v21 = vld [vmem:[%s0 + $0x50] sm:$0xff]
  %v22 = vld [vmem:[%s0 + $0x58] sm:$0xff]
  %v23 = vld [vmem:[%s0 + $0x60] sm:$0xff]
  %v24 = vld [vmem:[%s0 + $0x68] sm:$0xff]
  %v25 = vld [vmem:[%s0 + $0x70] sm:$0xff]
  %v26 = vld [vmem:[%s0 + $0x78] sm:$0xff]
  %v27 = vld [vmem:[%s0 + $0x80] sm:$0xff]
  %v28 = vld [vmem:[%s0 + $0x88] sm:$0xff]
  %v29 = vld [vmem:[%s0 + $0x90] sm:$0xff]
  %v30 = vld [vmem:[%s0 + $0x98] sm:$0xff]
  %v31 = vld [vmem:[%s0 + $0xa0] sm:$0xff]
  %v32 = vld [vmem:[%s0 + $0xa8] sm:$0xff]
  %v33 = vld [vmem:[%s0 + $0xb0] sm:$0xff]
  %v34 = vld [vmem:[%s0 + $0xb8] sm:$0xff]
  %v35 = vld [vmem:[%s0 + $0xc0] sm:$0xff]
  %v36 = vld [vmem:[%s0 + $0xc8] sm:$0xff]
  %v37 = vld [vmem:[%s0 + $0xd0] sm:$0xff]
  %v38 = vld [vmem:[%s0 + $0xd8] sm:$0xff]
  %v39 = vld [vmem:[%s0 + $0xe0] sm:$0xff]
  %v40 = vld [vmem:[%s0 + $0xe8] sm:$0xff]
  %v41 = vld [vmem:[%s0 + $0xf0] sm:$0xff]
  %v42 = vld [vmem:[%s0 + $0xf8] sm:$0xff]
  %v43 = vld [vmem:[%s1] sm:$0x3]
  %v45 = vperm.slane %v43, 0
  %v46 = vperm.slane %v43, 1
  %v49 = vadd.f32 %v11, %v45
  %v50 = vadd.f32 %v12, %v46
  %v51 = vadd.f32 %v13, %v45
  %v52 = vadd.f32 %v14, %v46
  %v53 = vadd.f32 %v15, %v45
  %v54 = vadd.f32 %v16, %v46
  %v55 = vadd.f32 %v17, %v45
  %v56 = vadd.f32 %v18, %v46
  %v57 = vadd.f32 %v19, %v45
  %v58 = vadd.f32 %v20, %v46
  %v59 = vadd.f32 %v21, %v45
  %v60 = vadd.f32 %v22, %v46
  %v61 = vadd.f32 %v23, %v45
  %v62 = vadd.f32 %v24, %v46
  %v63 = vadd.f32 %v25, %v45
  %v64 = vadd.f32 %v26, %v46
  %v65 = vadd.f32 %v27, %v45
  %v66 = vadd.f32 %v28, %v46
  %v67 = vadd.f32 %v29, %v45
  %v68 = vadd.f32 %v30, %v46
  %v69 = vadd.f32 %v31, %v45
  %v70 = vadd.f32 %v32, %v46
  %v71 = vadd.f32 %v33, %v45
  %v72 = vadd.f32 %v34, %v46
  %v73 = vadd.f32 %v35, %v45
  %v74 = vadd.f32 %v36, %v46
  %v75 = vadd.f32 %v37, %v45
  %v76 = vadd.f32 %v38, %v46
  %v77 = vadd.f32 %v39, %v45
  %v78 = vadd.f32 %v40, %v46
  %v79 = vadd.f32 %v41, %v45
  %v80 = vadd.f32 %v42, %v46
  %v81 = vtanh.pop %v49
  %v82 = vtanh.pop %v50
  %v83 = vtanh.pop %v51
  %v84 = vtanh.pop %v52
  %v85 = vtanh.pop %v53
  %v86 = vtanh.pop %v54
  %v87 = vtanh.pop %v55
  %v88 = vtanh.pop %v56
  %v89 = vtanh.pop %v57
  %v90 = vtanh.pop %v58
  %v91 = vtanh.pop %v59
  %v92 = vtanh.pop %v60
  %v93 = vtanh.pop %v61
  %v94 = vtanh.pop %v62
  %v95 = vtanh.pop %v63
  %v96 = vtanh.pop %v64
  %v97 = vtanh.pop %v65
  %v98 = vtanh.pop %v66
  %v99 = vtanh.pop %v67
  %v100 = vtanh.pop %v68
  %v101 = vtanh.pop %v69
  %v102 = vtanh.pop %v70
  %v103 = vtanh.pop %v71
  %v104 = vtanh.pop %v72
  %v105 = vtanh.pop %v73
  %v106 = vtanh.pop %v74
  %v107 = vtanh.pop %v75
  %v108 = vtanh.pop %v76
  %v109 = vtanh.pop %v77
  %v110 = vtanh.pop %v78
  %v111 = vtanh.pop %v79
  %v112 = vtanh.pop %v80
  %113 = vst [vmem:[%s2] sm:$0xff] %v81
  %vm114 = vcmask 523264
  %115 = vst.msk [vmem:[%s2 + $0x8] sm:$0xff] %vm114, %v82
  %116 = vst [vmem:[%s2 + $0x10] sm:$0xff] %v83
  %117 = vst.msk [vmem:[%s2 + $0x18] sm:$0xff] %vm114, %v84
  %118 = vst [vmem:[%s2 + $0x20] sm:$0xff] %v85
  %119 = vst.msk [vmem:[%s2 + $0x28] sm:$0xff] %vm114, %v86
  %120 = vst [vmem:[%s2 + $0x30] sm:$0xff] %v87
  %121 = vst.msk [vmem:[%s2 + $0x38] sm:$0xff] %vm114, %v88
  %122 = vst [vmem:[%s2 + $0x40] sm:$0xff] %v89
  %123 = vst.msk [vmem:[%s2 + $0x48] sm:$0xff] %vm114, %v90
  %124 = vst [vmem:[%s2 + $0x50] sm:$0xff] %v91
  %125 = vst.msk [vmem:[%s2 + $0x58] sm:$0xff] %vm114, %v92
  %126 = vst [vmem:[%s2 + $0x60] sm:$0xff] %v93
  %127 = vst.msk [vmem:[%s2 + $0x68] sm:$0xff] %vm114, %v94
  %128 = vst [vmem:[%s2 + $0x70] sm:$0xff] %v95
  %129 = vst.msk [vmem:[%s2 + $0x78] sm:$0xff] %vm114, %v96
  %130 = vst [vmem:[%s2 + $0x80] sm:$0xff] %v97
  %131 = vst.msk [vmem:[%s2 + $0x88] sm:$0xff] %vm114, %v98
  %132 = vst [vmem:[%s2 + $0x90] sm:$0xff] %v99
  %133 = vst.msk [vmem:[%s2 + $0x98] sm:$0xff] %vm114, %v100
  %134 = vst [vmem:[%s2 + $0xa0] sm:$0xff] %v101
  %135 = vst.msk [vmem:[%s2 + $0xa8] sm:$0xff] %vm114, %v102
  %136 = vst [vmem:[%s2 + $0xb0] sm:$0xff] %v103
  %137 = vst.msk [vmem:[%s2 + $0xb8] sm:$0xff] %vm114, %v104
  %138 = vst [vmem:[%s2 + $0xc0] sm:$0xff] %v105
  %139 = vst.msk [vmem:[%s2 + $0xc8] sm:$0xff] %vm114, %v106
  %140 = vst [vmem:[%s2 + $0xd0] sm:$0xff] %v107
  %141 = vst.msk [vmem:[%s2 + $0xd8] sm:$0xff] %vm114, %v108
  %142 = vst [vmem:[%s2 + $0xe0] sm:$0xff] %v109
  %143 = vst.msk [vmem:[%s2 + $0xe8] sm:$0xff] %vm114, %v110
  %144 = vst [vmem:[%s2 + $0xf0] sm:$0xff] %v111
  %145 = vst.msk [vmem:[%s2 + $0xf8] sm:$0xff] %vm114, %v112
  // Predicated region
  $region10: #{a_call__.19} parent=0 // pred_check
    _
  $region11: #{a_call__.19} parent=0 // pred_check_branch
    %147 = sbr.rel (0) target = $region13
  $region12: #{a_call__.19} parent=0 // pred_region
    _
  $region13: #{a_call__.19} parent=0 // pred_fallthru
    _
  // Predicated region
  $region14: #{a_call__.19} parent=0 // pred_check
    _
  $region15: #{a_call__.19} parent=0 // pred_check_branch
    %149 = sbr.rel (0) target = $region17
  $region16: #{a_call__.19} parent=0 // pred_region
    _
  $region17: #{a_call__.19} parent=0 // pred_fallthru
    _

</llo_original>
